<compile_context>
chip_gen: v6e
topology: v6e:2x2x1
jax: 0.10.0
libtpu: 0.0.40
codegen_flags: <defaults>
</compile_context>

<pallas_src>
import functools
import math

import jax
import jax.numpy as jnp
from jax.experimental import pallas as pl
from jax.experimental.pallas import tpu as pltpu

EMBED_SIZE = 256     # embed_size from the module
FEAT_CH = 128        # stand-in for resnet.fc.in_features (=2048); multiple of 128
BN_EPS = 1e-5        # nn.BatchNorm1d default eps


# ---------------------------------------------------------------------------
# Kernel 1: streamed backbone (1x1 conv) + ReLU + global average pool
# ---------------------------------------------------------------------------
def backbone_pool_kernel(x_ref, w1_ref, pooled_ref, acc_ref, *, inv_hw, use_mxu, seg):
    # x_ref:      (bb, hw_tile, Cin) bf16 -- bb images x one spatial tile, channels-last
    # w1_ref:     (Cin, Cf)          bf16 -- resident (constant index_map)
    # pooled_ref: (bb, Cf)           f32  -- output block, resident across spatial axis
    # acc_ref:    (bb, seg, Cf)      f32  -- per-image sublane-aligned partial sums
    s = pl.program_id(1)

    @pl.when(s == 0)
    def _init():
        acc_ref[...] = jnp.zeros_like(acc_ref)

    bb, hw_tile, cin = x_ref.shape
    cf = w1_ref.shape[1]

    x2d = x_ref[...].reshape(bb * hw_tile, cin)
    if use_mxu:
        # Real-backbone scale (Cin >= 16): one bf16 MXU matmul, f32 accumulation.
        feat = jnp.dot(x2d, w1_ref[...], preferred_element_type=jnp.float32)
    else:
        # Toy-scale Cin: K is far below one MXU pass -> unrolled VPU broadcast-FMA.
        xf = x2d.astype(jnp.float32)
        w1f = w1_ref[...].astype(jnp.float32)
        feat = xf[:, 0:1] * w1f[0:1, :]
        for k in range(1, cin):
            feat = feat + xf[:, k:k + 1] * w1f[k:k + 1, :]
    feat = jnp.maximum(feat, 0.0)                        # ReLU in f32 (VPU)

    # Segmented partial pooling: fold hw_tile rows into `seg` sublane-aligned partial
    # rows per image (pure VPU adds across vregs; no per-step cross-sublane reduce,
    # no narrow masked stores).
    acc_ref[...] += jnp.sum(
        feat.reshape(bb, hw_tile // seg, seg, cf), axis=1)

    @pl.when(s == pl.num_programs(1) - 1)
    def _finalize():
        # One seg->1 cross-sublane reduce per image + AdaptiveAvgPool2d(1) scale,
        # then a single dense (bb, Cf) store.
        pooled_ref[...] = jnp.sum(acc_ref[...], axis=1) * inv_hw


# ---------------------------------------------------------------------------
# Kernel 2: epilogue — Linear(Cf -> E) + BatchNorm1d(E) (training-mode stats)
# ---------------------------------------------------------------------------
def embed_bn_kernel(pooled_ref, w2_ref, b2_ref, gamma_ref, beta_ref, out_ref):
    pooled = pooled_ref[...]                               # (B, Cf) f32
    # self.embedding: y = pooled @ w2 + b2   (w2 is transposed vs. nn.Linear.weight)
    y = jnp.dot(pooled, w2_ref[...], preferred_element_type=jnp.float32)
    y = y + b2_ref[...]                                    # (B, E)
    # self.bn: BatchNorm1d, training mode (batch stats, biased variance)
    mu = jnp.mean(y, axis=0, keepdims=True)
    var = jnp.mean((y - mu) ** 2, axis=0, keepdims=True)
    y_hat = (y - mu) * jax.lax.rsqrt(var + BN_EPS)
    out_ref[...] = y_hat * gamma_ref[...] + beta_ref[...]


# ---------------------------------------------------------------------------
# Helpers
# ---------------------------------------------------------------------------
def _padded_vmem_bytes(shape, itemsize):
    """(sublane,128)-tile-padded VMEM footprint of one buffer of `shape`."""
    if len(shape) == 1:
        shape = (1,) + tuple(shape)
    lead = 1
    for d in shape[:-2]:
        lead *= int(d)
    sub_mult = 8 * max(1, 4 // itemsize)          # 8 for f32, 16 for bf16
    sub = -(-int(shape[-2]) // sub_mult) * sub_mult
    lane = -(-int(shape[-1]) // 128) * 128
    return lead * sub * lane * itemsize


def _pick_hw_tile(hw, target):
    """Largest divisor of hw that is <= target and legal as a block dim
    (multiple of 8, or the full extent)."""
    for d in range(min(target, hw), 0, -1):
        if hw % d == 0 and (d % 8 == 0 or d == hw):
            return d
    return hw  # pathological hw: fall back to the full extent (still correct)


# ---------------------------------------------------------------------------
# Wrapper
# ---------------------------------------------------------------------------
@functools.partial(jax.jit, static_argnames=("hw_tile_target",))
def encoder_cnn_forward(images, w1, w2, b2, gamma, beta, *, hw_tile_target=512):
    """images: (B, Cin, H, W) NCHW float32.  Returns (B, EMBED_SIZE) float32."""
    B, Cin, H, W = images.shape
    HW = H * W
    Cf = w1.shape[1]
    E = w2.shape[1]

    hw_tile = _pick_hw_tile(HW, hw_tile_target)
    n_hw = HW // hw_tile
    seg = math.gcd(hw_tile, 8)
    inv_hw = 1.0 / float(HW)

    # Batch blocking: 8 images per grid step when possible (dense 8-row output
    # stores, 8x matmul M); otherwise the whole batch in one block (legal block dim).
    bb = 8 if B % 8 == 0 else B
    use_mxu = Cin >= 16

    # NCHW -> (B, HW, Cin) channels-last + bf16 cast.  With allow_input_fusion below
    # (and the whole function jitted) XLA fuses this into the kernel-1 input DMA
    # instead of a separate full-tensor HBM pass.
    x = jnp.transpose(images, (0, 2, 3, 1)).reshape(B, HW, Cin).astype(jnp.bfloat16)
    w1b = w1.astype(jnp.bfloat16)

    # Exact per-buffer VMEM sum (+50% headroom), capped at 40 MiB so it is safe on
    # v7x's 64 MiB VMEM; on 128 MiB parts (v5e/v6e) this cap could be raised to ~96 MiB.
    est = (2 * _padded_vmem_bytes((bb, hw_tile, Cin), 2)   # x tile, bf16, double-buffered
           + 2 * _padded_vmem_bytes((Cin, Cf), 2)          # w1, bf16 (resident)
           + 2 * _padded_vmem_bytes((bb, Cf), 4)           # pooled output block, f32
           + _padded_vmem_bytes((bb, seg, Cf), 4))         # accumulator scratch, f32
    vmem_limit = min(40 * 1024 * 1024, max(4 * 1024 * 1024, int(1.5 * est)))

    # ---- Kernel 1: backbone + ReLU + pool, grid = (batch blocks, spatial tiles) ----
    pooled = pl.pallas_call(
        functools.partial(backbone_pool_kernel, inv_hw=inv_hw, use_mxu=use_mxu, seg=seg),
        out_shape=jax.ShapeDtypeStruct((B, Cf), jnp.float32),
        grid=(B // bb, n_hw),
        in_specs=[
            # x: (bb, hw_tile, Cin) tile per step, double-buffered by the pipeline.
            pl.BlockSpec((bb, hw_tile, Cin), lambda b, s: (b, s, 0)),
            # w1: resident across the whole grid.
            pl.BlockSpec((Cin, Cf), lambda b, s: (0, 0)),
        ],
        out_specs=pl.BlockSpec((bb, Cf), lambda b, s: (b, 0)),
        scratch_shapes=[pltpu.VMEM((bb, seg, Cf), jnp.float32)],
        compiler_params=pltpu.CompilerParams(
            dimension_semantics=("parallel", "arbitrary"),  # batch parallel (megacore),
            allow_input_fusion=[True, False],               # spatial = reduction axis
            vmem_limit_bytes=int(vmem_limit),
        ),
    )(x, w1b)

    # ---- Kernel 2: tiny epilogue, whole (B, Cf)/(B, E) arrays fit in VMEM ----
    vmem_spec = pl.BlockSpec(memory_space=pltpu.MemorySpace.VMEM)
    out = pl.pallas_call(
        embed_bn_kernel,
        out_shape=jax.ShapeDtypeStruct((B, E), jnp.float32),
        in_specs=[vmem_spec] * 5,
        out_specs=vmem_spec,
    )(pooled, w2, b2.reshape(1, E), gamma.reshape(1, E), beta.reshape(1, E))
    return out


if __name__ == "__main__":
    key = jax.random.PRNGKey(0)
    k_img, k_w1, k_w2 = jax.random.split(key, 3)

    # Small shapes: batch=16 (two 8-image blocks -> both TensorCores busy on 2-TC
    # parts), channels=4, spatial=16x16.
    B, Cin, H, W = 16, 4, 16, 16
    images = jax.random.normal(k_img, (B, Cin, H, W), dtype=jnp.float32)

    # Deterministic parameter init (synthetic; no checkpoint load)
    w1 = jax.random.normal(k_w1, (Cin, FEAT_CH), dtype=jnp.float32) * 0.1
    w2 = jax.random.normal(k_w2, (FEAT_CH, EMBED_SIZE), dtype=jnp.float32) * 0.05
    b2 = jnp.zeros((EMBED_SIZE,), dtype=jnp.float32)
    gamma = jnp.ones((EMBED_SIZE,), dtype=jnp.float32)    # BN weight init
    beta = jnp.zeros((EMBED_SIZE,), dtype=jnp.float32)    # BN bias init

    out = encoder_cnn_forward(images, w1, w2, b2, gamma, beta)
    out = jax.block_until_ready(out)
    assert out.shape == (B, EMBED_SIZE), out.shape
    assert bool(jnp.all(jnp.isfinite(out)))
    print("KERNEL_OK")
</pallas_src>

<mosaic_0001>
module attributes {stable_mosaic.version = 11 : i64} {
  func.func @backbone_pool_kernel(%arg0: i32, %arg1: i32, %arg2: memref<8x256x4xbf16, #tpu.memory_space<vmem>>, %arg3: memref<4x128xbf16, #tpu.memory_space<vmem>>, %arg4: memref<8x128xf32, #tpu.memory_space<vmem>>, %arg5: memref<8x8x128xf32, #tpu.memory_space<vmem>>) attributes {dimension_semantics = [#tpu.dimension_semantics<parallel>, #tpu.dimension_semantics<arbitrary>], iteration_bounds = array<i64: 2, 1>, scalar_prefetch = 0 : i64, scratch_operands = 1 : i64, tpu.core_type = #tpu.core_type<tc>, window_params = [{transform_indices = @transform_0, window_bounds = array<i64: 8, 256, 4>}, {pipeline_mode = #tpu.pipeline_mode<synchronous>, transform_indices = @transform_1, window_bounds = array<i64: 4, 128>}, {transform_indices = @transform_2, window_bounds = array<i64: 8, 128>}]} {
    %c0_i32 = arith.constant 0 : i32
    %0 = arith.cmpi eq, %arg1, %c0_i32 : i32
    %1 = arith.extui %0 : i1 to i32
    %c0_i32_0 = arith.constant 0 : i32
    %2 = arith.cmpi ne, %1, %c0_i32_0 : i32
    scf.if %2 {
      %cst_14 = arith.constant 0.000000e+00 : f32
      %41 = vector.broadcast %cst_14 : f32 to vector<8x8x128xf32>
      %c0_15 = arith.constant 0 : index
      %c0_16 = arith.constant 0 : index
      %c0_17 = arith.constant 0 : index
      %42 = vector.load %arg5[%c0_15, %c0_16, %c0_17] : memref<8x8x128xf32, #tpu.memory_space<vmem>>, vector<8x8x128xf32>
      tpu.vector_store %arg5[%c0_15, %c0_16, %c0_17], %41 {strides = array<i32>} : memref<8x8x128xf32, #tpu.memory_space<vmem>>, vector<8x8x128xf32>,
    } else {
    }
    %c0 = arith.constant 0 : index
    %c0_1 = arith.constant 0 : index
    %c0_2 = arith.constant 0 : index
    %3 = vector.load %arg2[%c0, %c0_1, %c0_2] : memref<8x256x4xbf16, #tpu.memory_space<vmem>>, vector<8x256x4xbf16>
    %4 = vector.shape_cast %3 : vector<8x256x4xbf16> to vector<2048x4xbf16>
    %5 = arith.extf %4 : vector<2048x4xbf16> to vector<2048x4xf32>
    %c0_3 = arith.constant 0 : index
    %c0_4 = arith.constant 0 : index
    %6 = vector.load %arg3[%c0_3, %c0_4] : memref<4x128xbf16, #tpu.memory_space<vmem>>, vector<4x128xbf16>
    %7 = arith.extf %6 : vector<4x128xbf16> to vector<4x128xf32>
    %8 = vector.extract_strided_slice %5 {offsets = [0, 0], sizes = [2048, 1], strides = [1, 1]} : vector<2048x4xf32> to vector<2048x1xf32>
    %9 = vector.extract_strided_slice %7 {offsets = [0, 0], sizes = [1, 128], strides = [1, 1]} : vector<4x128xf32> to vector<1x128xf32>
    %10 = vector.broadcast %8 : vector<2048x1xf32> to vector<2048x128xf32>
    %11 = vector.broadcast %9 : vector<1x128xf32> to vector<2048x128xf32>
    %12 = arith.mulf %10, %11 : vector<2048x128xf32>
    %13 = vector.extract_strided_slice %5 {offsets = [0, 1], sizes = [2048, 1], strides = [1, 1]} : vector<2048x4xf32> to vector<2048x1xf32>
    %14 = vector.extract_strided_slice %7 {offsets = [1, 0], sizes = [1, 128], strides = [1, 1]} : vector<4x128xf32> to vector<1x128xf32>
    %15 = vector.broadcast %13 : vector<2048x1xf32> to vector<2048x128xf32>
    %16 = vector.broadcast %14 : vector<1x128xf32> to vector<2048x128xf32>
    %17 = arith.mulf %15, %16 : vector<2048x128xf32>
    %18 = arith.addf %12, %17 : vector<2048x128xf32>
    %19 = vector.extract_strided_slice %5 {offsets = [0, 2], sizes = [2048, 1], strides = [1, 1]} : vector<2048x4xf32> to vector<2048x1xf32>
    %20 = vector.extract_strided_slice %7 {offsets = [2, 0], sizes = [1, 128], strides = [1, 1]} : vector<4x128xf32> to vector<1x128xf32>
    %21 = vector.broadcast %19 : vector<2048x1xf32> to vector<2048x128xf32>
    %22 = vector.broadcast %20 : vector<1x128xf32> to vector<2048x128xf32>
    %23 = arith.mulf %21, %22 : vector<2048x128xf32>
    %24 = arith.addf %18, %23 : vector<2048x128xf32>
    %25 = vector.extract_strided_slice %5 {offsets = [0, 3], sizes = [2048, 1], strides = [1, 1]} : vector<2048x4xf32> to vector<2048x1xf32>
    %26 = vector.extract_strided_slice %7 {offsets = [3, 0], sizes = [1, 128], strides = [1, 1]} : vector<4x128xf32> to vector<1x128xf32>
    %27 = vector.broadcast %25 : vector<2048x1xf32> to vector<2048x128xf32>
    %28 = vector.broadcast %26 : vector<1x128xf32> to vector<2048x128xf32>
    %29 = arith.mulf %27, %28 : vector<2048x128xf32>
    %30 = arith.addf %24, %29 : vector<2048x128xf32>
    %cst = arith.constant 0.000000e+00 : f32
    %31 = vector.broadcast %cst : f32 to vector<2048x128xf32>
    %32 = arith.maximumf %30, %31 : vector<2048x128xf32>
    %c0_5 = arith.constant 0 : index
    %c0_6 = arith.constant 0 : index
    %c0_7 = arith.constant 0 : index
    %33 = vector.load %arg5[%c0_5, %c0_6, %c0_7] : memref<8x8x128xf32, #tpu.memory_space<vmem>>, vector<8x8x128xf32>
    %34 = vector.shape_cast %32 : vector<2048x128xf32> to vector<8x32x8x128xf32>
    %cst_8 = arith.constant dense<0.000000e+00> : vector<8x8x128xf32>
    %35 = vector.multi_reduction <add>, %34, %cst_8 [1] : vector<8x32x8x128xf32> to vector<8x8x128xf32>
    %36 = arith.addf %33, %35 : vector<8x8x128xf32>
    %c0_9 = arith.constant 0 : index
    %c0_10 = arith.constant 0 : index
    %c0_11 = arith.constant 0 : index
    %37 = vector.load %arg5[%c0_9, %c0_10, %c0_11] : memref<8x8x128xf32, #tpu.memory_space<vmem>>, vector<8x8x128xf32>
    tpu.vector_store %arg5[%c0_9, %c0_10, %c0_11], %36 {strides = array<i32>} : memref<8x8x128xf32, #tpu.memory_space<vmem>>, vector<8x8x128xf32>,
    %c0_i32_12 = arith.constant 0 : i32
    %38 = arith.cmpi eq, %arg1, %c0_i32_12 : i32
    %39 = arith.extui %38 : i1 to i32
    %c0_i32_13 = arith.constant 0 : i32
    %40 = arith.cmpi ne, %39, %c0_i32_13 : i32
    scf.if %40 {
      %c0_14 = arith.constant 0 : index
      %c0_15 = arith.constant 0 : index
      %c0_16 = arith.constant 0 : index
      %41 = vector.load %arg5[%c0_14, %c0_15, %c0_16] : memref<8x8x128xf32, #tpu.memory_space<vmem>>, vector<8x8x128xf32>
      %cst_17 = arith.constant dense<0.000000e+00> : vector<8x128xf32>
      %42 = vector.multi_reduction <add>, %41, %cst_17 [1] : vector<8x8x128xf32> to vector<8x128xf32>
      %cst_18 = arith.constant 3.906250e-03 : f32
      %43 = vector.broadcast %cst_18 : f32 to vector<8x128xf32>
      %44 = arith.mulf %42, %43 : vector<8x128xf32>
      %c0_19 = arith.constant 0 : index
      %c0_20 = arith.constant 0 : index
      %45 = vector.load %arg4[%c0_19, %c0_20] : memref<8x128xf32, #tpu.memory_space<vmem>>, vector<8x128xf32>
      tpu.vector_store %arg4[%c0_19, %c0_20], %44 {strides = array<i32>} : memref<8x128xf32, #tpu.memory_space<vmem>>, vector<8x128xf32>,
    } else {
    }
    return
  }
  func.func @transform_0(%arg0: i32, %arg1: i32) -> (i32, i32, i32) {
    %c0_i32 = arith.constant 0 : i32
    %c0_i32_0 = arith.constant 0 : i32
    return %arg0, %arg1, %c0_i32 : i32, i32, i32
  }
  func.func @transform_1(%arg0: i32, %arg1: i32) -> (i32, i32) {
    %c0_i32 = arith.constant 0 : i32
    %c0_i32_0 = arith.constant 0 : i32
    %c0_i32_1 = arith.constant 0 : i32
    return %c0_i32, %c0_i32_0 : i32, i32
  }
  func.func @transform_2(%arg0: i32, %arg1: i32) -> (i32, i32) {
    %c0_i32 = arith.constant 0 : i32
    %c0_i32_0 = arith.constant 0 : i32
    return %arg0, %c0_i32 : i32, i32
  }
}

module attributes {stable_mosaic.version = 11 : i64} {
  func.func @embed_bn_kernel(%arg0: memref<16x128xf32, #tpu.memory_space<vmem>>, %arg1: memref<128x256xf32, #tpu.memory_space<vmem>>, %arg2: memref<1x256xf32, #tpu.memory_space<vmem>>, %arg3: memref<1x256xf32, #tpu.memory_space<vmem>>, %arg4: memref<1x256xf32, #tpu.memory_space<vmem>>, %arg5: memref<16x256xf32, #tpu.memory_space<vmem>>) attributes {dimension_semantics = [], scalar_prefetch = 0 : i64, scratch_operands = 0 : i64, tpu.core_type = #tpu.core_type<tc>} {
    %c0 = arith.constant 0 : index
    %c0_0 = arith.constant 0 : index
    %0 = vector.load %arg0[%c0, %c0_0] : memref<16x128xf32, #tpu.memory_space<vmem>>, vector<16x128xf32>
    %c0_1 = arith.constant 0 : index
    %c0_2 = arith.constant 0 : index
    %1 = vector.load %arg1[%c0_1, %c0_2] : memref<128x256xf32, #tpu.memory_space<vmem>>, vector<128x256xf32>
    %cst = arith.constant dense<0.000000e+00> : vector<16x256xf32>
    %2 = tpu.matmul %0, %1, %cst {dimension_numbers = #tpu.dot_dimension_numbers<[1], [0], [0], [1], [0, 0, 1, 1], [], []>} : vector<16x128xf32>, vector<128x256xf32>, vector<16x256xf32> -> vector<16x256xf32>
    %c0_3 = arith.constant 0 : index
    %c0_4 = arith.constant 0 : index
    %3 = vector.load %arg2[%c0_3, %c0_4] : memref<1x256xf32, #tpu.memory_space<vmem>>, vector<1x256xf32>
    %4 = vector.broadcast %3 : vector<1x256xf32> to vector<16x256xf32>
    %5 = arith.addf %2, %4 : vector<16x256xf32>
    %cst_5 = arith.constant dense<0.000000e+00> : vector<256xf32>
    %6 = vector.multi_reduction <add>, %5, %cst_5 [0] : vector<16x256xf32> to vector<256xf32>
    %7 = vector.shape_cast %6 : vector<256xf32> to vector<1x256xf32>
    %cst_6 = arith.constant 1.600000e+01 : f32
    %8 = vector.broadcast %cst_6 : f32 to vector<1x256xf32>
    %9 = arith.divf %7, %8 : vector<1x256xf32>
    %10 = vector.broadcast %9 : vector<1x256xf32> to vector<16x256xf32>
    %11 = arith.subf %5, %10 : vector<16x256xf32>
    %12 = arith.mulf %11, %11 : vector<16x256xf32>
    %cst_7 = arith.constant dense<0.000000e+00> : vector<256xf32>
    %13 = vector.multi_reduction <add>, %12, %cst_7 [0] : vector<16x256xf32> to vector<256xf32>
    %14 = vector.shape_cast %13 : vector<256xf32> to vector<1x256xf32>
    %cst_8 = arith.constant 1.600000e+01 : f32
    %15 = vector.broadcast %cst_8 : f32 to vector<1x256xf32>
    %16 = arith.divf %14, %15 : vector<1x256xf32>
    %17 = vector.broadcast %9 : vector<1x256xf32> to vector<16x256xf32>
    %18 = arith.subf %5, %17 : vector<16x256xf32>
    %cst_9 = arith.constant 9.99999974E-6 : f32
    %19 = vector.broadcast %cst_9 : f32 to vector<1x256xf32>
    %20 = arith.addf %16, %19 : vector<1x256xf32>
    %21 = math.rsqrt %20 : vector<1x256xf32>
    %22 = vector.broadcast %21 : vector<1x256xf32> to vector<16x256xf32>
    %23 = arith.mulf %18, %22 : vector<16x256xf32>
    %c0_10 = arith.constant 0 : index
    %c0_11 = arith.constant 0 : index
    %24 = vector.load %arg3[%c0_10, %c0_11] : memref<1x256xf32, #tpu.memory_space<vmem>>, vector<1x256xf32>
    %25 = vector.broadcast %24 : vector<1x256xf32> to vector<16x256xf32>
    %26 = arith.mulf %23, %25 : vector<16x256xf32>
    %c0_12 = arith.constant 0 : index
    %c0_13 = arith.constant 0 : index
    %27 = vector.load %arg4[%c0_12, %c0_13] : memref<1x256xf32, #tpu.memory_space<vmem>>, vector<1x256xf32>
    %28 = vector.broadcast %27 : vector<1x256xf32> to vector<16x256xf32>
    %29 = arith.addf %26, %28 : vector<16x256xf32>
    %c0_14 = arith.constant 0 : index
    %c0_15 = arith.constant 0 : index
    %30 = vector.load %arg5[%c0_14, %c0_15] : memref<16x256xf32, #tpu.memory_space<vmem>>, vector<16x256xf32>
    tpu.vector_store %arg5[%c0_14, %c0_15], %29 {strides = array<i32>} : memref<16x256xf32, #tpu.memory_space<vmem>>, vector<16x256xf32>,
    return
  }
}

</mosaic_0001>

<llo_original>
// kernel: encoder_cnn_forward.3
$region0: #{encoder_cnn_forward.3}
  #allocation0 [shape = 'u32[]', space=smem, size = 0x4, offset = 0x4, fixed_abs, tag = 'smem constant byte address 0x4 - core index']
  #allocation1 [shape = 'u32[144,128]{1,0:T(1,128)}', space=vmem, size = 0x12000, scoped, tag = 'internal scratch']
  %s0 = inlined_call_operand.vmem [shape: f32[16,128], index: 0, kind: input, shape index: {}]
  %s1 = inlined_call_operand.vmem [shape: f32[128,256], index: 1, kind: input, shape index: {}]
  %s2 = inlined_call_operand.vmem [shape: f32[1,256], index: 2, kind: input, shape index: {}]
  %s3 = inlined_call_operand.vmem [shape: f32[1,256], index: 3, kind: input, shape index: {}]
  %s4 = inlined_call_operand.vmem [shape: f32[1,256], index: 4, kind: input, shape index: {}]
  %s5 = inlined_call_operand.hbm [shape: f32[16,256], index: 5, kind: output, shape index: {}]
  %s6 = sld [smem:[#allocation0]]
  $region30: #{encoder_cnn_forward.3} parent=0
    _
  %s8 = ssub.s32 1, %s6
  %s9 = scalar_select 0, %s8, %s6
  $region1: #{encoder_cnn_forward.3} parent=0
    #allocation2 [shape = 'u8[16384]{0}', space=vmem, size = 0x4000, scoped, tag = 'output window, operand 0, single buffered']
    #allocation3 [shape = 's32[1]{0}', space=sflag, size = 0x4, scoped, tag = 'scoped memory for encoder_cnn_forward.3']
    %10 = vsyncpa [#allocation3], 0
    // Predicated region
    $region2: #{encoder_cnn_forward.3} parent=1 // pred_check
      _
    $region3: #{encoder_cnn_forward.3} parent=1 // pred_check_branch
      %12 = sbr.rel (0) target = $region5
    $region4: #{encoder_cnn_forward.3} parent=1 // pred_region
      _
    $region5: #{encoder_cnn_forward.3} parent=1 // pred_fallthru
      _
    // Predicated region
    $region6: #{encoder_cnn_forward.3} parent=1 // pred_check
      _
    $region7: #{encoder_cnn_forward.3} parent=1 // pred_check_branch
      %14 = sbr.rel (0) target = $region9
    $region8: #{encoder_cnn_forward.3} parent=1 // pred_region
      _
    $region9: #{encoder_cnn_forward.3} parent=1 // pred_fallthru
      _
    // Predicated region
    $region10: #{encoder_cnn_forward.3} parent=1 // pred_check
      _
    $region11: #{encoder_cnn_forward.3} parent=1 // pred_check_branch
      %16 = sbr.rel (0) target = $region13
    $region12: #{encoder_cnn_forward.3} parent=1 // pred_region
      _
    $region13: #{encoder_cnn_forward.3} parent=1 // pred_fallthru
      _
    // Predicated region
    $region14: #{encoder_cnn_forward.3} parent=1 // pred_check
      _
    $region15: #{encoder_cnn_forward.3} parent=1 // pred_check_branch
      %18 = sbr.rel (0) target = $region17
    $region16: #{encoder_cnn_forward.3} parent=1 // pred_region
      _
    $region17: #{encoder_cnn_forward.3} parent=1 // pred_fallthru
      _
    // Predicated region
    $region18: #{encoder_cnn_forward.3} parent=1 // pred_check
      _
    $region19: #{encoder_cnn_forward.3} parent=1 // pred_check_branch
      %20 = sbr.rel (0) target = $region21
    $region20: #{encoder_cnn_forward.3} parent=1 // pred_region
      _
    $region21: #{encoder_cnn_forward.3} parent=1 // pred_fallthru
      _
    %v21 = vld [vmem:[%s0] sm:$0xff]
    %v22 = vld [vmem:[%s0 + $0x8] sm:$0xff]
    %v23 = vld [vmem:[%s1] sm:$0xff]
    %v24 = vld [vmem:[%s1 + $0x8] sm:$0xff]
    %v25 = vld [vmem:[%s1 + $0x10] sm:$0xff]
    %v26 = vld [vmem:[%s1 + $0x18] sm:$0xff]
    %v27 = vld [vmem:[%s1 + $0x20] sm:$0xff]
    %v28 = vld [vmem:[%s1 + $0x28] sm:$0xff]
    %v29 = vld [vmem:[%s1 + $0x30] sm:$0xff]
    %v30 = vld [vmem:[%s1 + $0x38] sm:$0xff]
    %v31 = vld [vmem:[%s1 + $0x40] sm:$0xff]
    %v32 = vld [vmem:[%s1 + $0x48] sm:$0xff]
    %v33 = vld [vmem:[%s1 + $0x50] sm:$0xff]
    %v34 = vld [vmem:[%s1 + $0x58] sm:$0xff]
    %v35 = vld [vmem:[%s1 + $0x60] sm:$0xff]
    %v36 = vld [vmem:[%s1 + $0x68] sm:$0xff]
    %v37 = vld [vmem:[%s1 + $0x70] sm:$0xff]
    %v38 = vld [vmem:[%s1 + $0x78] sm:$0xff]
    %v39 = vld [vmem:[%s1 + $0x80] sm:$0xff]
    %v40 = vld [vmem:[%s1 + $0x88] sm:$0xff]
    %v41 = vld [vmem:[%s1 + $0x90] sm:$0xff]
    %v42 = vld [vmem:[%s1 + $0x98] sm:$0xff]
    %v43 = vld [vmem:[%s1 + $0xa0] sm:$0xff]
    %v44 = vld [vmem:[%s1 + $0xa8] sm:$0xff]
    %v45 = vld [vmem:[%s1 + $0xb0] sm:$0xff]
    %v46 = vld [vmem:[%s1 + $0xb8] sm:$0xff]
    %v47 = vld [vmem:[%s1 + $0xc0] sm:$0xff]
    %v48 = vld [vmem:[%s1 + $0xc8] sm:$0xff]
    %v49 = vld [vmem:[%s1 + $0xd0] sm:$0xff]
    %v50 = vld [vmem:[%s1 + $0xd8] sm:$0xff]
    %v51 = vld [vmem:[%s1 + $0xe0] sm:$0xff]
    %v52 = vld [vmem:[%s1 + $0xe8] sm:$0xff]
    %v53 = vld [vmem:[%s1 + $0xf0] sm:$0xff]
    %v54 = vld [vmem:[%s1 + $0xf8] sm:$0xff]
    %v55 = vld [vmem:[%s2] sm:$0x3]
    %v57 = vlaneseq
    %v58 = vshrl.u32 %v57, 7
    %v59 = vsub.s32 0, %v58
    %v60 = vrot.slane %v55, %v59
    %v61 = vlaneseq
    %v62 = vshrl.u32 %v61, 7
    %v63 = vsub.s32 1, %v62
    %v64 = vrot.slane %v55, %v63
    %67 = vmatprep.subr.mxu0 %v54
    %68 = vmatpush1.msra.mxu0 %v53
    %69 = vmatprep.subr.mxu0 %v52
    %70 = vmatpush1.msra.mxu0 %v51
    %71 = vmatprep.subr.mxu0 %v50
    %72 = vmatpush1.msra.mxu0 %v49
    %73 = vmatprep.subr.mxu0 %v48
    %74 = vmatpush1.msra.mxu0 %v47
    %75 = vmatprep.subr.mxu0 %v46
    %76 = vmatpush1.msra.mxu0 %v45
    %77 = vmatprep.subr.mxu0 %v44
    %78 = vmatpush1.msra.mxu0 %v43
    %79 = vmatprep.subr.mxu0 %v42
    %80 = vmatpush1.msra.mxu0 %v41
    %81 = vmatprep.subr.mxu0 %v40
    %82 = vmatpush1.msra.mxu0 %v39
    %83 = vmatprep.subr.mxu0 %v38
    %84 = vmatpush1.msra.mxu0 %v37
    %85 = vmatprep.subr.mxu0 %v36
    %86 = vmatpush1.msra.mxu0 %v35
    %87 = vmatprep.subr.mxu0 %v34
    %88 = vmatpush1.msra.mxu0 %v33
    %89 = vmatprep.subr.mxu0 %v32
    %90 = vmatpush1.msra.mxu0 %v31
    %91 = vmatprep.subr.mxu0 %v30
    %92 = vmatpush1.msra.mxu0 %v29
    %93 = vmatprep.subr.mxu0 %v28
    %94 = vmatpush1.msra.mxu0 %v27
    %95 = vmatprep.subr.mxu0 %v26
    %96 = vmatpush1.msra.mxu0 %v25
    %97 = vmatprep.subr.mxu0 %v24
    %98 = vmatpush1.msra.mxu0 %v23
    %99 = vmatprep.subr.mxu0 0.0
    %100 = vmatpush2.msra.mxu0 0.0
    %101 = vmatprep.subr.mxu0 0.0
    %102 = vmatpush2.msra.mxu0 0.0
    %103 = vmatprep.subr.mxu0 0.0
    %104 = vmatpush2.msra.mxu0 0.0
    %105 = vmatprep.subr.mxu0 0.0
    %106 = vmatpush2.msra.mxu0 0.0
    %107 = vmatprep.subr.mxu0 0.0
    %108 = vmatpush2.msra.mxu0 0.0
    %109 = vmatprep.subr.mxu0 0.0
    %110 = vmatpush2.msra.mxu0 0.0
    %111 = vmatprep.subr.mxu0 0.0
    %112 = vmatpush2.msra.mxu0 0.0
    %113 = vmatprep.subr.mxu0 0.0
    %114 = vmatpush2.msra.mxu0 0.0
    %115 = vmatprep.subr.mxu0 0.0
    %116 = vmatpush2.msra.mxu0 0.0
    %117 = vmatprep.subr.mxu0 0.0
    %118 = vmatpush2.msra.mxu0 0.0
    %119 = vmatprep.subr.mxu0 0.0
    %120 = vmatpush2.msra.mxu0 0.0
    %121 = vmatprep.subr.mxu0 0.0
    %122 = vmatpush2.msra.mxu0 0.0
    %123 = vmatprep.subr.mxu0 0.0
    %124 = vmatpush2.msra.mxu0 0.0
    %125 = vmatprep.subr.mxu0 0.0
    %126 = vmatpush2.msra.mxu0 0.0
    %127 = vmatprep.subr.mxu0 0.0
    %128 = vmatpush2.msra.mxu0 0.0
    %129 = vmatprep.subr.mxu0 0.0
    %130 = vmatpush2.msra.mxu0 0.0
    %131 = vmatprep.mubr.f32.mxu0 0.0
    %132 = vmatmul.mubr.f32.gmra.mxu0 %v21
    %v133 = vpop.f32.mrf.mxu0
    %v134 = vadd.f32 %v60, %v133
    %v135 = vpop.f32.mrf.mxu0
    %v136 = vadd.f32 %v64, %v135
    %137 = vmatprep.mubr.f32.mxu0 0.0
    %138 = vmatmul.mubr.f32.gmra.mxu0 %v22
    %v139 = vpop.f32.mrf.mxu0
    %v140 = vadd.f32 %v60, %v139
    %v141 = vpop.f32.mrf.mxu0
    %v142 = vadd.f32 %v64, %v141
    %143 = vdwg.mxu0
    %v144 = vadd.f32 %v134, %v140
    %v145 = vrot.slane %v144, 4
    %v146 = vadd.f32 %v144, %v145
    %v147 = vrot.slane %v146, 2
    %v148 = vadd.f32 %v146, %v147
    %v149 = vrot.slane %v148, 1
    %v150 = vadd.f32 %v148, %v149
    %v151 = vadd.f32 %v136, %v142
    %v152 = vrot.slane %v151, 4
    %v153 = vadd.f32 %v151, %v152
    %v154 = vrot.slane %v153, 2
    %v155 = vadd.f32 %v153, %v154
    %v156 = vrot.slane %v155, 1
    %v157 = vadd.f32 %v155, %v156
    %v158 = vrcp.pop 16.0
    %v159 = vmul.f32 %v150, %v158
    %v160 = vmul.f32 %v157, %v158
    %v161 = vsub.f32 %v134, %v159
    %v162 = vsub.f32 %v136, %v160
    %v163 = vsub.f32 %v140, %v159
    %v164 = vsub.f32 %v142, %v160
    %v165 = vmul.f32 %v161, %v161
    %v166 = vmul.f32 %v162, %v162
    %v167 = vmul.f32 %v163, %v163
    %v168 = vmul.f32 %v164, %v164
    %v169 = vadd.f32 %v165, %v167
    %v170 = vrot.slane %v169, 4
    %v171 = vadd.f32 %v169, %v170
    %v172 = vrot.slane %v171, 2
    %v173 = vadd.f32 %v171, %v172
    %v174 = vrot.slane %v173, 1
    %v175 = vadd.f32 %v173, %v174
    %v176 = vadd.f32 %v166, %v168
    %v177 = vrot.slane %v176, 4
    %v178 = vadd.f32 %v176, %v177
    %v179 = vrot.slane %v178, 2
    %v180 = vadd.f32 %v178, %v179
    %v181 = vrot.slane %v180, 1
    %v182 = vadd.f32 %v180, %v181
    %v183 = vmul.f32 %v175, %v158
    %v184 = vmul.f32 %v182, %v158
    %v185 = vadd.f32 %v183, 1e-05
    %v186 = vadd.f32 %v184, 1e-05
    %v187 = vrsqrt.pop %v185
    %v188 = vrsqrt.pop %v186
    %v189 = vmul.f32 %v161, %v187
    %v190 = vmul.f32 %v162, %v188
    %v191 = vmul.f32 %v163, %v187
    %v192 = vmul.f32 %v164, %v188
    %v193 = vld [vmem:[%s3] sm:$0x3]
    %v195 = vlaneseq
    %v196 = vshrl.u32 %v195, 7
    %v197 = vsub.s32 0, %v196
    %v198 = vrot.slane %v193, %v197
    %v199 = vlaneseq
    %v200 = vshrl.u32 %v199, 7
    %v201 = vsub.s32 1, %v200
    %v202 = vrot.slane %v193, %v201
    %v205 = vmul.f32 %v189, %v198
    %v206 = vmul.f32 %v190, %v202
    %v207 = vmul.f32 %v191, %v198
    %v208 = vmul.f32 %v192, %v202
    %v209 = vld [vmem:[%s4] sm:$0x3]
    %v211 = vlaneseq
    %v212 = vshrl.u32 %v211, 7
    %v213 = vsub.s32 0, %v212
    %v214 = vrot.slane %v209, %v213
    %v215 = vlaneseq
    %v216 = vshrl.u32 %v215, 7
    %v217 = vsub.s32 1, %v216
    %v218 = vrot.slane %v209, %v217
    %v221 = vadd.f32 %v205, %v214
    %v222 = vadd.f32 %v206, %v218
    %v223 = vadd.f32 %v207, %v214
    %v224 = vadd.f32 %v208, %v218
    %225 = vst [vmem:[#allocation2] sm:$0xff] %v221
    %226 = vst [vmem:[#allocation2 + $0x8] sm:$0xff] %v222
    %227 = vst [vmem:[#allocation2 + $0x10] sm:$0xff] %v223
    %228 = vst [vmem:[#allocation2 + $0x18] sm:$0xff] %v224
    // Predicated region
    $region22: #{encoder_cnn_forward.3} parent=1 // pred_check
      _
    $region23: #{encoder_cnn_forward.3} parent=1 // pred_check_branch
      %230 = sbr.rel (0) target = $region25
    $region24: #{encoder_cnn_forward.3} parent=1 // pred_region
      %s232 = ssub.s32 512, 512
      %233 = vsyncadd [#allocation3], %s232
      %s234 = sshll.u32 [#allocation2], 4
      %s235 = int_to_ptr.vmem [resolvable:$true] %s234
      %240 = dma.vmem_to_hbm [thread:$0]  %s235, 512, %s5, [#allocation3], 256, 256, 16
    $region25: #{encoder_cnn_forward.3} parent=1 // pred_fallthru
      _
    // Predicated region
    $region26: #{encoder_cnn_forward.3} parent=1 // pred_check
      _
    $region27: #{encoder_cnn_forward.3} parent=1 // pred_check_branch
      %242 = sbr.rel (0) target = $region29
    $region28: #{encoder_cnn_forward.3} parent=1 // pred_region
      %243 = dma.done [#allocation3], 512
    $region29: #{encoder_cnn_forward.3} parent=1 // pred_fallthru
      _
    %244 = vsyncpa [#allocation3], 1

// kernel: encoder_cnn_forward.2
$region0: #{encoder_cnn_forward.2}
  #allocation0 [shape = 'u32[]', space=smem, size = 0x4, offset = 0x4, fixed_abs, tag = 'smem constant byte address 0x4 - core index']
  #allocation1 [shape = 'u32[144,128]{1,0:T(1,128)}', space=vmem, size = 0x12000, scoped, tag = 'internal scratch']
  #allocation2 [shape = 'f32[8,8,128]{2,1,0:T(8,128)}', space=vmem, size = 0x8000, scoped, tag = 'scratch operand']
  %s0 = inlined_call_operand.vmem [shape: bf16[16,256,4], index: 0, kind: input, shape index: {}]
  %s1 = inlined_call_operand.vmem [shape: bf16[4,128], index: 1, kind: input, shape index: {}]
  %s2 = inlined_call_operand.vmem [shape: f32[16,128], index: 2, kind: output, shape index: {}]
  %s3 = sld [smem:[#allocation0]]
  $region49: #{encoder_cnn_forward.2} parent=0
    _
  %s5 = ssub.s32 1, %s3
  %s6 = scalar_select 0, %s5, %s3
  loop: start=0, step=1, limit=4
  $region2: #{encoder_cnn_forward.2} parent=0 // loop_pre_header
    _
  $region3: #{encoder_cnn_forward.2} parent=0 // loop_header
    %s8 = sphi 0, %s12
    %p9 = scmp.ge.s32.totalorder %s8, 4
    %s15 = sphi 0, %s27
    %s16 = sphi 0, %s23
    %s17 = sphi 0, %s15
    %s18 = sphi 0, %s16
    %s19 = sphi 0, %s17
    %s20 = sphi 0, %s18
    %s32 = sphi 0, %s34
    %s35 = sphi 0, %s32
    %s36 = sphi 0, %s35
    %s52 = sphi 0, %s36
    %s56 = sphi 0, %s56
    %s58 = sphi 0, %s56
    %s59 = sphi 0, %s58
    %s73 = sphi 0, %s59
    %s79 = sphi 0, %s81
    %s82 = sphi 0, %s79
    %s83 = sphi 0, %s82
    %s99 = sphi 0, %s83
  $region4: #{encoder_cnn_forward.2} parent=0 // loop_header_branch
    %11 = sbr.rel (%p9) target = $region8
  $region5: #{encoder_cnn_forward.2} parent=0 // loop_body
    %s13 = ssub.s32 %s8, 1
    %s14 = ssub.s32 %s8, 2
    %s21 = sadd.s32 1, %s16
    %p22 = scmp.ge.s32.totalorder %s21, 1
    %s23 = scalar_select %p22, 0, %s21
    %s24 = sadd.s32 1, %s15
    %s25 = scalar_select %p22, %s24, %s15
    %p26 = scmp.ge.s32.totalorder %s25, 2
    %s27 = scalar_select %p26, 0, %s25
    %s28 = ssub.s32 %s15, %s27
    %s29 = ssub.s32 %s16, %s23
    %s30 = sor.u32 %s28, %s29
    %p31 = scmp.eq.s32.totalorder %s30, 0
    %s33 = sadd.s32 %s32, 1
    %s34 = scalar_select %p31, %s32, %s33
    %p37 = pneg %p31
    %p38 = scmp.eq.s32.totalorder %s8, 1
    %p39 = por %p37, %p38
    %p40 = scmp.ne.s32.totalorder %s32, %s35
    %p41 = scmp.eq.s32.totalorder %s8, 0
    %p42 = por %p40, %p41
    %p43 = scmp.ne.s32.totalorder %s32, %s35
    %p44 = scmp.eq.s32.totalorder %s13, 1
    %p45 = por %p43, %p44
    %p46 = scmp.ne.s32.totalorder %s35, %s36
    %p47 = scmp.eq.s32.totalorder %s13, 0
    %p48 = por %p46, %p47
    %p49 = scmp.ne.s32.totalorder %s35, %s36
    %p50 = scmp.eq.s32.totalorder %s14, 1
    %p51 = por %p49, %p50
    %p53 = scmp.ne.s32.totalorder %s36, %s52
    %p54 = scmp.eq.s32.totalorder %s14, 0
    %p55 = por %p53, %p54
    %s57 = sadd.s32 %s56, 1
    %p60 = scmp.eq.s32.totalorder %s8, 1
    %p61 = scmp.ne.s32.totalorder %s56, %s58
    %p62 = scmp.eq.s32.totalorder %s8, 0
    %p63 = por %p61, %p62
    %p64 = scmp.ne.s32.totalorder %s56, %s58
    %p65 = scmp.eq.s32.totalorder %s13, 1
    %p66 = por %p64, %p65
    %p67 = scmp.ne.s32.totalorder %s58, %s59
    %p68 = scmp.eq.s32.totalorder %s13, 0
    %p69 = por %p67, %p68
    %p70 = scmp.ne.s32.totalorder %s58, %s59
    %p71 = scmp.eq.s32.totalorder %s14, 1
    %p72 = por %p70, %p71
    %p74 = scmp.ne.s32.totalorder %s59, %s73
    %p75 = scmp.eq.s32.totalorder %s14, 0
    %p76 = por %p74, %p75
    %s77 = ssub.s32 %s15, %s27
    %p78 = scmp.eq.s32.totalorder %s77, 0
    %s80 = sadd.s32 %s79, 1
    %s81 = scalar_select %p78, %s79, %s80
    %p84 = pneg %p78
    %p85 = scmp.eq.s32.totalorder %s8, 1
    %p86 = por %p84, %p85
    %p87 = scmp.ne.s32.totalorder %s79, %s82
    %p88 = scmp.eq.s32.totalorder %s8, 0
    %p89 = por %p87, %p88
    %p90 = scmp.ne.s32.totalorder %s79, %s82
    %p91 = scmp.eq.s32.totalorder %s13, 1
    %p92 = por %p90, %p91
    %p93 = scmp.ne.s32.totalorder %s82, %s83
    %p94 = scmp.eq.s32.totalorder %s13, 0
    %p95 = por %p93, %p94
    %p96 = scmp.ne.s32.totalorder %s82, %s83
    %p97 = scmp.eq.s32.totalorder %s14, 1
    %p98 = por %p96, %p97
    %p100 = scmp.ne.s32.totalorder %s83, %s99
    %p101 = scmp.eq.s32.totalorder %s14, 0
    %p102 = por %p100, %p101
    %p103 = scmp.le.s32.totalorder 1, %s8
    %p104 = scmp.lt.s32.totalorder %s8, 3
    %p105 = pnand %p103, %p104
    %p106 = pneg %p105
    // Predicated region
    $region9: #{encoder_cnn_forward.2} parent=5 // pred_check
      _
    $region10: #{encoder_cnn_forward.2} parent=5 // pred_check_branch
      %108 = sbr.rel (%p105) target = $region12
    $region11: #{encoder_cnn_forward.2} parent=5 // pred_region
      %s109 = ssub.s32 %s8, 1
      // Predicated region
      $region13: #{encoder_cnn_forward.2} parent=11 // pred_check
        %p110 = pneg %p69
      $region14: #{encoder_cnn_forward.2} parent=11 // pred_check_branch
        %112 = sbr.rel (%p110) target = $region16
      $region15: #{encoder_cnn_forward.2} parent=11 // pred_region
        _
      $region16: #{encoder_cnn_forward.2} parent=11 // pred_fallthru
        _
    $region12: #{encoder_cnn_forward.2} parent=5 // pred_fallthru
      _
    %p113 = scmp.lt.s32.totalorder %s8, 2
    // Predicated region
    $region17: #{encoder_cnn_forward.2} parent=5 // pred_check
      %p114 = pneg %p113
    $region18: #{encoder_cnn_forward.2} parent=5 // pred_check_branch
      %116 = sbr.rel (%p114) target = $region20
    $region19: #{encoder_cnn_forward.2} parent=5 // pred_region
      // Predicated region
      $region21: #{encoder_cnn_forward.2} parent=19 // pred_check
        %p117 = pneg %p42
      $region22: #{encoder_cnn_forward.2} parent=19 // pred_check_branch
        %119 = sbr.rel (%p117) target = $region24
      $region23: #{encoder_cnn_forward.2} parent=19 // pred_region
        %s120 = smul.u32 8, %s15
        %s121 = smul.u32 32, %s16
        %p122 = scmp.lt.s32.totalorder %s120, 15
        %s123 = scalar_select %p122, %s120, 15
        %p124 = scmp.lt.s32.totalorder %s121, 31
        %s125 = scalar_select %p124, %s121, 31
        %s126 = smul.addr %s123, 32
        %s127 = sadd.s32 %s125, %s126
        %s128 = smul.addr %s127, 4
        %s129 = scalar_lea.vmem %s0, %s128
        %s130 = smul.u32 8, %s15
        %s131 = smul.u32 32, %s16
      $region24: #{encoder_cnn_forward.2} parent=19 // pred_fallthru
        _
    $region20: #{encoder_cnn_forward.2} parent=5 // pred_fallthru
      _
    %p132 = scmp.le.s32.totalorder 1, %s8
    %p133 = scmp.lt.s32.totalorder %s8, 3
    %p134 = pnand %p132, %p133
    %p135 = pneg %p134
    // Predicated region
    $region25: #{encoder_cnn_forward.2} parent=5 // pred_check
      _
    $region26: #{encoder_cnn_forward.2} parent=5 // pred_check_branch
      %137 = sbr.rel (%p134) target = $region28
    $region27: #{encoder_cnn_forward.2} parent=5 // pred_region
      %s138 = ssub.s32 %s8, 1
      %s139 = smul.u32 8, %s17
      %s140 = smul.u32 32, %s18
      %p141 = scmp.lt.s32.totalorder %s139, 15
      %s142 = scalar_select %p141, %s139, 15
      %p143 = scmp.lt.s32.totalorder %s140, 31
      %s144 = scalar_select %p143, %s140, 31
      %s145 = smul.addr %s142, 32
      %s146 = sadd.s32 %s144, %s145
      %s147 = smul.addr %s146, 4
      %s148 = scalar_lea.vmem %s0, %s147
      %p149 = pneg %p48
      %p150 = pneg %p45
      %p151 = pneg %p69
      %p152 = pneg %p66
      %p153 = pneg %p95
      %p154 = pneg %p92
      %p155 = scmp.lt.s32.totalorder %s17, 1
      %s156 = scalar_select %p155, %s17, 1
      %s157 = smul.addr %s156, 8
      %s158 = scalar_lea.vmem %s2, %s157
      %s159 = smul.u32 8, %s17
      %s160 = smul.u32 32, %s18
      %p161 = scmp.lt.s32.totalorder %s159, 15
      %s162 = scalar_select %p161, %s159, 15
      %p163 = scmp.lt.s32.totalorder %s160, 31
      %s164 = scalar_select %p163, %s160, 31
      %s165 = smul.addr %s162, 32
      %s166 = sadd.s32 %s164, %s165
      %s167 = smul.addr %s166, 4
      %s168 = scalar_lea.vmem %s0, %s167
      %s169 = smul.u32 8, %s17
      %s170 = smul.u32 32, %s18
      %p171 = scmp.lt.s32.totalorder %s17, 1
      %s172 = scalar_select %p171, %s17, 1
      %s173 = smul.addr %s172, 8
      %s174 = scalar_lea.vmem %s2, %s173
      %p175 = scmp.eq.s32.totalorder %s18, 0
      // Predicated region
      $region29: #{encoder_cnn_forward.2} parent=27 // pred_check
        %p176 = pneg %p175
      $region30: #{encoder_cnn_forward.2} parent=27 // pred_check_branch
        %178 = sbr.rel (%p176) target = $region32
      $region31: #{encoder_cnn_forward.2} parent=27 // pred_region
        %179 = vst [vmem:[#allocation2] sm:$0xff] 0.0
        %180 = vst [vmem:[#allocation2 + $0x8] sm:$0xff] 0.0
        %181 = vst [vmem:[#allocation2 + $0x10] sm:$0xff] 0.0
        %182 = vst [vmem:[#allocation2 + $0x18] sm:$0xff] 0.0
        %183 = vst [vmem:[#allocation2 + $0x20] sm:$0xff] 0.0
        %184 = vst [vmem:[#allocation2 + $0x28] sm:$0xff] 0.0
        %185 = vst [vmem:[#allocation2 + $0x30] sm:$0xff] 0.0
        %186 = vst [vmem:[#allocation2 + $0x38] sm:$0xff] 0.0
      $region32: #{encoder_cnn_forward.2} parent=27 // pred_fallthru
        _
      %v187 = vld [vmem:[%s168] sm:$0xf]
      %v188 = vld [vmem:[%s168 + $0x4] sm:$0xf]
      %v189 = vld [vmem:[%s168 + $0x8] sm:$0xf]
      %v190 = vld [vmem:[%s168 + $0xc] sm:$0xf]
      %v191 = vld [vmem:[%s168 + $0x10] sm:$0xf]
      %v192 = vld [vmem:[%s168 + $0x14] sm:$0xf]
      %v193 = vld [vmem:[%s168 + $0x18] sm:$0xf]
      %v194 = vld [vmem:[%s168 + $0x1c] sm:$0xf]
      %v195 = vld [vmem:[%s168 + $0x20] sm:$0xf]
      %v196 = vld [vmem:[%s168 + $0x24] sm:$0xf]
      %v197 = vld [vmem:[%s168 + $0x28] sm:$0xf]
      %v198 = vld [vmem:[%s168 + $0x2c] sm:$0xf]
      %v199 = vld [vmem:[%s168 + $0x30] sm:$0xf]
      %v200 = vld [vmem:[%s168 + $0x34] sm:$0xf]
      %v201 = vld [vmem:[%s168 + $0x38] sm:$0xf]
      %v202 = vld [vmem:[%s168 + $0x3c] sm:$0xf]
      %v203 = vld [vmem:[%s168 + $0x40] sm:$0xf]
      %v204 = vld [vmem:[%s168 + $0x44] sm:$0xf]
      %v205 = vld [vmem:[%s168 + $0x48] sm:$0xf]
      %v206 = vld [vmem:[%s168 + $0x4c] sm:$0xf]
      %v207 = vld [vmem:[%s168 + $0x50] sm:$0xf]
      %v208 = vld [vmem:[%s168 + $0x54] sm:$0xf]
      %v209 = vld [vmem:[%s168 + $0x58] sm:$0xf]
      %v210 = vld [vmem:[%s168 + $0x5c] sm:$0xf]
      %v211 = vld [vmem:[%s168 + $0x60] sm:$0xf]
      %v212 = vld [vmem:[%s168 + $0x64] sm:$0xf]
      %v213 = vld [vmem:[%s168 + $0x68] sm:$0xf]
      %v214 = vld [vmem:[%s168 + $0x6c] sm:$0xf]
      %v215 = vld [vmem:[%s168 + $0x70] sm:$0xf]
      %v216 = vld [vmem:[%s168 + $0x74] sm:$0xf]
      %v217 = vld [vmem:[%s168 + $0x78] sm:$0xf]
      %v218 = vld [vmem:[%s168 + $0x7c] sm:$0xf]
      %v219 = vld [vmem:[%s168 + $0x80] sm:$0xf]
      %v220 = vld [vmem:[%s168 + $0x84] sm:$0xf]
      %v221 = vld [vmem:[%s168 + $0x88] sm:$0xf]
      %v222 = vld [vmem:[%s168 + $0x8c] sm:$0xf]
      %v223 = vld [vmem:[%s168 + $0x90] sm:$0xf]
      %v224 = vld [vmem:[%s168 + $0x94] sm:$0xf]
      %v225 = vld [vmem:[%s168 + $0x98] sm:$0xf]
      %v226 = vld [vmem:[%s168 + $0x9c] sm:$0xf]
      %v227 = vld [vmem:[%s168 + $0xa0] sm:$0xf]
      %v228 = vld [vmem:[%s168 + $0xa4] sm:$0xf]
      %v229 = vld [vmem:[%s168 + $0xa8] sm:$0xf]
      %v230 = vld [vmem:[%s168 + $0xac] sm:$0xf]
      %v231 = vld [vmem:[%s168 + $0xb0] sm:$0xf]
      %v232 = vld [vmem:[%s168 + $0xb4] sm:$0xf]
      %v233 = vld [vmem:[%s168 + $0xb8] sm:$0xf]
      %v234 = vld [vmem:[%s168 + $0xbc] sm:$0xf]
      %v235 = vld [vmem:[%s168 + $0xc0] sm:$0xf]
      %v236 = vld [vmem:[%s168 + $0xc4] sm:$0xf]
      %v237 = vld [vmem:[%s168 + $0xc8] sm:$0xf]
      %v238 = vld [vmem:[%s168 + $0xcc] sm:$0xf]
      %v239 = vld [vmem:[%s168 + $0xd0] sm:$0xf]
      %v240 = vld [vmem:[%s168 + $0xd4] sm:$0xf]
      %v241 = vld [vmem:[%s168 + $0xd8] sm:$0xf]
      %v242 = vld [vmem:[%s168 + $0xdc] sm:$0xf]
      %v243 = vld [vmem:[%s168 + $0xe0] sm:$0xf]
      %v244 = vld [vmem:[%s168 + $0xe4] sm:$0xf]
      %v245 = vld [vmem:[%s168 + $0xe8] sm:$0xf]
      %v246 = vld [vmem:[%s168 + $0xec] sm:$0xf]
      %v247 = vld [vmem:[%s168 + $0xf0] sm:$0xf]
      %v248 = vld [vmem:[%s168 + $0xf4] sm:$0xf]
      %v249 = vld [vmem:[%s168 + $0xf8] sm:$0xf]
      %v250 = vld [vmem:[%s168 + $0xfc] sm:$0xf]
      %v251 = vld [vmem:[%s168 + $0x100] sm:$0xf]
      %v252 = vld [vmem:[%s168 + $0x104] sm:$0xf]
      %v253 = vld [vmem:[%s168 + $0x108] sm:$0xf]
      %v254 = vld [vmem:[%s168 + $0x10c] sm:$0xf]
      %v255 = vld [vmem:[%s168 + $0x110] sm:$0xf]
      %v256 = vld [vmem:[%s168 + $0x114] sm:$0xf]
      %v257 = vld [vmem:[%s168 + $0x118] sm:$0xf]
      %v258 = vld [vmem:[%s168 + $0x11c] sm:$0xf]
      %v259 = vld [vmem:[%s168 + $0x120] sm:$0xf]
      %v260 = vld [vmem:[%s168 + $0x124] sm:$0xf]
      %v261 = vld [vmem:[%s168 + $0x128] sm:$0xf]
      %v262 = vld [vmem:[%s168 + $0x12c] sm:$0xf]
      %v263 = vld [vmem:[%s168 + $0x130] sm:$0xf]
      %v264 = vld [vmem:[%s168 + $0x134] sm:$0xf]
      %v265 = vld [vmem:[%s168 + $0x138] sm:$0xf]
      %v266 = vld [vmem:[%s168 + $0x13c] sm:$0xf]
      %v267 = vld [vmem:[%s168 + $0x140] sm:$0xf]
      %v268 = vld [vmem:[%s168 + $0x144] sm:$0xf]
      %v269 = vld [vmem:[%s168 + $0x148] sm:$0xf]
      %v270 = vld [vmem:[%s168 + $0x14c] sm:$0xf]
      %v271 = vld [vmem:[%s168 + $0x150] sm:$0xf]
      %v272 = vld [vmem:[%s168 + $0x154] sm:$0xf]
      %v273 = vld [vmem:[%s168 + $0x158] sm:$0xf]
      %v274 = vld [vmem:[%s168 + $0x15c] sm:$0xf]
      %v275 = vld [vmem:[%s168 + $0x160] sm:$0xf]
      %v276 = vld [vmem:[%s168 + $0x164] sm:$0xf]
      %v277 = vld [vmem:[%s168 + $0x168] sm:$0xf]
      %v278 = vld [vmem:[%s168 + $0x16c] sm:$0xf]
      %v279 = vld [vmem:[%s168 + $0x170] sm:$0xf]
      %v280 = vld [vmem:[%s168 + $0x174] sm:$0xf]
      %v281 = vld [vmem:[%s168 + $0x178] sm:$0xf]
      %v282 = vld [vmem:[%s168 + $0x17c] sm:$0xf]
      %v283 = vld [vmem:[%s168 + $0x180] sm:$0xf]
      %v284 = vld [vmem:[%s168 + $0x184] sm:$0xf]
      %v285 = vld [vmem:[%s168 + $0x188] sm:$0xf]
      %v286 = vld [vmem:[%s168 + $0x18c] sm:$0xf]
      %v287 = vld [vmem:[%s168 + $0x190] sm:$0xf]
      %v288 = vld [vmem:[%s168 + $0x194] sm:$0xf]
      %v289 = vld [vmem:[%s168 + $0x198] sm:$0xf]
      %v290 = vld [vmem:[%s168 + $0x19c] sm:$0xf]
      %v291 = vld [vmem:[%s168 + $0x1a0] sm:$0xf]
      %v292 = vld [vmem:[%s168 + $0x1a4] sm:$0xf]
      %v293 = vld [vmem:[%s168 + $0x1a8] sm:$0xf]
      %v294 = vld [vmem:[%s168 + $0x1ac] sm:$0xf]
      %v295 = vld [vmem:[%s168 + $0x1b0] sm:$0xf]
      %v296 = vld [vmem:[%s168 + $0x1b4] sm:$0xf]
      %v297 = vld [vmem:[%s168 + $0x1b8] sm:$0xf]
      %v298 = vld [vmem:[%s168 + $0x1bc] sm:$0xf]
      %v299 = vld [vmem:[%s168 + $0x1c0] sm:$0xf]
      %v300 = vld [vmem:[%s168 + $0x1c4] sm:$0xf]
      %v301 = vld [vmem:[%s168 + $0x1c8] sm:$0xf]
      %v302 = vld [vmem:[%s168 + $0x1cc] sm:$0xf]
      %v303 = vld [vmem:[%s168 + $0x1d0] sm:$0xf]
      %v304 = vld [vmem:[%s168 + $0x1d4] sm:$0xf]
      %v305 = vld [vmem:[%s168 + $0x1d8] sm:$0xf]
      %v306 = vld [vmem:[%s168 + $0x1dc] sm:$0xf]
      %v307 = vld [vmem:[%s168 + $0x1e0] sm:$0xf]
      %v308 = vld [vmem:[%s168 + $0x1e4] sm:$0xf]
      %v309 = vld [vmem:[%s168 + $0x1e8] sm:$0xf]
      %v310 = vld [vmem:[%s168 + $0x1ec] sm:$0xf]
      %v311 = vld [vmem:[%s168 + $0x1f0] sm:$0xf]
      %v312 = vld [vmem:[%s168 + $0x1f4] sm:$0xf]
      %v313 = vld [vmem:[%s168 + $0x1f8] sm:$0xf]
      %v314 = vld [vmem:[%s168 + $0x1fc] sm:$0xf]
      %v315 = vld [vmem:[%s168 + $0x200] sm:$0xf]
      %v316 = vld [vmem:[%s168 + $0x204] sm:$0xf]
      %v317 = vld [vmem:[%s168 + $0x208] sm:$0xf]
      %v318 = vld [vmem:[%s168 + $0x20c] sm:$0xf]
      %v319 = vld [vmem:[%s168 + $0x210] sm:$0xf]
      %v320 = vld [vmem:[%s168 + $0x214] sm:$0xf]
      %v321 = vld [vmem:[%s168 + $0x218] sm:$0xf]
      %v322 = vld [vmem:[%s168 + $0x21c] sm:$0xf]
      %v323 = vld [vmem:[%s168 + $0x220] sm:$0xf]
      %v324 = vld [vmem:[%s168 + $0x224] sm:$0xf]
      %v325 = vld [vmem:[%s168 + $0x228] sm:$0xf]
      %v326 = vld [vmem:[%s168 + $0x22c] sm:$0xf]
      %v327 = vld [vmem:[%s168 + $0x230] sm:$0xf]
      %v328 = vld [vmem:[%s168 + $0x234] sm:$0xf]
      %v329 = vld [vmem:[%s168 + $0x238] sm:$0xf]
      %v330 = vld [vmem:[%s168 + $0x23c] sm:$0xf]
      %v331 = vld [vmem:[%s168 + $0x240] sm:$0xf]
      %v332 = vld [vmem:[%s168 + $0x244] sm:$0xf]
      %v333 = vld [vmem:[%s168 + $0x248] sm:$0xf]
      %v334 = vld [vmem:[%s168 + $0x24c] sm:$0xf]
      %v335 = vld [vmem:[%s168 + $0x250] sm:$0xf]
      %v336 = vld [vmem:[%s168 + $0x254] sm:$0xf]
      %v337 = vld [vmem:[%s168 + $0x258] sm:$0xf]
      %v338 = vld [vmem:[%s168 + $0x25c] sm:$0xf]
      %v339 = vld [vmem:[%s168 + $0x260] sm:$0xf]
      %v340 = vld [vmem:[%s168 + $0x264] sm:$0xf]
      %v341 = vld [vmem:[%s168 + $0x268] sm:$0xf]
      %v342 = vld [vmem:[%s168 + $0x26c] sm:$0xf]
      %v343 = vld [vmem:[%s168 + $0x270] sm:$0xf]
      %v344 = vld [vmem:[%s168 + $0x274] sm:$0xf]
      %v345 = vld [vmem:[%s168 + $0x278] sm:$0xf]
      %v346 = vld [vmem:[%s168 + $0x27c] sm:$0xf]
      %v347 = vld [vmem:[%s168 + $0x280] sm:$0xf]
      %v348 = vld [vmem:[%s168 + $0x284] sm:$0xf]
      %v349 = vld [vmem:[%s168 + $0x288] sm:$0xf]
      %v350 = vld [vmem:[%s168 + $0x28c] sm:$0xf]
      %v351 = vld [vmem:[%s168 + $0x290] sm:$0xf]
      %v352 = vld [vmem:[%s168 + $0x294] sm:$0xf]
      %v353 = vld [vmem:[%s168 + $0x298] sm:$0xf]
      %v354 = vld [vmem:[%s168 + $0x29c] sm:$0xf]
      %v355 = vld [vmem:[%s168 + $0x2a0] sm:$0xf]
      %v356 = vld [vmem:[%s168 + $0x2a4] sm:$0xf]
      %v357 = vld [vmem:[%s168 + $0x2a8] sm:$0xf]
      %v358 = vld [vmem:[%s168 + $0x2ac] sm:$0xf]
      %v359 = vld [vmem:[%s168 + $0x2b0] sm:$0xf]
      %v360 = vld [vmem:[%s168 + $0x2b4] sm:$0xf]
      %v361 = vld [vmem:[%s168 + $0x2b8] sm:$0xf]
      %v362 = vld [vmem:[%s168 + $0x2bc] sm:$0xf]
      %v363 = vld [vmem:[%s168 + $0x2c0] sm:$0xf]
      %v364 = vld [vmem:[%s168 + $0x2c4] sm:$0xf]
      %v365 = vld [vmem:[%s168 + $0x2c8] sm:$0xf]
      %v366 = vld [vmem:[%s168 + $0x2cc] sm:$0xf]
      %v367 = vld [vmem:[%s168 + $0x2d0] sm:$0xf]
      %v368 = vld [vmem:[%s168 + $0x2d4] sm:$0xf]
      %v369 = vld [vmem:[%s168 + $0x2d8] sm:$0xf]
      %v370 = vld [vmem:[%s168 + $0x2dc] sm:$0xf]
      %v371 = vld [vmem:[%s168 + $0x2e0] sm:$0xf]
      %v372 = vld [vmem:[%s168 + $0x2e4] sm:$0xf]
      %v373 = vld [vmem:[%s168 + $0x2e8] sm:$0xf]
      %v374 = vld [vmem:[%s168 + $0x2ec] sm:$0xf]
      %v375 = vld [vmem:[%s168 + $0x2f0] sm:$0xf]
      %v376 = vld [vmem:[%s168 + $0x2f4] sm:$0xf]
      %v377 = vld [vmem:[%s168 + $0x2f8] sm:$0xf]
      %v378 = vld [vmem:[%s168 + $0x2fc] sm:$0xf]
      %v379 = vld [vmem:[%s168 + $0x300] sm:$0xf]
      %v380 = vld [vmem:[%s168 + $0x304] sm:$0xf]
      %v381 = vld [vmem:[%s168 + $0x308] sm:$0xf]
      %v382 = vld [vmem:[%s168 + $0x30c] sm:$0xf]
      %v383 = vld [vmem:[%s168 + $0x310] sm:$0xf]
      %v384 = vld [vmem:[%s168 + $0x314] sm:$0xf]
      %v385 = vld [vmem:[%s168 + $0x318] sm:$0xf]
      %v386 = vld [vmem:[%s168 + $0x31c] sm:$0xf]
      %v387 = vld [vmem:[%s168 + $0x320] sm:$0xf]
      %v388 = vld [vmem:[%s168 + $0x324] sm:$0xf]
      %v389 = vld [vmem:[%s168 + $0x328] sm:$0xf]
      %v390 = vld [vmem:[%s168 + $0x32c] sm:$0xf]
      %v391 = vld [vmem:[%s168 + $0x330] sm:$0xf]
      %v392 = vld [vmem:[%s168 + $0x334] sm:$0xf]
      %v393 = vld [vmem:[%s168 + $0x338] sm:$0xf]
      %v394 = vld [vmem:[%s168 + $0x33c] sm:$0xf]
      %v395 = vld [vmem:[%s168 + $0x340] sm:$0xf]
      %v396 = vld [vmem:[%s168 + $0x344] sm:$0xf]
      %v397 = vld [vmem:[%s168 + $0x348] sm:$0xf]
      %v398 = vld [vmem:[%s168 + $0x34c] sm:$0xf]
      %v399 = vld [vmem:[%s168 + $0x350] sm:$0xf]
      %v400 = vld [vmem:[%s168 + $0x354] sm:$0xf]
      %v401 = vld [vmem:[%s168 + $0x358] sm:$0xf]
      %v402 = vld [vmem:[%s168 + $0x35c] sm:$0xf]
      %v403 = vld [vmem:[%s168 + $0x360] sm:$0xf]
      %v404 = vld [vmem:[%s168 + $0x364] sm:$0xf]
      %v405 = vld [vmem:[%s168 + $0x368] sm:$0xf]
      %v406 = vld [vmem:[%s168 + $0x36c] sm:$0xf]
      %v407 = vld [vmem:[%s168 + $0x370] sm:$0xf]
      %v408 = vld [vmem:[%s168 + $0x374] sm:$0xf]
      %v409 = vld [vmem:[%s168 + $0x378] sm:$0xf]
      %v410 = vld [vmem:[%s168 + $0x37c] sm:$0xf]
      %v411 = vld [vmem:[%s168 + $0x380] sm:$0xf]
      %v412 = vld [vmem:[%s168 + $0x384] sm:$0xf]
      %v413 = vld [vmem:[%s168 + $0x388] sm:$0xf]
      %v414 = vld [vmem:[%s168 + $0x38c] sm:$0xf]
      %v415 = vld [vmem:[%s168 + $0x390] sm:$0xf]
      %v416 = vld [vmem:[%s168 + $0x394] sm:$0xf]
      %v417 = vld [vmem:[%s168 + $0x398] sm:$0xf]
      %v418 = vld [vmem:[%s168 + $0x39c] sm:$0xf]
      %v419 = vld [vmem:[%s168 + $0x3a0] sm:$0xf]
      %v420 = vld [vmem:[%s168 + $0x3a4] sm:$0xf]
      %v421 = vld [vmem:[%s168 + $0x3a8] sm:$0xf]
      %v422 = vld [vmem:[%s168 + $0x3ac] sm:$0xf]
      %v423 = vld [vmem:[%s168 + $0x3b0] sm:$0xf]
      %v424 = vld [vmem:[%s168 + $0x3b4] sm:$0xf]
      %v425 = vld [vmem:[%s168 + $0x3b8] sm:$0xf]
      %v426 = vld [vmem:[%s168 + $0x3bc] sm:$0xf]
      %v427 = vld [vmem:[%s168 + $0x3c0] sm:$0xf]
      %v428 = vld [vmem:[%s168 + $0x3c4] sm:$0xf]
      %v429 = vld [vmem:[%s168 + $0x3c8] sm:$0xf]
      %v430 = vld [vmem:[%s168 + $0x3cc] sm:$0xf]
      %v431 = vld [vmem:[%s168 + $0x3d0] sm:$0xf]
      %v432 = vld [vmem:[%s168 + $0x3d4] sm:$0xf]
      %v433 = vld [vmem:[%s168 + $0x3d8] sm:$0xf]
      %v434 = vld [vmem:[%s168 + $0x3dc] sm:$0xf]
      %v435 = vld [vmem:[%s168 + $0x3e0] sm:$0xf]
      %v436 = vld [vmem:[%s168 + $0x3e4] sm:$0xf]
      %v437 = vld [vmem:[%s168 + $0x3e8] sm:$0xf]
      %v438 = vld [vmem:[%s168 + $0x3ec] sm:$0xf]
      %v439 = vld [vmem:[%s168 + $0x3f0] sm:$0xf]
      %v440 = vld [vmem:[%s168 + $0x3f4] sm:$0xf]
      %v441 = vld [vmem:[%s168 + $0x3f8] sm:$0xf]
      %v442 = vld [vmem:[%s168 + $0x3fc] sm:$0xf]
      %v443 = vunpack.c.l.bf16 %v187
      %v444 = vunpack.c.l.bf16 %v188
      %v445 = vunpack.c.l.bf16 %v189
      %v446 = vunpack.c.l.bf16 %v190
      %v447 = vunpack.c.l.bf16 %v191
      %v448 = vunpack.c.l.bf16 %v192
      %v449 = vunpack.c.l.bf16 %v193
      %v450 = vunpack.c.l.bf16 %v194
      %v451 = vunpack.c.l.bf16 %v195
      %v452 = vunpack.c.l.bf16 %v196
      %v453 = vunpack.c.l.bf16 %v197
      %v454 = vunpack.c.l.bf16 %v198
      %v455 = vunpack.c.l.bf16 %v199
      %v456 = vunpack.c.l.bf16 %v200
      %v457 = vunpack.c.l.bf16 %v201
      %v458 = vunpack.c.l.bf16 %v202
      %v459 = vunpack.c.l.bf16 %v203
      %v460 = vunpack.c.l.bf16 %v204
      %v461 = vunpack.c.l.bf16 %v205
      %v462 = vunpack.c.l.bf16 %v206
      %v463 = vunpack.c.l.bf16 %v207
      %v464 = vunpack.c.l.bf16 %v208
      %v465 = vunpack.c.l.bf16 %v209
      %v466 = vunpack.c.l.bf16 %v210
      %v467 = vunpack.c.l.bf16 %v211
      %v468 = vunpack.c.l.bf16 %v212
      %v469 = vunpack.c.l.bf16 %v213
      %v470 = vunpack.c.l.bf16 %v214
      %v471 = vunpack.c.l.bf16 %v215
      %v472 = vunpack.c.l.bf16 %v216
      %v473 = vunpack.c.l.bf16 %v217
      %v474 = vunpack.c.l.bf16 %v218
      %v475 = vunpack.c.l.bf16 %v219
      %v476 = vunpack.c.l.bf16 %v220
      %v477 = vunpack.c.l.bf16 %v221
      %v478 = vunpack.c.l.bf16 %v222
      %v479 = vunpack.c.l.bf16 %v223
      %v480 = vunpack.c.l.bf16 %v224
      %v481 = vunpack.c.l.bf16 %v225
      %v482 = vunpack.c.l.bf16 %v226
      %v483 = vunpack.c.l.bf16 %v227
      %v484 = vunpack.c.l.bf16 %v228
      %v485 = vunpack.c.l.bf16 %v229
      %v486 = vunpack.c.l.bf16 %v230
      %v487 = vunpack.c.l.bf16 %v231
      %v488 = vunpack.c.l.bf16 %v232
      %v489 = vunpack.c.l.bf16 %v233
      %v490 = vunpack.c.l.bf16 %v234
      %v491 = vunpack.c.l.bf16 %v235
      %v492 = vunpack.c.l.bf16 %v236
      %v493 = vunpack.c.l.bf16 %v237
      %v494 = vunpack.c.l.bf16 %v238
      %v495 = vunpack.c.l.bf16 %v239
      %v496 = vunpack.c.l.bf16 %v240
      %v497 = vunpack.c.l.bf16 %v241
      %v498 = vunpack.c.l.bf16 %v242
      %v499 = vunpack.c.l.bf16 %v243
      %v500 = vunpack.c.l.bf16 %v244
      %v501 = vunpack.c.l.bf16 %v245
      %v502 = vunpack.c.l.bf16 %v246
      %v503 = vunpack.c.l.bf16 %v247
      %v504 = vunpack.c.l.bf16 %v248
      %v505 = vunpack.c.l.bf16 %v249
      %v506 = vunpack.c.l.bf16 %v250
      %v507 = vunpack.c.l.bf16 %v251
      %v508 = vunpack.c.l.bf16 %v252
      %v509 = vunpack.c.l.bf16 %v253
      %v510 = vunpack.c.l.bf16 %v254
      %v511 = vunpack.c.l.bf16 %v255
      %v512 = vunpack.c.l.bf16 %v256
      %v513 = vunpack.c.l.bf16 %v257
      %v514 = vunpack.c.l.bf16 %v258
      %v515 = vunpack.c.l.bf16 %v259
      %v516 = vunpack.c.l.bf16 %v260
      %v517 = vunpack.c.l.bf16 %v261
      %v518 = vunpack.c.l.bf16 %v262
      %v519 = vunpack.c.l.bf16 %v263
      %v520 = vunpack.c.l.bf16 %v264
      %v521 = vunpack.c.l.bf16 %v265
      %v522 = vunpack.c.l.bf16 %v266
      %v523 = vunpack.c.l.bf16 %v267
      %v524 = vunpack.c.l.bf16 %v268
      %v525 = vunpack.c.l.bf16 %v269
      %v526 = vunpack.c.l.bf16 %v270
      %v527 = vunpack.c.l.bf16 %v271
      %v528 = vunpack.c.l.bf16 %v272
      %v529 = vunpack.c.l.bf16 %v273
      %v530 = vunpack.c.l.bf16 %v274
      %v531 = vunpack.c.l.bf16 %v275
      %v532 = vunpack.c.l.bf16 %v276
      %v533 = vunpack.c.l.bf16 %v277
      %v534 = vunpack.c.l.bf16 %v278
      %v535 = vunpack.c.l.bf16 %v279
      %v536 = vunpack.c.l.bf16 %v280
      %v537 = vunpack.c.l.bf16 %v281
      %v538 = vunpack.c.l.bf16 %v282
      %v539 = vunpack.c.l.bf16 %v283
      %v540 = vunpack.c.l.bf16 %v284
      %v541 = vunpack.c.l.bf16 %v285
      %v542 = vunpack.c.l.bf16 %v286
      %v543 = vunpack.c.l.bf16 %v287
      %v544 = vunpack.c.l.bf16 %v288
      %v545 = vunpack.c.l.bf16 %v289
      %v546 = vunpack.c.l.bf16 %v290
      %v547 = vunpack.c.l.bf16 %v291
      %v548 = vunpack.c.l.bf16 %v292
      %v549 = vunpack.c.l.bf16 %v293
      %v550 = vunpack.c.l.bf16 %v294
      %v551 = vunpack.c.l.bf16 %v295
      %v552 = vunpack.c.l.bf16 %v296
      %v553 = vunpack.c.l.bf16 %v297
      %v554 = vunpack.c.l.bf16 %v298
      %v555 = vunpack.c.l.bf16 %v299
      %v556 = vunpack.c.l.bf16 %v300
      %v557 = vunpack.c.l.bf16 %v301
      %v558 = vunpack.c.l.bf16 %v302
      %v559 = vunpack.c.l.bf16 %v303
      %v560 = vunpack.c.l.bf16 %v304
      %v561 = vunpack.c.l.bf16 %v305
      %v562 = vunpack.c.l.bf16 %v306
      %v563 = vunpack.c.l.bf16 %v307
      %v564 = vunpack.c.l.bf16 %v308
      %v565 = vunpack.c.l.bf16 %v309
      %v566 = vunpack.c.l.bf16 %v310
      %v567 = vunpack.c.l.bf16 %v311
      %v568 = vunpack.c.l.bf16 %v312
      %v569 = vunpack.c.l.bf16 %v313
      %v570 = vunpack.c.l.bf16 %v314
      %v571 = vunpack.c.l.bf16 %v315
      %v572 = vunpack.c.l.bf16 %v316
      %v573 = vunpack.c.l.bf16 %v317
      %v574 = vunpack.c.l.bf16 %v318
      %v575 = vunpack.c.l.bf16 %v319
      %v576 = vunpack.c.l.bf16 %v320
      %v577 = vunpack.c.l.bf16 %v321
      %v578 = vunpack.c.l.bf16 %v322
      %v579 = vunpack.c.l.bf16 %v323
      %v580 = vunpack.c.l.bf16 %v324
      %v581 = vunpack.c.l.bf16 %v325
      %v582 = vunpack.c.l.bf16 %v326
      %v583 = vunpack.c.l.bf16 %v327
      %v584 = vunpack.c.l.bf16 %v328
      %v585 = vunpack.c.l.bf16 %v329
      %v586 = vunpack.c.l.bf16 %v330
      %v587 = vunpack.c.l.bf16 %v331
      %v588 = vunpack.c.l.bf16 %v332
      %v589 = vunpack.c.l.bf16 %v333
      %v590 = vunpack.c.l.bf16 %v334
      %v591 = vunpack.c.l.bf16 %v335
      %v592 = vunpack.c.l.bf16 %v336
      %v593 = vunpack.c.l.bf16 %v337
      %v594 = vunpack.c.l.bf16 %v338
      %v595 = vunpack.c.l.bf16 %v339
      %v596 = vunpack.c.l.bf16 %v340
      %v597 = vunpack.c.l.bf16 %v341
      %v598 = vunpack.c.l.bf16 %v342
      %v599 = vunpack.c.l.bf16 %v343
      %v600 = vunpack.c.l.bf16 %v344
      %v601 = vunpack.c.l.bf16 %v345
      %v602 = vunpack.c.l.bf16 %v346
      %v603 = vunpack.c.l.bf16 %v347
      %v604 = vunpack.c.l.bf16 %v348
      %v605 = vunpack.c.l.bf16 %v349
      %v606 = vunpack.c.l.bf16 %v350
      %v607 = vunpack.c.l.bf16 %v351
      %v608 = vunpack.c.l.bf16 %v352
      %v609 = vunpack.c.l.bf16 %v353
      %v610 = vunpack.c.l.bf16 %v354
      %v611 = vunpack.c.l.bf16 %v355
      %v612 = vunpack.c.l.bf16 %v356
      %v613 = vunpack.c.l.bf16 %v357
      %v614 = vunpack.c.l.bf16 %v358
      %v615 = vunpack.c.l.bf16 %v359
      %v616 = vunpack.c.l.bf16 %v360
      %v617 = vunpack.c.l.bf16 %v361
      %v618 = vunpack.c.l.bf16 %v362
      %v619 = vunpack.c.l.bf16 %v363
      %v620 = vunpack.c.l.bf16 %v364
      %v621 = vunpack.c.l.bf16 %v365
      %v622 = vunpack.c.l.bf16 %v366
      %v623 = vunpack.c.l.bf16 %v367
      %v624 = vunpack.c.l.bf16 %v368
      %v625 = vunpack.c.l.bf16 %v369
      %v626 = vunpack.c.l.bf16 %v370
      %v627 = vunpack.c.l.bf16 %v371
      %v628 = vunpack.c.l.bf16 %v372
      %v629 = vunpack.c.l.bf16 %v373
      %v630 = vunpack.c.l.bf16 %v374
      %v631 = vunpack.c.l.bf16 %v375
      %v632 = vunpack.c.l.bf16 %v376
      %v633 = vunpack.c.l.bf16 %v377
      %v634 = vunpack.c.l.bf16 %v378
      %v635 = vunpack.c.l.bf16 %v379
      %v636 = vunpack.c.l.bf16 %v380
      %v637 = vunpack.c.l.bf16 %v381
      %v638 = vunpack.c.l.bf16 %v382
      %v639 = vunpack.c.l.bf16 %v383
      %v640 = vunpack.c.l.bf16 %v384
      %v641 = vunpack.c.l.bf16 %v385
      %v642 = vunpack.c.l.bf16 %v386
      %v643 = vunpack.c.l.bf16 %v387
      %v644 = vunpack.c.l.bf16 %v388
      %v645 = vunpack.c.l.bf16 %v389
      %v646 = vunpack.c.l.bf16 %v390
      %v647 = vunpack.c.l.bf16 %v391
      %v648 = vunpack.c.l.bf16 %v392
      %v649 = vunpack.c.l.bf16 %v393
      %v650 = vunpack.c.l.bf16 %v394
      %v651 = vunpack.c.l.bf16 %v395
      %v652 = vunpack.c.l.bf16 %v396
      %v653 = vunpack.c.l.bf16 %v397
      %v654 = vunpack.c.l.bf16 %v398
      %v655 = vunpack.c.l.bf16 %v399
      %v656 = vunpack.c.l.bf16 %v400
      %v657 = vunpack.c.l.bf16 %v401
      %v658 = vunpack.c.l.bf16 %v402
      %v659 = vunpack.c.l.bf16 %v403
      %v660 = vunpack.c.l.bf16 %v404
      %v661 = vunpack.c.l.bf16 %v405
      %v662 = vunpack.c.l.bf16 %v406
      %v663 = vunpack.c.l.bf16 %v407
      %v664 = vunpack.c.l.bf16 %v408
      %v665 = vunpack.c.l.bf16 %v409
      %v666 = vunpack.c.l.bf16 %v410
      %v667 = vunpack.c.l.bf16 %v411
      %v668 = vunpack.c.l.bf16 %v412
      %v669 = vunpack.c.l.bf16 %v413
      %v670 = vunpack.c.l.bf16 %v414
      %v671 = vunpack.c.l.bf16 %v415
      %v672 = vunpack.c.l.bf16 %v416
      %v673 = vunpack.c.l.bf16 %v417
      %v674 = vunpack.c.l.bf16 %v418
      %v675 = vunpack.c.l.bf16 %v419
      %v676 = vunpack.c.l.bf16 %v420
      %v677 = vunpack.c.l.bf16 %v421
      %v678 = vunpack.c.l.bf16 %v422
      %v679 = vunpack.c.l.bf16 %v423
      %v680 = vunpack.c.l.bf16 %v424
      %v681 = vunpack.c.l.bf16 %v425
      %v682 = vunpack.c.l.bf16 %v426
      %v683 = vunpack.c.l.bf16 %v427
      %v684 = vunpack.c.l.bf16 %v428
      %v685 = vunpack.c.l.bf16 %v429
      %v686 = vunpack.c.l.bf16 %v430
      %v687 = vunpack.c.l.bf16 %v431
      %v688 = vunpack.c.l.bf16 %v432
      %v689 = vunpack.c.l.bf16 %v433
      %v690 = vunpack.c.l.bf16 %v434
      %v691 = vunpack.c.l.bf16 %v435
      %v692 = vunpack.c.l.bf16 %v436
      %v693 = vunpack.c.l.bf16 %v437
      %v694 = vunpack.c.l.bf16 %v438
      %v695 = vunpack.c.l.bf16 %v439
      %v696 = vunpack.c.l.bf16 %v440
      %v697 = vunpack.c.l.bf16 %v441
      %v698 = vunpack.c.l.bf16 %v442
      %v699 = vld [vmem:[%s1] sm:$0x3]
      %v700 = vunpack.c.l.bf16 %v699
      %702 = vset.pattern.permute.xlu0 0
      %703 = vperm.xlu0 %702, %v443
      %v704 = vpop.permute.xlu0 %703
      %707 = vset.pattern.permute.xlu0 0
      %708 = vperm.xlu0 %707, %v444
      %v709 = vpop.permute.xlu0 %708
      %712 = vset.pattern.permute.xlu0 0
      %713 = vperm.xlu0 %712, %v445
      %v714 = vpop.permute.xlu0 %713
      %717 = vset.pattern.permute.xlu0 0
      %718 = vperm.xlu0 %717, %v446
      %v719 = vpop.permute.xlu0 %718
      %722 = vset.pattern.permute.xlu0 0
      %723 = vperm.xlu0 %722, %v447
      %v724 = vpop.permute.xlu0 %723
      %727 = vset.pattern.permute.xlu0 0
      %728 = vperm.xlu0 %727, %v448
      %v729 = vpop.permute.xlu0 %728
      %732 = vset.pattern.permute.xlu0 0
      %733 = vperm.xlu0 %732, %v449
      %v734 = vpop.permute.xlu0 %733
      %737 = vset.pattern.permute.xlu0 0
      %738 = vperm.xlu0 %737, %v450
      %v739 = vpop.permute.xlu0 %738
      %742 = vset.pattern.permute.xlu0 0
      %743 = vperm.xlu0 %742, %v451
      %v744 = vpop.permute.xlu0 %743
      %747 = vset.pattern.permute.xlu0 0
      %748 = vperm.xlu0 %747, %v452
      %v749 = vpop.permute.xlu0 %748
      %752 = vset.pattern.permute.xlu0 0
      %753 = vperm.xlu0 %752, %v453
      %v754 = vpop.permute.xlu0 %753
      %757 = vset.pattern.permute.xlu0 0
      %758 = vperm.xlu0 %757, %v454
      %v759 = vpop.permute.xlu0 %758
      %762 = vset.pattern.permute.xlu0 0
      %763 = vperm.xlu0 %762, %v455
      %v764 = vpop.permute.xlu0 %763
      %767 = vset.pattern.permute.xlu0 0
      %768 = vperm.xlu0 %767, %v456
      %v769 = vpop.permute.xlu0 %768
      %772 = vset.pattern.permute.xlu0 0
      %773 = vperm.xlu0 %772, %v457
      %v774 = vpop.permute.xlu0 %773
      %777 = vset.pattern.permute.xlu0 0
      %778 = vperm.xlu0 %777, %v458
      %v779 = vpop.permute.xlu0 %778
      %782 = vset.pattern.permute.xlu0 0
      %783 = vperm.xlu0 %782, %v459
      %v784 = vpop.permute.xlu0 %783
      %787 = vset.pattern.permute.xlu0 0
      %788 = vperm.xlu0 %787, %v460
      %v789 = vpop.permute.xlu0 %788
      %792 = vset.pattern.permute.xlu0 0
      %793 = vperm.xlu0 %792, %v461
      %v794 = vpop.permute.xlu0 %793
      %797 = vset.pattern.permute.xlu0 0
      %798 = vperm.xlu0 %797, %v462
      %v799 = vpop.permute.xlu0 %798
      %802 = vset.pattern.permute.xlu0 0
      %803 = vperm.xlu0 %802, %v463
      %v804 = vpop.permute.xlu0 %803
      %807 = vset.pattern.permute.xlu0 0
      %808 = vperm.xlu0 %807, %v464
      %v809 = vpop.permute.xlu0 %808
      %812 = vset.pattern.permute.xlu0 0
      %813 = vperm.xlu0 %812, %v465
      %v814 = vpop.permute.xlu0 %813
      %817 = vset.pattern.permute.xlu0 0
      %818 = vperm.xlu0 %817, %v466
      %v819 = vpop.permute.xlu0 %818
      %822 = vset.pattern.permute.xlu0 0
      %823 = vperm.xlu0 %822, %v467
      %v824 = vpop.permute.xlu0 %823
      %827 = vset.pattern.permute.xlu0 0
      %828 = vperm.xlu0 %827, %v468
      %v829 = vpop.permute.xlu0 %828
      %832 = vset.pattern.permute.xlu0 0
      %833 = vperm.xlu0 %832, %v469
      %v834 = vpop.permute.xlu0 %833
      %837 = vset.pattern.permute.xlu0 0
      %838 = vperm.xlu0 %837, %v470
      %v839 = vpop.permute.xlu0 %838
      %842 = vset.pattern.permute.xlu0 0
      %843 = vperm.xlu0 %842, %v471
      %v844 = vpop.permute.xlu0 %843
      %847 = vset.pattern.permute.xlu0 0
      %848 = vperm.xlu0 %847, %v472
      %v849 = vpop.permute.xlu0 %848
      %852 = vset.pattern.permute.xlu0 0
      %853 = vperm.xlu0 %852, %v473
      %v854 = vpop.permute.xlu0 %853
      %857 = vset.pattern.permute.xlu0 0
      %858 = vperm.xlu0 %857, %v474
      %v859 = vpop.permute.xlu0 %858
      %862 = vset.pattern.permute.xlu0 0
      %863 = vperm.xlu0 %862, %v475
      %v864 = vpop.permute.xlu0 %863
      %867 = vset.pattern.permute.xlu0 0
      %868 = vperm.xlu0 %867, %v476
      %v869 = vpop.permute.xlu0 %868
      %872 = vset.pattern.permute.xlu0 0
      %873 = vperm.xlu0 %872, %v477
      %v874 = vpop.permute.xlu0 %873
      %877 = vset.pattern.permute.xlu0 0
      %878 = vperm.xlu0 %877, %v478
      %v879 = vpop.permute.xlu0 %878
      %882 = vset.pattern.permute.xlu0 0
      %883 = vperm.xlu0 %882, %v479
      %v884 = vpop.permute.xlu0 %883
      %887 = vset.pattern.permute.xlu0 0
      %888 = vperm.xlu0 %887, %v480
      %v889 = vpop.permute.xlu0 %888
      %892 = vset.pattern.permute.xlu0 0
      %893 = vperm.xlu0 %892, %v481
      %v894 = vpop.permute.xlu0 %893
      %897 = vset.pattern.permute.xlu0 0
      %898 = vperm.xlu0 %897, %v482
      %v899 = vpop.permute.xlu0 %898
      %902 = vset.pattern.permute.xlu0 0
      %903 = vperm.xlu0 %902, %v483
      %v904 = vpop.permute.xlu0 %903
      %907 = vset.pattern.permute.xlu0 0
      %908 = vperm.xlu0 %907, %v484
      %v909 = vpop.permute.xlu0 %908
      %912 = vset.pattern.permute.xlu0 0
      %913 = vperm.xlu0 %912, %v485
      %v914 = vpop.permute.xlu0 %913
      %917 = vset.pattern.permute.xlu0 0
      %918 = vperm.xlu0 %917, %v486
      %v919 = vpop.permute.xlu0 %918
      %922 = vset.pattern.permute.xlu0 0
      %923 = vperm.xlu0 %922, %v487
      %v924 = vpop.permute.xlu0 %923
      %927 = vset.pattern.permute.xlu0 0
      %928 = vperm.xlu0 %927, %v488
      %v929 = vpop.permute.xlu0 %928
      %932 = vset.pattern.permute.xlu0 0
      %933 = vperm.xlu0 %932, %v489
      %v934 = vpop.permute.xlu0 %933
      %937 = vset.pattern.permute.xlu0 0
      %938 = vperm.xlu0 %937, %v490
      %v939 = vpop.permute.xlu0 %938
      %942 = vset.pattern.permute.xlu0 0
      %943 = vperm.xlu0 %942, %v491
      %v944 = vpop.permute.xlu0 %943
      %947 = vset.pattern.permute.xlu0 0
      %948 = vperm.xlu0 %947, %v492
      %v949 = vpop.permute.xlu0 %948
      %952 = vset.pattern.permute.xlu0 0
      %953 = vperm.xlu0 %952, %v493
      %v954 = vpop.permute.xlu0 %953
      %957 = vset.pattern.permute.xlu0 0
      %958 = vperm.xlu0 %957, %v494
      %v959 = vpop.permute.xlu0 %958
      %962 = vset.pattern.permute.xlu0 0
      %963 = vperm.xlu0 %962, %v495
      %v964 = vpop.permute.xlu0 %963
      %967 = vset.pattern.permute.xlu0 0
      %968 = vperm.xlu0 %967, %v496
      %v969 = vpop.permute.xlu0 %968
      %972 = vset.pattern.permute.xlu0 0
      %973 = vperm.xlu0 %972, %v497
      %v974 = vpop.permute.xlu0 %973
      %977 = vset.pattern.permute.xlu0 0
      %978 = vperm.xlu0 %977, %v498
      %v979 = vpop.permute.xlu0 %978
      %982 = vset.pattern.permute.xlu0 0
      %983 = vperm.xlu0 %982, %v499
      %v984 = vpop.permute.xlu0 %983
      %987 = vset.pattern.permute.xlu0 0
      %988 = vperm.xlu0 %987, %v500
      %v989 = vpop.permute.xlu0 %988
      %992 = vset.pattern.permute.xlu0 0
      %993 = vperm.xlu0 %992, %v501
      %v994 = vpop.permute.xlu0 %993
      %997 = vset.pattern.permute.xlu0 0
      %998 = vperm.xlu0 %997, %v502
      %v999 = vpop.permute.xlu0 %998
      %1002 = vset.pattern.permute.xlu0 0
      %1003 = vperm.xlu0 %1002, %v503
      %v1004 = vpop.permute.xlu0 %1003
      %1007 = vset.pattern.permute.xlu0 0
      %1008 = vperm.xlu0 %1007, %v504
      %v1009 = vpop.permute.xlu0 %1008
      %1012 = vset.pattern.permute.xlu0 0
      %1013 = vperm.xlu0 %1012, %v505
      %v1014 = vpop.permute.xlu0 %1013
      %1017 = vset.pattern.permute.xlu0 0
      %1018 = vperm.xlu0 %1017, %v506
      %v1019 = vpop.permute.xlu0 %1018
      %1022 = vset.pattern.permute.xlu0 0
      %1023 = vperm.xlu0 %1022, %v507
      %v1024 = vpop.permute.xlu0 %1023
      %1027 = vset.pattern.permute.xlu0 0
      %1028 = vperm.xlu0 %1027, %v508
      %v1029 = vpop.permute.xlu0 %1028
      %1032 = vset.pattern.permute.xlu0 0
      %1033 = vperm.xlu0 %1032, %v509
      %v1034 = vpop.permute.xlu0 %1033
      %1037 = vset.pattern.permute.xlu0 0
      %1038 = vperm.xlu0 %1037, %v510
      %v1039 = vpop.permute.xlu0 %1038
      %1042 = vset.pattern.permute.xlu0 0
      %1043 = vperm.xlu0 %1042, %v511
      %v1044 = vpop.permute.xlu0 %1043
      %1047 = vset.pattern.permute.xlu0 0
      %1048 = vperm.xlu0 %1047, %v512
      %v1049 = vpop.permute.xlu0 %1048
      %1052 = vset.pattern.permute.xlu0 0
      %1053 = vperm.xlu0 %1052, %v513
      %v1054 = vpop.permute.xlu0 %1053
      %1057 = vset.pattern.permute.xlu0 0
      %1058 = vperm.xlu0 %1057, %v514
      %v1059 = vpop.permute.xlu0 %1058
      %1062 = vset.pattern.permute.xlu0 0
      %1063 = vperm.xlu0 %1062, %v515
      %v1064 = vpop.permute.xlu0 %1063
      %1067 = vset.pattern.permute.xlu0 0
      %1068 = vperm.xlu0 %1067, %v516
      %v1069 = vpop.permute.xlu0 %1068
      %1072 = vset.pattern.permute.xlu0 0
      %1073 = vperm.xlu0 %1072, %v517
      %v1074 = vpop.permute.xlu0 %1073
      %1077 = vset.pattern.permute.xlu0 0
      %1078 = vperm.xlu0 %1077, %v518
      %v1079 = vpop.permute.xlu0 %1078
      %1082 = vset.pattern.permute.xlu0 0
      %1083 = vperm.xlu0 %1082, %v519
      %v1084 = vpop.permute.xlu0 %1083
      %1087 = vset.pattern.permute.xlu0 0
      %1088 = vperm.xlu0 %1087, %v520
      %v1089 = vpop.permute.xlu0 %1088
      %1092 = vset.pattern.permute.xlu0 0
      %1093 = vperm.xlu0 %1092, %v521
      %v1094 = vpop.permute.xlu0 %1093
      %1097 = vset.pattern.permute.xlu0 0
      %1098 = vperm.xlu0 %1097, %v522
      %v1099 = vpop.permute.xlu0 %1098
      %1102 = vset.pattern.permute.xlu0 0
      %1103 = vperm.xlu0 %1102, %v523
      %v1104 = vpop.permute.xlu0 %1103
      %1107 = vset.pattern.permute.xlu0 0
      %1108 = vperm.xlu0 %1107, %v524
      %v1109 = vpop.permute.xlu0 %1108
      %1112 = vset.pattern.permute.xlu0 0
      %1113 = vperm.xlu0 %1112, %v525
      %v1114 = vpop.permute.xlu0 %1113
      %1117 = vset.pattern.permute.xlu0 0
      %1118 = vperm.xlu0 %1117, %v526
      %v1119 = vpop.permute.xlu0 %1118
      %1122 = vset.pattern.permute.xlu0 0
      %1123 = vperm.xlu0 %1122, %v527
      %v1124 = vpop.permute.xlu0 %1123
      %1127 = vset.pattern.permute.xlu0 0
      %1128 = vperm.xlu0 %1127, %v528
      %v1129 = vpop.permute.xlu0 %1128
      %1132 = vset.pattern.permute.xlu0 0
      %1133 = vperm.xlu0 %1132, %v529
      %v1134 = vpop.permute.xlu0 %1133
      %1137 = vset.pattern.permute.xlu0 0
      %1138 = vperm.xlu0 %1137, %v530
      %v1139 = vpop.permute.xlu0 %1138
      %1142 = vset.pattern.permute.xlu0 0
      %1143 = vperm.xlu0 %1142, %v531
      %v1144 = vpop.permute.xlu0 %1143
      %1147 = vset.pattern.permute.xlu0 0
      %1148 = vperm.xlu0 %1147, %v532
      %v1149 = vpop.permute.xlu0 %1148
      %1152 = vset.pattern.permute.xlu0 0
      %1153 = vperm.xlu0 %1152, %v533
      %v1154 = vpop.permute.xlu0 %1153
      %1157 = vset.pattern.permute.xlu0 0
      %1158 = vperm.xlu0 %1157, %v534
      %v1159 = vpop.permute.xlu0 %1158
      %1162 = vset.pattern.permute.xlu0 0
      %1163 = vperm.xlu0 %1162, %v535
      %v1164 = vpop.permute.xlu0 %1163
      %1167 = vset.pattern.permute.xlu0 0
      %1168 = vperm.xlu0 %1167, %v536
      %v1169 = vpop.permute.xlu0 %1168
      %1172 = vset.pattern.permute.xlu0 0
      %1173 = vperm.xlu0 %1172, %v537
      %v1174 = vpop.permute.xlu0 %1173
      %1177 = vset.pattern.permute.xlu0 0
      %1178 = vperm.xlu0 %1177, %v538
      %v1179 = vpop.permute.xlu0 %1178
      %1182 = vset.pattern.permute.xlu0 0
      %1183 = vperm.xlu0 %1182, %v539
      %v1184 = vpop.permute.xlu0 %1183
      %1187 = vset.pattern.permute.xlu0 0
      %1188 = vperm.xlu0 %1187, %v540
      %v1189 = vpop.permute.xlu0 %1188
      %1192 = vset.pattern.permute.xlu0 0
      %1193 = vperm.xlu0 %1192, %v541
      %v1194 = vpop.permute.xlu0 %1193
      %1197 = vset.pattern.permute.xlu0 0
      %1198 = vperm.xlu0 %1197, %v542
      %v1199 = vpop.permute.xlu0 %1198
      %1202 = vset.pattern.permute.xlu0 0
      %1203 = vperm.xlu0 %1202, %v543
      %v1204 = vpop.permute.xlu0 %1203
      %1207 = vset.pattern.permute.xlu0 0
      %1208 = vperm.xlu0 %1207, %v544
      %v1209 = vpop.permute.xlu0 %1208
      %1212 = vset.pattern.permute.xlu0 0
      %1213 = vperm.xlu0 %1212, %v545
      %v1214 = vpop.permute.xlu0 %1213
      %1217 = vset.pattern.permute.xlu0 0
      %1218 = vperm.xlu0 %1217, %v546
      %v1219 = vpop.permute.xlu0 %1218
      %1222 = vset.pattern.permute.xlu0 0
      %1223 = vperm.xlu0 %1222, %v547
      %v1224 = vpop.permute.xlu0 %1223
      %1227 = vset.pattern.permute.xlu0 0
      %1228 = vperm.xlu0 %1227, %v548
      %v1229 = vpop.permute.xlu0 %1228
      %1232 = vset.pattern.permute.xlu0 0
      %1233 = vperm.xlu0 %1232, %v549
      %v1234 = vpop.permute.xlu0 %1233
      %1237 = vset.pattern.permute.xlu0 0
      %1238 = vperm.xlu0 %1237, %v550
      %v1239 = vpop.permute.xlu0 %1238
      %1242 = vset.pattern.permute.xlu0 0
      %1243 = vperm.xlu0 %1242, %v551
      %v1244 = vpop.permute.xlu0 %1243
      %1247 = vset.pattern.permute.xlu0 0
      %1248 = vperm.xlu0 %1247, %v552
      %v1249 = vpop.permute.xlu0 %1248
      %1252 = vset.pattern.permute.xlu0 0
      %1253 = vperm.xlu0 %1252, %v553
      %v1254 = vpop.permute.xlu0 %1253
      %1257 = vset.pattern.permute.xlu0 0
      %1258 = vperm.xlu0 %1257, %v554
      %v1259 = vpop.permute.xlu0 %1258
      %1262 = vset.pattern.permute.xlu0 0
      %1263 = vperm.xlu0 %1262, %v555
      %v1264 = vpop.permute.xlu0 %1263
      %1267 = vset.pattern.permute.xlu0 0
      %1268 = vperm.xlu0 %1267, %v556
      %v1269 = vpop.permute.xlu0 %1268
      %1272 = vset.pattern.permute.xlu0 0
      %1273 = vperm.xlu0 %1272, %v557
      %v1274 = vpop.permute.xlu0 %1273
      %1277 = vset.pattern.permute.xlu0 0
      %1278 = vperm.xlu0 %1277, %v558
      %v1279 = vpop.permute.xlu0 %1278
      %1282 = vset.pattern.permute.xlu0 0
      %1283 = vperm.xlu0 %1282, %v559
      %v1284 = vpop.permute.xlu0 %1283
      %1287 = vset.pattern.permute.xlu0 0
      %1288 = vperm.xlu0 %1287, %v560
      %v1289 = vpop.permute.xlu0 %1288
      %1292 = vset.pattern.permute.xlu0 0
      %1293 = vperm.xlu0 %1292, %v561
      %v1294 = vpop.permute.xlu0 %1293
      %1297 = vset.pattern.permute.xlu0 0
      %1298 = vperm.xlu0 %1297, %v562
      %v1299 = vpop.permute.xlu0 %1298
      %1302 = vset.pattern.permute.xlu0 0
      %1303 = vperm.xlu0 %1302, %v563
      %v1304 = vpop.permute.xlu0 %1303
      %1307 = vset.pattern.permute.xlu0 0
      %1308 = vperm.xlu0 %1307, %v564
      %v1309 = vpop.permute.xlu0 %1308
      %1312 = vset.pattern.permute.xlu0 0
      %1313 = vperm.xlu0 %1312, %v565
      %v1314 = vpop.permute.xlu0 %1313
      %1317 = vset.pattern.permute.xlu0 0
      %1318 = vperm.xlu0 %1317, %v566
      %v1319 = vpop.permute.xlu0 %1318
      %1322 = vset.pattern.permute.xlu0 0
      %1323 = vperm.xlu0 %1322, %v567
      %v1324 = vpop.permute.xlu0 %1323
      %1327 = vset.pattern.permute.xlu0 0
      %1328 = vperm.xlu0 %1327, %v568
      %v1329 = vpop.permute.xlu0 %1328
      %1332 = vset.pattern.permute.xlu0 0
      %1333 = vperm.xlu0 %1332, %v569
      %v1334 = vpop.permute.xlu0 %1333
      %1337 = vset.pattern.permute.xlu0 0
      %1338 = vperm.xlu0 %1337, %v570
      %v1339 = vpop.permute.xlu0 %1338
      %1342 = vset.pattern.permute.xlu0 0
      %1343 = vperm.xlu0 %1342, %v571
      %v1344 = vpop.permute.xlu0 %1343
      %1347 = vset.pattern.permute.xlu0 0
      %1348 = vperm.xlu0 %1347, %v572
      %v1349 = vpop.permute.xlu0 %1348
      %1352 = vset.pattern.permute.xlu0 0
      %1353 = vperm.xlu0 %1352, %v573
      %v1354 = vpop.permute.xlu0 %1353
      %1357 = vset.pattern.permute.xlu0 0
      %1358 = vperm.xlu0 %1357, %v574
      %v1359 = vpop.permute.xlu0 %1358
      %1362 = vset.pattern.permute.xlu0 0
      %1363 = vperm.xlu0 %1362, %v575
      %v1364 = vpop.permute.xlu0 %1363
      %1367 = vset.pattern.permute.xlu0 0
      %1368 = vperm.xlu0 %1367, %v576
      %v1369 = vpop.permute.xlu0 %1368
      %1372 = vset.pattern.permute.xlu0 0
      %1373 = vperm.xlu0 %1372, %v577
      %v1374 = vpop.permute.xlu0 %1373
      %1377 = vset.pattern.permute.xlu0 0
      %1378 = vperm.xlu0 %1377, %v578
      %v1379 = vpop.permute.xlu0 %1378
      %1382 = vset.pattern.permute.xlu0 0
      %1383 = vperm.xlu0 %1382, %v579
      %v1384 = vpop.permute.xlu0 %1383
      %1387 = vset.pattern.permute.xlu0 0
      %1388 = vperm.xlu0 %1387, %v580
      %v1389 = vpop.permute.xlu0 %1388
      %1392 = vset.pattern.permute.xlu0 0
      %1393 = vperm.xlu0 %1392, %v581
      %v1394 = vpop.permute.xlu0 %1393
      %1397 = vset.pattern.permute.xlu0 0
      %1398 = vperm.xlu0 %1397, %v582
      %v1399 = vpop.permute.xlu0 %1398
      %1402 = vset.pattern.permute.xlu0 0
      %1403 = vperm.xlu0 %1402, %v583
      %v1404 = vpop.permute.xlu0 %1403
      %1407 = vset.pattern.permute.xlu0 0
      %1408 = vperm.xlu0 %1407, %v584
      %v1409 = vpop.permute.xlu0 %1408
      %1412 = vset.pattern.permute.xlu0 0
      %1413 = vperm.xlu0 %1412, %v585
      %v1414 = vpop.permute.xlu0 %1413
      %1417 = vset.pattern.permute.xlu0 0
      %1418 = vperm.xlu0 %1417, %v586
      %v1419 = vpop.permute.xlu0 %1418
      %1422 = vset.pattern.permute.xlu0 0
      %1423 = vperm.xlu0 %1422, %v587
      %v1424 = vpop.permute.xlu0 %1423
      %1427 = vset.pattern.permute.xlu0 0
      %1428 = vperm.xlu0 %1427, %v588
      %v1429 = vpop.permute.xlu0 %1428
      %1432 = vset.pattern.permute.xlu0 0
      %1433 = vperm.xlu0 %1432, %v589
      %v1434 = vpop.permute.xlu0 %1433
      %1437 = vset.pattern.permute.xlu0 0
      %1438 = vperm.xlu0 %1437, %v590
      %v1439 = vpop.permute.xlu0 %1438
      %1442 = vset.pattern.permute.xlu0 0
      %1443 = vperm.xlu0 %1442, %v591
      %v1444 = vpop.permute.xlu0 %1443
      %1447 = vset.pattern.permute.xlu0 0
      %1448 = vperm.xlu0 %1447, %v592
      %v1449 = vpop.permute.xlu0 %1448
      %1452 = vset.pattern.permute.xlu0 0
      %1453 = vperm.xlu0 %1452, %v593
      %v1454 = vpop.permute.xlu0 %1453
      %1457 = vset.pattern.permute.xlu0 0
      %1458 = vperm.xlu0 %1457, %v594
      %v1459 = vpop.permute.xlu0 %1458
      %1462 = vset.pattern.permute.xlu0 0
      %1463 = vperm.xlu0 %1462, %v595
      %v1464 = vpop.permute.xlu0 %1463
      %1467 = vset.pattern.permute.xlu0 0
      %1468 = vperm.xlu0 %1467, %v596
      %v1469 = vpop.permute.xlu0 %1468
      %1472 = vset.pattern.permute.xlu0 0
      %1473 = vperm.xlu0 %1472, %v597
      %v1474 = vpop.permute.xlu0 %1473
      %1477 = vset.pattern.permute.xlu0 0
      %1478 = vperm.xlu0 %1477, %v598
      %v1479 = vpop.permute.xlu0 %1478
      %1482 = vset.pattern.permute.xlu0 0
      %1483 = vperm.xlu0 %1482, %v599
      %v1484 = vpop.permute.xlu0 %1483
      %1487 = vset.pattern.permute.xlu0 0
      %1488 = vperm.xlu0 %1487, %v600
      %v1489 = vpop.permute.xlu0 %1488
      %1492 = vset.pattern.permute.xlu0 0
      %1493 = vperm.xlu0 %1492, %v601
      %v1494 = vpop.permute.xlu0 %1493
      %1497 = vset.pattern.permute.xlu0 0
      %1498 = vperm.xlu0 %1497, %v602
      %v1499 = vpop.permute.xlu0 %1498
      %1502 = vset.pattern.permute.xlu0 0
      %1503 = vperm.xlu0 %1502, %v603
      %v1504 = vpop.permute.xlu0 %1503
      %1507 = vset.pattern.permute.xlu0 0
      %1508 = vperm.xlu0 %1507, %v604
      %v1509 = vpop.permute.xlu0 %1508
      %1512 = vset.pattern.permute.xlu0 0
      %1513 = vperm.xlu0 %1512, %v605
      %v1514 = vpop.permute.xlu0 %1513
      %1517 = vset.pattern.permute.xlu0 0
      %1518 = vperm.xlu0 %1517, %v606
      %v1519 = vpop.permute.xlu0 %1518
      %1522 = vset.pattern.permute.xlu0 0
      %1523 = vperm.xlu0 %1522, %v607
      %v1524 = vpop.permute.xlu0 %1523
      %1527 = vset.pattern.permute.xlu0 0
      %1528 = vperm.xlu0 %1527, %v608
      %v1529 = vpop.permute.xlu0 %1528
      %1532 = vset.pattern.permute.xlu0 0
      %1533 = vperm.xlu0 %1532, %v609
      %v1534 = vpop.permute.xlu0 %1533
      %1537 = vset.pattern.permute.xlu0 0
      %1538 = vperm.xlu0 %1537, %v610
      %v1539 = vpop.permute.xlu0 %1538
      %1542 = vset.pattern.permute.xlu0 0
      %1543 = vperm.xlu0 %1542, %v611
      %v1544 = vpop.permute.xlu0 %1543
      %1547 = vset.pattern.permute.xlu0 0
      %1548 = vperm.xlu0 %1547, %v612
      %v1549 = vpop.permute.xlu0 %1548
      %1552 = vset.pattern.permute.xlu0 0
      %1553 = vperm.xlu0 %1552, %v613
      %v1554 = vpop.permute.xlu0 %1553
      %1557 = vset.pattern.permute.xlu0 0
      %1558 = vperm.xlu0 %1557, %v614
      %v1559 = vpop.permute.xlu0 %1558
      %1562 = vset.pattern.permute.xlu0 0
      %1563 = vperm.xlu0 %1562, %v615
      %v1564 = vpop.permute.xlu0 %1563
      %1567 = vset.pattern.permute.xlu0 0
      %1568 = vperm.xlu0 %1567, %v616
      %v1569 = vpop.permute.xlu0 %1568
      %1572 = vset.pattern.permute.xlu0 0
      %1573 = vperm.xlu0 %1572, %v617
      %v1574 = vpop.permute.xlu0 %1573
      %1577 = vset.pattern.permute.xlu0 0
      %1578 = vperm.xlu0 %1577, %v618
      %v1579 = vpop.permute.xlu0 %1578
      %1582 = vset.pattern.permute.xlu0 0
      %1583 = vperm.xlu0 %1582, %v619
      %v1584 = vpop.permute.xlu0 %1583
      %1587 = vset.pattern.permute.xlu0 0
      %1588 = vperm.xlu0 %1587, %v620
      %v1589 = vpop.permute.xlu0 %1588
      %1592 = vset.pattern.permute.xlu0 0
      %1593 = vperm.xlu0 %1592, %v621
      %v1594 = vpop.permute.xlu0 %1593
      %1597 = vset.pattern.permute.xlu0 0
      %1598 = vperm.xlu0 %1597, %v622
      %v1599 = vpop.permute.xlu0 %1598
      %1602 = vset.pattern.permute.xlu0 0
      %1603 = vperm.xlu0 %1602, %v623
      %v1604 = vpop.permute.xlu0 %1603
      %1607 = vset.pattern.permute.xlu0 0
      %1608 = vperm.xlu0 %1607, %v624
      %v1609 = vpop.permute.xlu0 %1608
      %1612 = vset.pattern.permute.xlu0 0
      %1613 = vperm.xlu0 %1612, %v625
      %v1614 = vpop.permute.xlu0 %1613
      %1617 = vset.pattern.permute.xlu0 0
      %1618 = vperm.xlu0 %1617, %v626
      %v1619 = vpop.permute.xlu0 %1618
      %1622 = vset.pattern.permute.xlu0 0
      %1623 = vperm.xlu0 %1622, %v627
      %v1624 = vpop.permute.xlu0 %1623
      %1627 = vset.pattern.permute.xlu0 0
      %1628 = vperm.xlu0 %1627, %v628
      %v1629 = vpop.permute.xlu0 %1628
      %1632 = vset.pattern.permute.xlu0 0
      %1633 = vperm.xlu0 %1632, %v629
      %v1634 = vpop.permute.xlu0 %1633
      %1637 = vset.pattern.permute.xlu0 0
      %1638 = vperm.xlu0 %1637, %v630
      %v1639 = vpop.permute.xlu0 %1638
      %1642 = vset.pattern.permute.xlu0 0
      %1643 = vperm.xlu0 %1642, %v631
      %v1644 = vpop.permute.xlu0 %1643
      %1647 = vset.pattern.permute.xlu0 0
      %1648 = vperm.xlu0 %1647, %v632
      %v1649 = vpop.permute.xlu0 %1648
      %1652 = vset.pattern.permute.xlu0 0
      %1653 = vperm.xlu0 %1652, %v633
      %v1654 = vpop.permute.xlu0 %1653
      %1657 = vset.pattern.permute.xlu0 0
      %1658 = vperm.xlu0 %1657, %v634
      %v1659 = vpop.permute.xlu0 %1658
      %1662 = vset.pattern.permute.xlu0 0
      %1663 = vperm.xlu0 %1662, %v635
      %v1664 = vpop.permute.xlu0 %1663
      %1667 = vset.pattern.permute.xlu0 0
      %1668 = vperm.xlu0 %1667, %v636
      %v1669 = vpop.permute.xlu0 %1668
      %1672 = vset.pattern.permute.xlu0 0
      %1673 = vperm.xlu0 %1672, %v637
      %v1674 = vpop.permute.xlu0 %1673
      %1677 = vset.pattern.permute.xlu0 0
      %1678 = vperm.xlu0 %1677, %v638
      %v1679 = vpop.permute.xlu0 %1678
      %1682 = vset.pattern.permute.xlu0 0
      %1683 = vperm.xlu0 %1682, %v639
      %v1684 = vpop.permute.xlu0 %1683
      %1687 = vset.pattern.permute.xlu0 0
      %1688 = vperm.xlu0 %1687, %v640
      %v1689 = vpop.permute.xlu0 %1688
      %1692 = vset.pattern.permute.xlu0 0
      %1693 = vperm.xlu0 %1692, %v641
      %v1694 = vpop.permute.xlu0 %1693
      %1697 = vset.pattern.permute.xlu0 0
      %1698 = vperm.xlu0 %1697, %v642
      %v1699 = vpop.permute.xlu0 %1698
      %1702 = vset.pattern.permute.xlu0 0
      %1703 = vperm.xlu0 %1702, %v643
      %v1704 = vpop.permute.xlu0 %1703
      %1707 = vset.pattern.permute.xlu0 0
      %1708 = vperm.xlu0 %1707, %v644
      %v1709 = vpop.permute.xlu0 %1708
      %1712 = vset.pattern.permute.xlu0 0
      %1713 = vperm.xlu0 %1712, %v645
      %v1714 = vpop.permute.xlu0 %1713
      %1717 = vset.pattern.permute.xlu0 0
      %1718 = vperm.xlu0 %1717, %v646
      %v1719 = vpop.permute.xlu0 %1718
      %1722 = vset.pattern.permute.xlu0 0
      %1723 = vperm.xlu0 %1722, %v647
      %v1724 = vpop.permute.xlu0 %1723
      %1727 = vset.pattern.permute.xlu0 0
      %1728 = vperm.xlu0 %1727, %v648
      %v1729 = vpop.permute.xlu0 %1728
      %1732 = vset.pattern.permute.xlu0 0
      %1733 = vperm.xlu0 %1732, %v649
      %v1734 = vpop.permute.xlu0 %1733
      %1737 = vset.pattern.permute.xlu0 0
      %1738 = vperm.xlu0 %1737, %v650
      %v1739 = vpop.permute.xlu0 %1738
      %1742 = vset.pattern.permute.xlu0 0
      %1743 = vperm.xlu0 %1742, %v651
      %v1744 = vpop.permute.xlu0 %1743
      %1747 = vset.pattern.permute.xlu0 0
      %1748 = vperm.xlu0 %1747, %v652
      %v1749 = vpop.permute.xlu0 %1748
      %1752 = vset.pattern.permute.xlu0 0
      %1753 = vperm.xlu0 %1752, %v653
      %v1754 = vpop.permute.xlu0 %1753
      %1757 = vset.pattern.permute.xlu0 0
      %1758 = vperm.xlu0 %1757, %v654
      %v1759 = vpop.permute.xlu0 %1758
      %1762 = vset.pattern.permute.xlu0 0
      %1763 = vperm.xlu0 %1762, %v655
      %v1764 = vpop.permute.xlu0 %1763
      %1767 = vset.pattern.permute.xlu0 0
      %1768 = vperm.xlu0 %1767, %v656
      %v1769 = vpop.permute.xlu0 %1768
      %1772 = vset.pattern.permute.xlu0 0
      %1773 = vperm.xlu0 %1772, %v657
      %v1774 = vpop.permute.xlu0 %1773
      %1777 = vset.pattern.permute.xlu0 0
      %1778 = vperm.xlu0 %1777, %v658
      %v1779 = vpop.permute.xlu0 %1778
      %1782 = vset.pattern.permute.xlu0 0
      %1783 = vperm.xlu0 %1782, %v659
      %v1784 = vpop.permute.xlu0 %1783
      %1787 = vset.pattern.permute.xlu0 0
      %1788 = vperm.xlu0 %1787, %v660
      %v1789 = vpop.permute.xlu0 %1788
      %1792 = vset.pattern.permute.xlu0 0
      %1793 = vperm.xlu0 %1792, %v661
      %v1794 = vpop.permute.xlu0 %1793
      %1797 = vset.pattern.permute.xlu0 0
      %1798 = vperm.xlu0 %1797, %v662
      %v1799 = vpop.permute.xlu0 %1798
      %1802 = vset.pattern.permute.xlu0 0
      %1803 = vperm.xlu0 %1802, %v663
      %v1804 = vpop.permute.xlu0 %1803
      %1807 = vset.pattern.permute.xlu0 0
      %1808 = vperm.xlu0 %1807, %v664
      %v1809 = vpop.permute.xlu0 %1808
      %1812 = vset.pattern.permute.xlu0 0
      %1813 = vperm.xlu0 %1812, %v665
      %v1814 = vpop.permute.xlu0 %1813
      %1817 = vset.pattern.permute.xlu0 0
      %1818 = vperm.xlu0 %1817, %v666
      %v1819 = vpop.permute.xlu0 %1818
      %1822 = vset.pattern.permute.xlu0 0
      %1823 = vperm.xlu0 %1822, %v667
      %v1824 = vpop.permute.xlu0 %1823
      %1827 = vset.pattern.permute.xlu0 0
      %1828 = vperm.xlu0 %1827, %v668
      %v1829 = vpop.permute.xlu0 %1828
      %1832 = vset.pattern.permute.xlu0 0
      %1833 = vperm.xlu0 %1832, %v669
      %v1834 = vpop.permute.xlu0 %1833
      %1837 = vset.pattern.permute.xlu0 0
      %1838 = vperm.xlu0 %1837, %v670
      %v1839 = vpop.permute.xlu0 %1838
      %1842 = vset.pattern.permute.xlu0 0
      %1843 = vperm.xlu0 %1842, %v671
      %v1844 = vpop.permute.xlu0 %1843
      %1847 = vset.pattern.permute.xlu0 0
      %1848 = vperm.xlu0 %1847, %v672
      %v1849 = vpop.permute.xlu0 %1848
      %1852 = vset.pattern.permute.xlu0 0
      %1853 = vperm.xlu0 %1852, %v673
      %v1854 = vpop.permute.xlu0 %1853
      %1857 = vset.pattern.permute.xlu0 0
      %1858 = vperm.xlu0 %1857, %v674
      %v1859 = vpop.permute.xlu0 %1858
      %1862 = vset.pattern.permute.xlu0 0
      %1863 = vperm.xlu0 %1862, %v675
      %v1864 = vpop.permute.xlu0 %1863
      %1867 = vset.pattern.permute.xlu0 0
      %1868 = vperm.xlu0 %1867, %v676
      %v1869 = vpop.permute.xlu0 %1868
      %1872 = vset.pattern.permute.xlu0 0
      %1873 = vperm.xlu0 %1872, %v677
      %v1874 = vpop.permute.xlu0 %1873
      %1877 = vset.pattern.permute.xlu0 0
      %1878 = vperm.xlu0 %1877, %v678
      %v1879 = vpop.permute.xlu0 %1878
      %1882 = vset.pattern.permute.xlu0 0
      %1883 = vperm.xlu0 %1882, %v679
      %v1884 = vpop.permute.xlu0 %1883
      %1887 = vset.pattern.permute.xlu0 0
      %1888 = vperm.xlu0 %1887, %v680
      %v1889 = vpop.permute.xlu0 %1888
      %1892 = vset.pattern.permute.xlu0 0
      %1893 = vperm.xlu0 %1892, %v681
      %v1894 = vpop.permute.xlu0 %1893
      %1897 = vset.pattern.permute.xlu0 0
      %1898 = vperm.xlu0 %1897, %v682
      %v1899 = vpop.permute.xlu0 %1898
      %1902 = vset.pattern.permute.xlu0 0
      %1903 = vperm.xlu0 %1902, %v683
      %v1904 = vpop.permute.xlu0 %1903
      %1907 = vset.pattern.permute.xlu0 0
      %1908 = vperm.xlu0 %1907, %v684
      %v1909 = vpop.permute.xlu0 %1908
      %1912 = vset.pattern.permute.xlu0 0
      %1913 = vperm.xlu0 %1912, %v685
      %v1914 = vpop.permute.xlu0 %1913
      %1917 = vset.pattern.permute.xlu0 0
      %1918 = vperm.xlu0 %1917, %v686
      %v1919 = vpop.permute.xlu0 %1918
      %1922 = vset.pattern.permute.xlu0 0
      %1923 = vperm.xlu0 %1922, %v687
      %v1924 = vpop.permute.xlu0 %1923
      %1927 = vset.pattern.permute.xlu0 0
      %1928 = vperm.xlu0 %1927, %v688
      %v1929 = vpop.permute.xlu0 %1928
      %1932 = vset.pattern.permute.xlu0 0
      %1933 = vperm.xlu0 %1932, %v689
      %v1934 = vpop.permute.xlu0 %1933
      %1937 = vset.pattern.permute.xlu0 0
      %1938 = vperm.xlu0 %1937, %v690
      %v1939 = vpop.permute.xlu0 %1938
      %1942 = vset.pattern.permute.xlu0 0
      %1943 = vperm.xlu0 %1942, %v691
      %v1944 = vpop.permute.xlu0 %1943
      %1947 = vset.pattern.permute.xlu0 0
      %1948 = vperm.xlu0 %1947, %v692
      %v1949 = vpop.permute.xlu0 %1948
      %1952 = vset.pattern.permute.xlu0 0
      %1953 = vperm.xlu0 %1952, %v693
      %v1954 = vpop.permute.xlu0 %1953
      %1957 = vset.pattern.permute.xlu0 0
      %1958 = vperm.xlu0 %1957, %v694
      %v1959 = vpop.permute.xlu0 %1958
      %1962 = vset.pattern.permute.xlu0 0
      %1963 = vperm.xlu0 %1962, %v695
      %v1964 = vpop.permute.xlu0 %1963
      %1967 = vset.pattern.permute.xlu0 0
      %1968 = vperm.xlu0 %1967, %v696
      %v1969 = vpop.permute.xlu0 %1968
      %1972 = vset.pattern.permute.xlu0 0
      %1973 = vperm.xlu0 %1972, %v697
      %v1974 = vpop.permute.xlu0 %1973
      %1977 = vset.pattern.permute.xlu0 0
      %1978 = vperm.xlu0 %1977, %v698
      %v1979 = vpop.permute.xlu0 %1978
      %v1981 = vlaneseq
      %v1982 = vshrl.u32 %v1981, 7
      %v1983 = vsub.s32 0, %v1982
      %v1984 = vrot.slane %v700, %v1983
      %v1985 = vmul.f32 %v704, %v1984
      %v1986 = vmul.f32 %v709, %v1984
      %v1987 = vmul.f32 %v714, %v1984
      %v1988 = vmul.f32 %v719, %v1984
      %v1989 = vmul.f32 %v724, %v1984
      %v1990 = vmul.f32 %v729, %v1984
      %v1991 = vmul.f32 %v734, %v1984
      %v1992 = vmul.f32 %v739, %v1984
      %v1993 = vmul.f32 %v744, %v1984
      %v1994 = vmul.f32 %v749, %v1984
      %v1995 = vmul.f32 %v754, %v1984
      %v1996 = vmul.f32 %v759, %v1984
      %v1997 = vmul.f32 %v764, %v1984
      %v1998 = vmul.f32 %v769, %v1984
      %v1999 = vmul.f32 %v774, %v1984
      %v2000 = vmul.f32 %v779, %v1984
      %v2001 = vmul.f32 %v784, %v1984
      %v2002 = vmul.f32 %v789, %v1984
      %v2003 = vmul.f32 %v794, %v1984
      %v2004 = vmul.f32 %v799, %v1984
      %v2005 = vmul.f32 %v804, %v1984
      %v2006 = vmul.f32 %v809, %v1984
      %v2007 = vmul.f32 %v814, %v1984
      %v2008 = vmul.f32 %v819, %v1984
      %v2009 = vmul.f32 %v824, %v1984
      %v2010 = vmul.f32 %v829, %v1984
      %v2011 = vmul.f32 %v834, %v1984
      %v2012 = vmul.f32 %v839, %v1984
      %v2013 = vmul.f32 %v844, %v1984
      %v2014 = vmul.f32 %v849, %v1984
      %v2015 = vmul.f32 %v854, %v1984
      %v2016 = vmul.f32 %v859, %v1984
      %v2017 = vmul.f32 %v864, %v1984
      %v2018 = vmul.f32 %v869, %v1984
      %v2019 = vmul.f32 %v874, %v1984
      %v2020 = vmul.f32 %v879, %v1984
      %v2021 = vmul.f32 %v884, %v1984
      %v2022 = vmul.f32 %v889, %v1984
      %v2023 = vmul.f32 %v894, %v1984
      %v2024 = vmul.f32 %v899, %v1984
      %v2025 = vmul.f32 %v904, %v1984
      %v2026 = vmul.f32 %v909, %v1984
      %v2027 = vmul.f32 %v914, %v1984
      %v2028 = vmul.f32 %v919, %v1984
      %v2029 = vmul.f32 %v924, %v1984
      %v2030 = vmul.f32 %v929, %v1984
      %v2031 = vmul.f32 %v934, %v1984
      %v2032 = vmul.f32 %v939, %v1984
      %v2033 = vmul.f32 %v944, %v1984
      %v2034 = vmul.f32 %v949, %v1984
      %v2035 = vmul.f32 %v954, %v1984
      %v2036 = vmul.f32 %v959, %v1984
      %v2037 = vmul.f32 %v964, %v1984
      %v2038 = vmul.f32 %v969, %v1984
      %v2039 = vmul.f32 %v974, %v1984
      %v2040 = vmul.f32 %v979, %v1984
      %v2041 = vmul.f32 %v984, %v1984
      %v2042 = vmul.f32 %v989, %v1984
      %v2043 = vmul.f32 %v994, %v1984
      %v2044 = vmul.f32 %v999, %v1984
      %v2045 = vmul.f32 %v1004, %v1984
      %v2046 = vmul.f32 %v1009, %v1984
      %v2047 = vmul.f32 %v1014, %v1984
      %v2048 = vmul.f32 %v1019, %v1984
      %v2049 = vmul.f32 %v1024, %v1984
      %v2050 = vmul.f32 %v1029, %v1984
      %v2051 = vmul.f32 %v1034, %v1984
      %v2052 = vmul.f32 %v1039, %v1984
      %v2053 = vmul.f32 %v1044, %v1984
      %v2054 = vmul.f32 %v1049, %v1984
      %v2055 = vmul.f32 %v1054, %v1984
      %v2056 = vmul.f32 %v1059, %v1984
      %v2057 = vmul.f32 %v1064, %v1984
      %v2058 = vmul.f32 %v1069, %v1984
      %v2059 = vmul.f32 %v1074, %v1984
      %v2060 = vmul.f32 %v1079, %v1984
      %v2061 = vmul.f32 %v1084, %v1984
      %v2062 = vmul.f32 %v1089, %v1984
      %v2063 = vmul.f32 %v1094, %v1984
      %v2064 = vmul.f32 %v1099, %v1984
      %v2065 = vmul.f32 %v1104, %v1984
      %v2066 = vmul.f32 %v1109, %v1984
      %v2067 = vmul.f32 %v1114, %v1984
      %v2068 = vmul.f32 %v1119, %v1984
      %v2069 = vmul.f32 %v1124, %v1984
      %v2070 = vmul.f32 %v1129, %v1984
      %v2071 = vmul.f32 %v1134, %v1984
      %v2072 = vmul.f32 %v1139, %v1984
      %v2073 = vmul.f32 %v1144, %v1984
      %v2074 = vmul.f32 %v1149, %v1984
      %v2075 = vmul.f32 %v1154, %v1984
      %v2076 = vmul.f32 %v1159, %v1984
      %v2077 = vmul.f32 %v1164, %v1984
      %v2078 = vmul.f32 %v1169, %v1984
      %v2079 = vmul.f32 %v1174, %v1984
      %v2080 = vmul.f32 %v1179, %v1984
      %v2081 = vmul.f32 %v1184, %v1984
      %v2082 = vmul.f32 %v1189, %v1984
      %v2083 = vmul.f32 %v1194, %v1984
      %v2084 = vmul.f32 %v1199, %v1984
      %v2085 = vmul.f32 %v1204, %v1984
      %v2086 = vmul.f32 %v1209, %v1984
      %v2087 = vmul.f32 %v1214, %v1984
      %v2088 = vmul.f32 %v1219, %v1984
      %v2089 = vmul.f32 %v1224, %v1984
      %v2090 = vmul.f32 %v1229, %v1984
      %v2091 = vmul.f32 %v1234, %v1984
      %v2092 = vmul.f32 %v1239, %v1984
      %v2093 = vmul.f32 %v1244, %v1984
      %v2094 = vmul.f32 %v1249, %v1984
      %v2095 = vmul.f32 %v1254, %v1984
      %v2096 = vmul.f32 %v1259, %v1984
      %v2097 = vmul.f32 %v1264, %v1984
      %v2098 = vmul.f32 %v1269, %v1984
      %v2099 = vmul.f32 %v1274, %v1984
      %v2100 = vmul.f32 %v1279, %v1984
      %v2101 = vmul.f32 %v1284, %v1984
      %v2102 = vmul.f32 %v1289, %v1984
      %v2103 = vmul.f32 %v1294, %v1984
      %v2104 = vmul.f32 %v1299, %v1984
      %v2105 = vmul.f32 %v1304, %v1984
      %v2106 = vmul.f32 %v1309, %v1984
      %v2107 = vmul.f32 %v1314, %v1984
      %v2108 = vmul.f32 %v1319, %v1984
      %v2109 = vmul.f32 %v1324, %v1984
      %v2110 = vmul.f32 %v1329, %v1984
      %v2111 = vmul.f32 %v1334, %v1984
      %v2112 = vmul.f32 %v1339, %v1984
      %v2113 = vmul.f32 %v1344, %v1984
      %v2114 = vmul.f32 %v1349, %v1984
      %v2115 = vmul.f32 %v1354, %v1984
      %v2116 = vmul.f32 %v1359, %v1984
      %v2117 = vmul.f32 %v1364, %v1984
      %v2118 = vmul.f32 %v1369, %v1984
      %v2119 = vmul.f32 %v1374, %v1984
      %v2120 = vmul.f32 %v1379, %v1984
      %v2121 = vmul.f32 %v1384, %v1984
      %v2122 = vmul.f32 %v1389, %v1984
      %v2123 = vmul.f32 %v1394, %v1984
      %v2124 = vmul.f32 %v1399, %v1984
      %v2125 = vmul.f32 %v1404, %v1984
      %v2126 = vmul.f32 %v1409, %v1984
      %v2127 = vmul.f32 %v1414, %v1984
      %v2128 = vmul.f32 %v1419, %v1984
      %v2129 = vmul.f32 %v1424, %v1984
      %v2130 = vmul.f32 %v1429, %v1984
      %v2131 = vmul.f32 %v1434, %v1984
      %v2132 = vmul.f32 %v1439, %v1984
      %v2133 = vmul.f32 %v1444, %v1984
      %v2134 = vmul.f32 %v1449, %v1984
      %v2135 = vmul.f32 %v1454, %v1984
      %v2136 = vmul.f32 %v1459, %v1984
      %v2137 = vmul.f32 %v1464, %v1984
      %v2138 = vmul.f32 %v1469, %v1984
      %v2139 = vmul.f32 %v1474, %v1984
      %v2140 = vmul.f32 %v1479, %v1984
      %v2141 = vmul.f32 %v1484, %v1984
      %v2142 = vmul.f32 %v1489, %v1984
      %v2143 = vmul.f32 %v1494, %v1984
      %v2144 = vmul.f32 %v1499, %v1984
      %v2145 = vmul.f32 %v1504, %v1984
      %v2146 = vmul.f32 %v1509, %v1984
      %v2147 = vmul.f32 %v1514, %v1984
      %v2148 = vmul.f32 %v1519, %v1984
      %v2149 = vmul.f32 %v1524, %v1984
      %v2150 = vmul.f32 %v1529, %v1984
      %v2151 = vmul.f32 %v1534, %v1984
      %v2152 = vmul.f32 %v1539, %v1984
      %v2153 = vmul.f32 %v1544, %v1984
      %v2154 = vmul.f32 %v1549, %v1984
      %v2155 = vmul.f32 %v1554, %v1984
      %v2156 = vmul.f32 %v1559, %v1984
      %v2157 = vmul.f32 %v1564, %v1984
      %v2158 = vmul.f32 %v1569, %v1984
      %v2159 = vmul.f32 %v1574, %v1984
      %v2160 = vmul.f32 %v1579, %v1984
      %v2161 = vmul.f32 %v1584, %v1984
      %v2162 = vmul.f32 %v1589, %v1984
      %v2163 = vmul.f32 %v1594, %v1984
      %v2164 = vmul.f32 %v1599, %v1984
      %v2165 = vmul.f32 %v1604, %v1984
      %v2166 = vmul.f32 %v1609, %v1984
      %v2167 = vmul.f32 %v1614, %v1984
      %v2168 = vmul.f32 %v1619, %v1984
      %v2169 = vmul.f32 %v1624, %v1984
      %v2170 = vmul.f32 %v1629, %v1984
      %v2171 = vmul.f32 %v1634, %v1984
      %v2172 = vmul.f32 %v1639, %v1984
      %v2173 = vmul.f32 %v1644, %v1984
      %v2174 = vmul.f32 %v1649, %v1984
      %v2175 = vmul.f32 %v1654, %v1984
      %v2176 = vmul.f32 %v1659, %v1984
      %v2177 = vmul.f32 %v1664, %v1984
      %v2178 = vmul.f32 %v1669, %v1984
      %v2179 = vmul.f32 %v1674, %v1984
      %v2180 = vmul.f32 %v1679, %v1984
      %v2181 = vmul.f32 %v1684, %v1984
      %v2182 = vmul.f32 %v1689, %v1984
      %v2183 = vmul.f32 %v1694, %v1984
      %v2184 = vmul.f32 %v1699, %v1984
      %v2185 = vmul.f32 %v1704, %v1984
      %v2186 = vmul.f32 %v1709, %v1984
      %v2187 = vmul.f32 %v1714, %v1984
      %v2188 = vmul.f32 %v1719, %v1984
      %v2189 = vmul.f32 %v1724, %v1984
      %v2190 = vmul.f32 %v1729, %v1984
      %v2191 = vmul.f32 %v1734, %v1984
      %v2192 = vmul.f32 %v1739, %v1984
      %v2193 = vmul.f32 %v1744, %v1984
      %v2194 = vmul.f32 %v1749, %v1984
      %v2195 = vmul.f32 %v1754, %v1984
      %v2196 = vmul.f32 %v1759, %v1984
      %v2197 = vmul.f32 %v1764, %v1984
      %v2198 = vmul.f32 %v1769, %v1984
      %v2199 = vmul.f32 %v1774, %v1984
      %v2200 = vmul.f32 %v1779, %v1984
      %v2201 = vmul.f32 %v1784, %v1984
      %v2202 = vmul.f32 %v1789, %v1984
      %v2203 = vmul.f32 %v1794, %v1984
      %v2204 = vmul.f32 %v1799, %v1984
      %v2205 = vmul.f32 %v1804, %v1984
      %v2206 = vmul.f32 %v1809, %v1984
      %v2207 = vmul.f32 %v1814, %v1984
      %v2208 = vmul.f32 %v1819, %v1984
      %v2209 = vmul.f32 %v1824, %v1984
      %v2210 = vmul.f32 %v1829, %v1984
      %v2211 = vmul.f32 %v1834, %v1984
      %v2212 = vmul.f32 %v1839, %v1984
      %v2213 = vmul.f32 %v1844, %v1984
      %v2214 = vmul.f32 %v1849, %v1984
      %v2215 = vmul.f32 %v1854, %v1984
      %v2216 = vmul.f32 %v1859, %v1984
      %v2217 = vmul.f32 %v1864, %v1984
      %v2218 = vmul.f32 %v1869, %v1984
      %v2219 = vmul.f32 %v1874, %v1984
      %v2220 = vmul.f32 %v1879, %v1984
      %v2221 = vmul.f32 %v1884, %v1984
      %v2222 = vmul.f32 %v1889, %v1984
      %v2223 = vmul.f32 %v1894, %v1984
      %v2224 = vmul.f32 %v1899, %v1984
      %v2225 = vmul.f32 %v1904, %v1984
      %v2226 = vmul.f32 %v1909, %v1984
      %v2227 = vmul.f32 %v1914, %v1984
      %v2228 = vmul.f32 %v1919, %v1984
      %v2229 = vmul.f32 %v1924, %v1984
      %v2230 = vmul.f32 %v1929, %v1984
      %v2231 = vmul.f32 %v1934, %v1984
      %v2232 = vmul.f32 %v1939, %v1984
      %v2233 = vmul.f32 %v1944, %v1984
      %v2234 = vmul.f32 %v1949, %v1984
      %v2235 = vmul.f32 %v1954, %v1984
      %v2236 = vmul.f32 %v1959, %v1984
      %v2237 = vmul.f32 %v1964, %v1984
      %v2238 = vmul.f32 %v1969, %v1984
      %v2239 = vmul.f32 %v1974, %v1984
      %v2240 = vmul.f32 %v1979, %v1984
      %2241 = vset.pattern.permute.xlu0 1
      %2242 = vperm.xlu0 %2241, %v443
      %v2243 = vpop.permute.xlu0 %2242
      %2245 = vset.pattern.permute.xlu0 1
      %2246 = vperm.xlu0 %2245, %v444
      %v2247 = vpop.permute.xlu0 %2246
      %2249 = vset.pattern.permute.xlu0 1
      %2250 = vperm.xlu0 %2249, %v445
      %v2251 = vpop.permute.xlu0 %2250
      %2253 = vset.pattern.permute.xlu0 1
      %2254 = vperm.xlu0 %2253, %v446
      %v2255 = vpop.permute.xlu0 %2254
      %2257 = vset.pattern.permute.xlu0 1
      %2258 = vperm.xlu0 %2257, %v447
      %v2259 = vpop.permute.xlu0 %2258
      %2261 = vset.pattern.permute.xlu0 1
      %2262 = vperm.xlu0 %2261, %v448
      %v2263 = vpop.permute.xlu0 %2262
      %2265 = vset.pattern.permute.xlu0 1
      %2266 = vperm.xlu0 %2265, %v449
      %v2267 = vpop.permute.xlu0 %2266
      %2269 = vset.pattern.permute.xlu0 1
      %2270 = vperm.xlu0 %2269, %v450
      %v2271 = vpop.permute.xlu0 %2270
      %2273 = vset.pattern.permute.xlu0 1
      %2274 = vperm.xlu0 %2273, %v451
      %v2275 = vpop.permute.xlu0 %2274
      %2277 = vset.pattern.permute.xlu0 1
      %2278 = vperm.xlu0 %2277, %v452
      %v2279 = vpop.permute.xlu0 %2278
      %2281 = vset.pattern.permute.xlu0 1
      %2282 = vperm.xlu0 %2281, %v453
      %v2283 = vpop.permute.xlu0 %2282
      %2285 = vset.pattern.permute.xlu0 1
      %2286 = vperm.xlu0 %2285, %v454
      %v2287 = vpop.permute.xlu0 %2286
      %2289 = vset.pattern.permute.xlu0 1
      %2290 = vperm.xlu0 %2289, %v455
      %v2291 = vpop.permute.xlu0 %2290
      %2293 = vset.pattern.permute.xlu0 1
      %2294 = vperm.xlu0 %2293, %v456
      %v2295 = vpop.permute.xlu0 %2294
      %2297 = vset.pattern.permute.xlu0 1
      %2298 = vperm.xlu0 %2297, %v457
      %v2299 = vpop.permute.xlu0 %2298
      %2301 = vset.pattern.permute.xlu0 1
      %2302 = vperm.xlu0 %2301, %v458
      %v2303 = vpop.permute.xlu0 %2302
      %2305 = vset.pattern.permute.xlu0 1
      %2306 = vperm.xlu0 %2305, %v459
      %v2307 = vpop.permute.xlu0 %2306
      %2309 = vset.pattern.permute.xlu0 1
      %2310 = vperm.xlu0 %2309, %v460
      %v2311 = vpop.permute.xlu0 %2310
      %2313 = vset.pattern.permute.xlu0 1
      %2314 = vperm.xlu0 %2313, %v461
      %v2315 = vpop.permute.xlu0 %2314
      %2317 = vset.pattern.permute.xlu0 1
      %2318 = vperm.xlu0 %2317, %v462
      %v2319 = vpop.permute.xlu0 %2318
      %2321 = vset.pattern.permute.xlu0 1
      %2322 = vperm.xlu0 %2321, %v463
      %v2323 = vpop.permute.xlu0 %2322
      %2325 = vset.pattern.permute.xlu0 1
      %2326 = vperm.xlu0 %2325, %v464
      %v2327 = vpop.permute.xlu0 %2326
      %2329 = vset.pattern.permute.xlu0 1
      %2330 = vperm.xlu0 %2329, %v465
      %v2331 = vpop.permute.xlu0 %2330
      %2333 = vset.pattern.permute.xlu0 1
      %2334 = vperm.xlu0 %2333, %v466
      %v2335 = vpop.permute.xlu0 %2334
      %2337 = vset.pattern.permute.xlu0 1
      %2338 = vperm.xlu0 %2337, %v467
      %v2339 = vpop.permute.xlu0 %2338
      %2341 = vset.pattern.permute.xlu0 1
      %2342 = vperm.xlu0 %2341, %v468
      %v2343 = vpop.permute.xlu0 %2342
      %2345 = vset.pattern.permute.xlu0 1
      %2346 = vperm.xlu0 %2345, %v469
      %v2347 = vpop.permute.xlu0 %2346
      %2349 = vset.pattern.permute.xlu0 1
      %2350 = vperm.xlu0 %2349, %v470
      %v2351 = vpop.permute.xlu0 %2350
      %2353 = vset.pattern.permute.xlu0 1
      %2354 = vperm.xlu0 %2353, %v471
      %v2355 = vpop.permute.xlu0 %2354
      %2357 = vset.pattern.permute.xlu0 1
      %2358 = vperm.xlu0 %2357, %v472
      %v2359 = vpop.permute.xlu0 %2358
      %2361 = vset.pattern.permute.xlu0 1
      %2362 = vperm.xlu0 %2361, %v473
      %v2363 = vpop.permute.xlu0 %2362
      %2365 = vset.pattern.permute.xlu0 1
      %2366 = vperm.xlu0 %2365, %v474
      %v2367 = vpop.permute.xlu0 %2366
      %2369 = vset.pattern.permute.xlu0 1
      %2370 = vperm.xlu0 %2369, %v475
      %v2371 = vpop.permute.xlu0 %2370
      %2373 = vset.pattern.permute.xlu0 1
      %2374 = vperm.xlu0 %2373, %v476
      %v2375 = vpop.permute.xlu0 %2374
      %2377 = vset.pattern.permute.xlu0 1
      %2378 = vperm.xlu0 %2377, %v477
      %v2379 = vpop.permute.xlu0 %2378
      %2381 = vset.pattern.permute.xlu0 1
      %2382 = vperm.xlu0 %2381, %v478
      %v2383 = vpop.permute.xlu0 %2382
      %2385 = vset.pattern.permute.xlu0 1
      %2386 = vperm.xlu0 %2385, %v479
      %v2387 = vpop.permute.xlu0 %2386
      %2389 = vset.pattern.permute.xlu0 1
      %2390 = vperm.xlu0 %2389, %v480
      %v2391 = vpop.permute.xlu0 %2390
      %2393 = vset.pattern.permute.xlu0 1
      %2394 = vperm.xlu0 %2393, %v481
      %v2395 = vpop.permute.xlu0 %2394
      %2397 = vset.pattern.permute.xlu0 1
      %2398 = vperm.xlu0 %2397, %v482
      %v2399 = vpop.permute.xlu0 %2398
      %2401 = vset.pattern.permute.xlu0 1
      %2402 = vperm.xlu0 %2401, %v483
      %v2403 = vpop.permute.xlu0 %2402
      %2405 = vset.pattern.permute.xlu0 1
      %2406 = vperm.xlu0 %2405, %v484
      %v2407 = vpop.permute.xlu0 %2406
      %2409 = vset.pattern.permute.xlu0 1
      %2410 = vperm.xlu0 %2409, %v485
      %v2411 = vpop.permute.xlu0 %2410
      %2413 = vset.pattern.permute.xlu0 1
      %2414 = vperm.xlu0 %2413, %v486
      %v2415 = vpop.permute.xlu0 %2414
      %2417 = vset.pattern.permute.xlu0 1
      %2418 = vperm.xlu0 %2417, %v487
      %v2419 = vpop.permute.xlu0 %2418
      %2421 = vset.pattern.permute.xlu0 1
      %2422 = vperm.xlu0 %2421, %v488
      %v2423 = vpop.permute.xlu0 %2422
      %2425 = vset.pattern.permute.xlu0 1
      %2426 = vperm.xlu0 %2425, %v489
      %v2427 = vpop.permute.xlu0 %2426
      %2429 = vset.pattern.permute.xlu0 1
      %2430 = vperm.xlu0 %2429, %v490
      %v2431 = vpop.permute.xlu0 %2430
      %2433 = vset.pattern.permute.xlu0 1
      %2434 = vperm.xlu0 %2433, %v491
      %v2435 = vpop.permute.xlu0 %2434
      %2437 = vset.pattern.permute.xlu0 1
      %2438 = vperm.xlu0 %2437, %v492
      %v2439 = vpop.permute.xlu0 %2438
      %2441 = vset.pattern.permute.xlu0 1
      %2442 = vperm.xlu0 %2441, %v493
      %v2443 = vpop.permute.xlu0 %2442
      %2445 = vset.pattern.permute.xlu0 1
      %2446 = vperm.xlu0 %2445, %v494
      %v2447 = vpop.permute.xlu0 %2446
      %2449 = vset.pattern.permute.xlu0 1
      %2450 = vperm.xlu0 %2449, %v495
      %v2451 = vpop.permute.xlu0 %2450
      %2453 = vset.pattern.permute.xlu0 1
      %2454 = vperm.xlu0 %2453, %v496
      %v2455 = vpop.permute.xlu0 %2454
      %2457 = vset.pattern.permute.xlu0 1
      %2458 = vperm.xlu0 %2457, %v497
      %v2459 = vpop.permute.xlu0 %2458
      %2461 = vset.pattern.permute.xlu0 1
      %2462 = vperm.xlu0 %2461, %v498
      %v2463 = vpop.permute.xlu0 %2462
      %2465 = vset.pattern.permute.xlu0 1
      %2466 = vperm.xlu0 %2465, %v499
      %v2467 = vpop.permute.xlu0 %2466
      %2469 = vset.pattern.permute.xlu0 1
      %2470 = vperm.xlu0 %2469, %v500
      %v2471 = vpop.permute.xlu0 %2470
      %2473 = vset.pattern.permute.xlu0 1
      %2474 = vperm.xlu0 %2473, %v501
      %v2475 = vpop.permute.xlu0 %2474
      %2477 = vset.pattern.permute.xlu0 1
      %2478 = vperm.xlu0 %2477, %v502
      %v2479 = vpop.permute.xlu0 %2478
      %2481 = vset.pattern.permute.xlu0 1
      %2482 = vperm.xlu0 %2481, %v503
      %v2483 = vpop.permute.xlu0 %2482
      %2485 = vset.pattern.permute.xlu0 1
      %2486 = vperm.xlu0 %2485, %v504
      %v2487 = vpop.permute.xlu0 %2486
      %2489 = vset.pattern.permute.xlu0 1
      %2490 = vperm.xlu0 %2489, %v505
      %v2491 = vpop.permute.xlu0 %2490
      %2493 = vset.pattern.permute.xlu0 1
      %2494 = vperm.xlu0 %2493, %v506
      %v2495 = vpop.permute.xlu0 %2494
      %2497 = vset.pattern.permute.xlu0 1
      %2498 = vperm.xlu0 %2497, %v507
      %v2499 = vpop.permute.xlu0 %2498
      %2501 = vset.pattern.permute.xlu0 1
      %2502 = vperm.xlu0 %2501, %v508
      %v2503 = vpop.permute.xlu0 %2502
      %2505 = vset.pattern.permute.xlu0 1
      %2506 = vperm.xlu0 %2505, %v509
      %v2507 = vpop.permute.xlu0 %2506
      %2509 = vset.pattern.permute.xlu0 1
      %2510 = vperm.xlu0 %2509, %v510
      %v2511 = vpop.permute.xlu0 %2510
      %2513 = vset.pattern.permute.xlu0 1
      %2514 = vperm.xlu0 %2513, %v511
      %v2515 = vpop.permute.xlu0 %2514
      %2517 = vset.pattern.permute.xlu0 1
      %2518 = vperm.xlu0 %2517, %v512
      %v2519 = vpop.permute.xlu0 %2518
      %2521 = vset.pattern.permute.xlu0 1
      %2522 = vperm.xlu0 %2521, %v513
      %v2523 = vpop.permute.xlu0 %2522
      %2525 = vset.pattern.permute.xlu0 1
      %2526 = vperm.xlu0 %2525, %v514
      %v2527 = vpop.permute.xlu0 %2526
      %2529 = vset.pattern.permute.xlu0 1
      %2530 = vperm.xlu0 %2529, %v515
      %v2531 = vpop.permute.xlu0 %2530
      %2533 = vset.pattern.permute.xlu0 1
      %2534 = vperm.xlu0 %2533, %v516
      %v2535 = vpop.permute.xlu0 %2534
      %2537 = vset.pattern.permute.xlu0 1
      %2538 = vperm.xlu0 %2537, %v517
      %v2539 = vpop.permute.xlu0 %2538
      %2541 = vset.pattern.permute.xlu0 1
      %2542 = vperm.xlu0 %2541, %v518
      %v2543 = vpop.permute.xlu0 %2542
      %2545 = vset.pattern.permute.xlu0 1
      %2546 = vperm.xlu0 %2545, %v519
      %v2547 = vpop.permute.xlu0 %2546
      %2549 = vset.pattern.permute.xlu0 1
      %2550 = vperm.xlu0 %2549, %v520
      %v2551 = vpop.permute.xlu0 %2550
      %2553 = vset.pattern.permute.xlu0 1
      %2554 = vperm.xlu0 %2553, %v521
      %v2555 = vpop.permute.xlu0 %2554
      %2557 = vset.pattern.permute.xlu0 1
      %2558 = vperm.xlu0 %2557, %v522
      %v2559 = vpop.permute.xlu0 %2558
      %2561 = vset.pattern.permute.xlu0 1
      %2562 = vperm.xlu0 %2561, %v523
      %v2563 = vpop.permute.xlu0 %2562
      %2565 = vset.pattern.permute.xlu0 1
      %2566 = vperm.xlu0 %2565, %v524
      %v2567 = vpop.permute.xlu0 %2566
      %2569 = vset.pattern.permute.xlu0 1
      %2570 = vperm.xlu0 %2569, %v525
      %v2571 = vpop.permute.xlu0 %2570
      %2573 = vset.pattern.permute.xlu0 1
      %2574 = vperm.xlu0 %2573, %v526
      %v2575 = vpop.permute.xlu0 %2574
      %2577 = vset.pattern.permute.xlu0 1
      %2578 = vperm.xlu0 %2577, %v527
      %v2579 = vpop.permute.xlu0 %2578
      %2581 = vset.pattern.permute.xlu0 1
      %2582 = vperm.xlu0 %2581, %v528
      %v2583 = vpop.permute.xlu0 %2582
      %2585 = vset.pattern.permute.xlu0 1
      %2586 = vperm.xlu0 %2585, %v529
      %v2587 = vpop.permute.xlu0 %2586
      %2589 = vset.pattern.permute.xlu0 1
      %2590 = vperm.xlu0 %2589, %v530
      %v2591 = vpop.permute.xlu0 %2590
      %2593 = vset.pattern.permute.xlu0 1
      %2594 = vperm.xlu0 %2593, %v531
      %v2595 = vpop.permute.xlu0 %2594
      %2597 = vset.pattern.permute.xlu0 1
      %2598 = vperm.xlu0 %2597, %v532
      %v2599 = vpop.permute.xlu0 %2598
      %2601 = vset.pattern.permute.xlu0 1
      %2602 = vperm.xlu0 %2601, %v533
      %v2603 = vpop.permute.xlu0 %2602
      %2605 = vset.pattern.permute.xlu0 1
      %2606 = vperm.xlu0 %2605, %v534
      %v2607 = vpop.permute.xlu0 %2606
      %2609 = vset.pattern.permute.xlu0 1
      %2610 = vperm.xlu0 %2609, %v535
      %v2611 = vpop.permute.xlu0 %2610
      %2613 = vset.pattern.permute.xlu0 1
      %2614 = vperm.xlu0 %2613, %v536
      %v2615 = vpop.permute.xlu0 %2614
      %2617 = vset.pattern.permute.xlu0 1
      %2618 = vperm.xlu0 %2617, %v537
      %v2619 = vpop.permute.xlu0 %2618
      %2621 = vset.pattern.permute.xlu0 1
      %2622 = vperm.xlu0 %2621, %v538
      %v2623 = vpop.permute.xlu0 %2622
      %2625 = vset.pattern.permute.xlu0 1
      %2626 = vperm.xlu0 %2625, %v539
      %v2627 = vpop.permute.xlu0 %2626
      %2629 = vset.pattern.permute.xlu0 1
      %2630 = vperm.xlu0 %2629, %v540
      %v2631 = vpop.permute.xlu0 %2630
      %2633 = vset.pattern.permute.xlu0 1
      %2634 = vperm.xlu0 %2633, %v541
      %v2635 = vpop.permute.xlu0 %2634
      %2637 = vset.pattern.permute.xlu0 1
      %2638 = vperm.xlu0 %2637, %v542
      %v2639 = vpop.permute.xlu0 %2638
      %2641 = vset.pattern.permute.xlu0 1
      %2642 = vperm.xlu0 %2641, %v543
      %v2643 = vpop.permute.xlu0 %2642
      %2645 = vset.pattern.permute.xlu0 1
      %2646 = vperm.xlu0 %2645, %v544
      %v2647 = vpop.permute.xlu0 %2646
      %2649 = vset.pattern.permute.xlu0 1
      %2650 = vperm.xlu0 %2649, %v545
      %v2651 = vpop.permute.xlu0 %2650
      %2653 = vset.pattern.permute.xlu0 1
      %2654 = vperm.xlu0 %2653, %v546
      %v2655 = vpop.permute.xlu0 %2654
      %2657 = vset.pattern.permute.xlu0 1
      %2658 = vperm.xlu0 %2657, %v547
      %v2659 = vpop.permute.xlu0 %2658
      %2661 = vset.pattern.permute.xlu0 1
      %2662 = vperm.xlu0 %2661, %v548
      %v2663 = vpop.permute.xlu0 %2662
      %2665 = vset.pattern.permute.xlu0 1
      %2666 = vperm.xlu0 %2665, %v549
      %v2667 = vpop.permute.xlu0 %2666
      %2669 = vset.pattern.permute.xlu0 1
      %2670 = vperm.xlu0 %2669, %v550
      %v2671 = vpop.permute.xlu0 %2670
      %2673 = vset.pattern.permute.xlu0 1
      %2674 = vperm.xlu0 %2673, %v551
      %v2675 = vpop.permute.xlu0 %2674
      %2677 = vset.pattern.permute.xlu0 1
      %2678 = vperm.xlu0 %2677, %v552
      %v2679 = vpop.permute.xlu0 %2678
      %2681 = vset.pattern.permute.xlu0 1
      %2682 = vperm.xlu0 %2681, %v553
      %v2683 = vpop.permute.xlu0 %2682
      %2685 = vset.pattern.permute.xlu0 1
      %2686 = vperm.xlu0 %2685, %v554
      %v2687 = vpop.permute.xlu0 %2686
      %2689 = vset.pattern.permute.xlu0 1
      %2690 = vperm.xlu0 %2689, %v555
      %v2691 = vpop.permute.xlu0 %2690
      %2693 = vset.pattern.permute.xlu0 1
      %2694 = vperm.xlu0 %2693, %v556
      %v2695 = vpop.permute.xlu0 %2694
      %2697 = vset.pattern.permute.xlu0 1
      %2698 = vperm.xlu0 %2697, %v557
      %v2699 = vpop.permute.xlu0 %2698
      %2701 = vset.pattern.permute.xlu0 1
      %2702 = vperm.xlu0 %2701, %v558
      %v2703 = vpop.permute.xlu0 %2702
      %2705 = vset.pattern.permute.xlu0 1
      %2706 = vperm.xlu0 %2705, %v559
      %v2707 = vpop.permute.xlu0 %2706
      %2709 = vset.pattern.permute.xlu0 1
      %2710 = vperm.xlu0 %2709, %v560
      %v2711 = vpop.permute.xlu0 %2710
      %2713 = vset.pattern.permute.xlu0 1
      %2714 = vperm.xlu0 %2713, %v561
      %v2715 = vpop.permute.xlu0 %2714
      %2717 = vset.pattern.permute.xlu0 1
      %2718 = vperm.xlu0 %2717, %v562
      %v2719 = vpop.permute.xlu0 %2718
      %2721 = vset.pattern.permute.xlu0 1
      %2722 = vperm.xlu0 %2721, %v563
      %v2723 = vpop.permute.xlu0 %2722
      %2725 = vset.pattern.permute.xlu0 1
      %2726 = vperm.xlu0 %2725, %v564
      %v2727 = vpop.permute.xlu0 %2726
      %2729 = vset.pattern.permute.xlu0 1
      %2730 = vperm.xlu0 %2729, %v565
      %v2731 = vpop.permute.xlu0 %2730
      %2733 = vset.pattern.permute.xlu0 1
      %2734 = vperm.xlu0 %2733, %v566
      %v2735 = vpop.permute.xlu0 %2734
      %2737 = vset.pattern.permute.xlu0 1
      %2738 = vperm.xlu0 %2737, %v567
      %v2739 = vpop.permute.xlu0 %2738
      %2741 = vset.pattern.permute.xlu0 1
      %2742 = vperm.xlu0 %2741, %v568
      %v2743 = vpop.permute.xlu0 %2742
      %2745 = vset.pattern.permute.xlu0 1
      %2746 = vperm.xlu0 %2745, %v569
      %v2747 = vpop.permute.xlu0 %2746
      %2749 = vset.pattern.permute.xlu0 1
      %2750 = vperm.xlu0 %2749, %v570
      %v2751 = vpop.permute.xlu0 %2750
      %2753 = vset.pattern.permute.xlu0 1
      %2754 = vperm.xlu0 %2753, %v571
      %v2755 = vpop.permute.xlu0 %2754
      %2757 = vset.pattern.permute.xlu0 1
      %2758 = vperm.xlu0 %2757, %v572
      %v2759 = vpop.permute.xlu0 %2758
      %2761 = vset.pattern.permute.xlu0 1
      %2762 = vperm.xlu0 %2761, %v573
      %v2763 = vpop.permute.xlu0 %2762
      %2765 = vset.pattern.permute.xlu0 1
      %2766 = vperm.xlu0 %2765, %v574
      %v2767 = vpop.permute.xlu0 %2766
      %2769 = vset.pattern.permute.xlu0 1
      %2770 = vperm.xlu0 %2769, %v575
      %v2771 = vpop.permute.xlu0 %2770
      %2773 = vset.pattern.permute.xlu0 1
      %2774 = vperm.xlu0 %2773, %v576
      %v2775 = vpop.permute.xlu0 %2774
      %2777 = vset.pattern.permute.xlu0 1
      %2778 = vperm.xlu0 %2777, %v577
      %v2779 = vpop.permute.xlu0 %2778
      %2781 = vset.pattern.permute.xlu0 1
      %2782 = vperm.xlu0 %2781, %v578
      %v2783 = vpop.permute.xlu0 %2782
      %2785 = vset.pattern.permute.xlu0 1
      %2786 = vperm.xlu0 %2785, %v579
      %v2787 = vpop.permute.xlu0 %2786
      %2789 = vset.pattern.permute.xlu0 1
      %2790 = vperm.xlu0 %2789, %v580
      %v2791 = vpop.permute.xlu0 %2790
      %2793 = vset.pattern.permute.xlu0 1
      %2794 = vperm.xlu0 %2793, %v581
      %v2795 = vpop.permute.xlu0 %2794
      %2797 = vset.pattern.permute.xlu0 1
      %2798 = vperm.xlu0 %2797, %v582
      %v2799 = vpop.permute.xlu0 %2798
      %2801 = vset.pattern.permute.xlu0 1
      %2802 = vperm.xlu0 %2801, %v583
      %v2803 = vpop.permute.xlu0 %2802
      %2805 = vset.pattern.permute.xlu0 1
      %2806 = vperm.xlu0 %2805, %v584
      %v2807 = vpop.permute.xlu0 %2806
      %2809 = vset.pattern.permute.xlu0 1
      %2810 = vperm.xlu0 %2809, %v585
      %v2811 = vpop.permute.xlu0 %2810
      %2813 = vset.pattern.permute.xlu0 1
      %2814 = vperm.xlu0 %2813, %v586
      %v2815 = vpop.permute.xlu0 %2814
      %2817 = vset.pattern.permute.xlu0 1
      %2818 = vperm.xlu0 %2817, %v587
      %v2819 = vpop.permute.xlu0 %2818
      %2821 = vset.pattern.permute.xlu0 1
      %2822 = vperm.xlu0 %2821, %v588
      %v2823 = vpop.permute.xlu0 %2822
      %2825 = vset.pattern.permute.xlu0 1
      %2826 = vperm.xlu0 %2825, %v589
      %v2827 = vpop.permute.xlu0 %2826
      %2829 = vset.pattern.permute.xlu0 1
      %2830 = vperm.xlu0 %2829, %v590
      %v2831 = vpop.permute.xlu0 %2830
      %2833 = vset.pattern.permute.xlu0 1
      %2834 = vperm.xlu0 %2833, %v591
      %v2835 = vpop.permute.xlu0 %2834
      %2837 = vset.pattern.permute.xlu0 1
      %2838 = vperm.xlu0 %2837, %v592
      %v2839 = vpop.permute.xlu0 %2838
      %2841 = vset.pattern.permute.xlu0 1
      %2842 = vperm.xlu0 %2841, %v593
      %v2843 = vpop.permute.xlu0 %2842
      %2845 = vset.pattern.permute.xlu0 1
      %2846 = vperm.xlu0 %2845, %v594
      %v2847 = vpop.permute.xlu0 %2846
      %2849 = vset.pattern.permute.xlu0 1
      %2850 = vperm.xlu0 %2849, %v595
      %v2851 = vpop.permute.xlu0 %2850
      %2853 = vset.pattern.permute.xlu0 1
      %2854 = vperm.xlu0 %2853, %v596
      %v2855 = vpop.permute.xlu0 %2854
      %2857 = vset.pattern.permute.xlu0 1
      %2858 = vperm.xlu0 %2857, %v597
      %v2859 = vpop.permute.xlu0 %2858
      %2861 = vset.pattern.permute.xlu0 1
      %2862 = vperm.xlu0 %2861, %v598
      %v2863 = vpop.permute.xlu0 %2862
      %2865 = vset.pattern.permute.xlu0 1
      %2866 = vperm.xlu0 %2865, %v599
      %v2867 = vpop.permute.xlu0 %2866
      %2869 = vset.pattern.permute.xlu0 1
      %2870 = vperm.xlu0 %2869, %v600
      %v2871 = vpop.permute.xlu0 %2870
      %2873 = vset.pattern.permute.xlu0 1
      %2874 = vperm.xlu0 %2873, %v601
      %v2875 = vpop.permute.xlu0 %2874
      %2877 = vset.pattern.permute.xlu0 1
      %2878 = vperm.xlu0 %2877, %v602
      %v2879 = vpop.permute.xlu0 %2878
      %2881 = vset.pattern.permute.xlu0 1
      %2882 = vperm.xlu0 %2881, %v603
      %v2883 = vpop.permute.xlu0 %2882
      %2885 = vset.pattern.permute.xlu0 1
      %2886 = vperm.xlu0 %2885, %v604
      %v2887 = vpop.permute.xlu0 %2886
      %2889 = vset.pattern.permute.xlu0 1
      %2890 = vperm.xlu0 %2889, %v605
      %v2891 = vpop.permute.xlu0 %2890
      %2893 = vset.pattern.permute.xlu0 1
      %2894 = vperm.xlu0 %2893, %v606
      %v2895 = vpop.permute.xlu0 %2894
      %2897 = vset.pattern.permute.xlu0 1
      %2898 = vperm.xlu0 %2897, %v607
      %v2899 = vpop.permute.xlu0 %2898
      %2901 = vset.pattern.permute.xlu0 1
      %2902 = vperm.xlu0 %2901, %v608
      %v2903 = vpop.permute.xlu0 %2902
      %2905 = vset.pattern.permute.xlu0 1
      %2906 = vperm.xlu0 %2905, %v609
      %v2907 = vpop.permute.xlu0 %2906
      %2909 = vset.pattern.permute.xlu0 1
      %2910 = vperm.xlu0 %2909, %v610
      %v2911 = vpop.permute.xlu0 %2910
      %2913 = vset.pattern.permute.xlu0 1
      %2914 = vperm.xlu0 %2913, %v611
      %v2915 = vpop.permute.xlu0 %2914
      %2917 = vset.pattern.permute.xlu0 1
      %2918 = vperm.xlu0 %2917, %v612
      %v2919 = vpop.permute.xlu0 %2918
      %2921 = vset.pattern.permute.xlu0 1
      %2922 = vperm.xlu0 %2921, %v613
      %v2923 = vpop.permute.xlu0 %2922
      %2925 = vset.pattern.permute.xlu0 1
      %2926 = vperm.xlu0 %2925, %v614
      %v2927 = vpop.permute.xlu0 %2926
      %2929 = vset.pattern.permute.xlu0 1
      %2930 = vperm.xlu0 %2929, %v615
      %v2931 = vpop.permute.xlu0 %2930
      %2933 = vset.pattern.permute.xlu0 1
      %2934 = vperm.xlu0 %2933, %v616
      %v2935 = vpop.permute.xlu0 %2934
      %2937 = vset.pattern.permute.xlu0 1
      %2938 = vperm.xlu0 %2937, %v617
      %v2939 = vpop.permute.xlu0 %2938
      %2941 = vset.pattern.permute.xlu0 1
      %2942 = vperm.xlu0 %2941, %v618
      %v2943 = vpop.permute.xlu0 %2942
      %2945 = vset.pattern.permute.xlu0 1
      %2946 = vperm.xlu0 %2945, %v619
      %v2947 = vpop.permute.xlu0 %2946
      %2949 = vset.pattern.permute.xlu0 1
      %2950 = vperm.xlu0 %2949, %v620
      %v2951 = vpop.permute.xlu0 %2950
      %2953 = vset.pattern.permute.xlu0 1
      %2954 = vperm.xlu0 %2953, %v621
      %v2955 = vpop.permute.xlu0 %2954
      %2957 = vset.pattern.permute.xlu0 1
      %2958 = vperm.xlu0 %2957, %v622
      %v2959 = vpop.permute.xlu0 %2958
      %2961 = vset.pattern.permute.xlu0 1
      %2962 = vperm.xlu0 %2961, %v623
      %v2963 = vpop.permute.xlu0 %2962
      %2965 = vset.pattern.permute.xlu0 1
      %2966 = vperm.xlu0 %2965, %v624
      %v2967 = vpop.permute.xlu0 %2966
      %2969 = vset.pattern.permute.xlu0 1
      %2970 = vperm.xlu0 %2969, %v625
      %v2971 = vpop.permute.xlu0 %2970
      %2973 = vset.pattern.permute.xlu0 1
      %2974 = vperm.xlu0 %2973, %v626
      %v2975 = vpop.permute.xlu0 %2974
      %2977 = vset.pattern.permute.xlu0 1
      %2978 = vperm.xlu0 %2977, %v627
      %v2979 = vpop.permute.xlu0 %2978
      %2981 = vset.pattern.permute.xlu0 1
      %2982 = vperm.xlu0 %2981, %v628
      %v2983 = vpop.permute.xlu0 %2982
      %2985 = vset.pattern.permute.xlu0 1
      %2986 = vperm.xlu0 %2985, %v629
      %v2987 = vpop.permute.xlu0 %2986
      %2989 = vset.pattern.permute.xlu0 1
      %2990 = vperm.xlu0 %2989, %v630
      %v2991 = vpop.permute.xlu0 %2990
      %2993 = vset.pattern.permute.xlu0 1
      %2994 = vperm.xlu0 %2993, %v631
      %v2995 = vpop.permute.xlu0 %2994
      %2997 = vset.pattern.permute.xlu0 1
      %2998 = vperm.xlu0 %2997, %v632
      %v2999 = vpop.permute.xlu0 %2998
      %3001 = vset.pattern.permute.xlu0 1
      %3002 = vperm.xlu0 %3001, %v633
      %v3003 = vpop.permute.xlu0 %3002
      %3005 = vset.pattern.permute.xlu0 1
      %3006 = vperm.xlu0 %3005, %v634
      %v3007 = vpop.permute.xlu0 %3006
      %3009 = vset.pattern.permute.xlu0 1
      %3010 = vperm.xlu0 %3009, %v635
      %v3011 = vpop.permute.xlu0 %3010
      %3013 = vset.pattern.permute.xlu0 1
      %3014 = vperm.xlu0 %3013, %v636
      %v3015 = vpop.permute.xlu0 %3014
      %3017 = vset.pattern.permute.xlu0 1
      %3018 = vperm.xlu0 %3017, %v637
      %v3019 = vpop.permute.xlu0 %3018
      %3021 = vset.pattern.permute.xlu0 1
      %3022 = vperm.xlu0 %3021, %v638
      %v3023 = vpop.permute.xlu0 %3022
      %3025 = vset.pattern.permute.xlu0 1
      %3026 = vperm.xlu0 %3025, %v639
      %v3027 = vpop.permute.xlu0 %3026
      %3029 = vset.pattern.permute.xlu0 1
      %3030 = vperm.xlu0 %3029, %v640
      %v3031 = vpop.permute.xlu0 %3030
      %3033 = vset.pattern.permute.xlu0 1
      %3034 = vperm.xlu0 %3033, %v641
      %v3035 = vpop.permute.xlu0 %3034
      %3037 = vset.pattern.permute.xlu0 1
      %3038 = vperm.xlu0 %3037, %v642
      %v3039 = vpop.permute.xlu0 %3038
      %3041 = vset.pattern.permute.xlu0 1
      %3042 = vperm.xlu0 %3041, %v643
      %v3043 = vpop.permute.xlu0 %3042
      %3045 = vset.pattern.permute.xlu0 1
      %3046 = vperm.xlu0 %3045, %v644
      %v3047 = vpop.permute.xlu0 %3046
      %3049 = vset.pattern.permute.xlu0 1
      %3050 = vperm.xlu0 %3049, %v645
      %v3051 = vpop.permute.xlu0 %3050
      %3053 = vset.pattern.permute.xlu0 1
      %3054 = vperm.xlu0 %3053, %v646
      %v3055 = vpop.permute.xlu0 %3054
      %3057 = vset.pattern.permute.xlu0 1
      %3058 = vperm.xlu0 %3057, %v647
      %v3059 = vpop.permute.xlu0 %3058
      %3061 = vset.pattern.permute.xlu0 1
      %3062 = vperm.xlu0 %3061, %v648
      %v3063 = vpop.permute.xlu0 %3062
      %3065 = vset.pattern.permute.xlu0 1
      %3066 = vperm.xlu0 %3065, %v649
      %v3067 = vpop.permute.xlu0 %3066
      %3069 = vset.pattern.permute.xlu0 1
      %3070 = vperm.xlu0 %3069, %v650
      %v3071 = vpop.permute.xlu0 %3070
      %3073 = vset.pattern.permute.xlu0 1
      %3074 = vperm.xlu0 %3073, %v651
      %v3075 = vpop.permute.xlu0 %3074
      %3077 = vset.pattern.permute.xlu0 1
      %3078 = vperm.xlu0 %3077, %v652
      %v3079 = vpop.permute.xlu0 %3078
      %3081 = vset.pattern.permute.xlu0 1
      %3082 = vperm.xlu0 %3081, %v653
      %v3083 = vpop.permute.xlu0 %3082
      %3085 = vset.pattern.permute.xlu0 1
      %3086 = vperm.xlu0 %3085, %v654
      %v3087 = vpop.permute.xlu0 %3086
      %3089 = vset.pattern.permute.xlu0 1
      %3090 = vperm.xlu0 %3089, %v655
      %v3091 = vpop.permute.xlu0 %3090
      %3093 = vset.pattern.permute.xlu0 1
      %3094 = vperm.xlu0 %3093, %v656
      %v3095 = vpop.permute.xlu0 %3094
      %3097 = vset.pattern.permute.xlu0 1
      %3098 = vperm.xlu0 %3097, %v657
      %v3099 = vpop.permute.xlu0 %3098
      %3101 = vset.pattern.permute.xlu0 1
      %3102 = vperm.xlu0 %3101, %v658
      %v3103 = vpop.permute.xlu0 %3102
      %3105 = vset.pattern.permute.xlu0 1
      %3106 = vperm.xlu0 %3105, %v659
      %v3107 = vpop.permute.xlu0 %3106
      %3109 = vset.pattern.permute.xlu0 1
      %3110 = vperm.xlu0 %3109, %v660
      %v3111 = vpop.permute.xlu0 %3110
      %3113 = vset.pattern.permute.xlu0 1
      %3114 = vperm.xlu0 %3113, %v661
      %v3115 = vpop.permute.xlu0 %3114
      %3117 = vset.pattern.permute.xlu0 1
      %3118 = vperm.xlu0 %3117, %v662
      %v3119 = vpop.permute.xlu0 %3118
      %3121 = vset.pattern.permute.xlu0 1
      %3122 = vperm.xlu0 %3121, %v663
      %v3123 = vpop.permute.xlu0 %3122
      %3125 = vset.pattern.permute.xlu0 1
      %3126 = vperm.xlu0 %3125, %v664
      %v3127 = vpop.permute.xlu0 %3126
      %3129 = vset.pattern.permute.xlu0 1
      %3130 = vperm.xlu0 %3129, %v665
      %v3131 = vpop.permute.xlu0 %3130
      %3133 = vset.pattern.permute.xlu0 1
      %3134 = vperm.xlu0 %3133, %v666
      %v3135 = vpop.permute.xlu0 %3134
      %3137 = vset.pattern.permute.xlu0 1
      %3138 = vperm.xlu0 %3137, %v667
      %v3139 = vpop.permute.xlu0 %3138
      %3141 = vset.pattern.permute.xlu0 1
      %3142 = vperm.xlu0 %3141, %v668
      %v3143 = vpop.permute.xlu0 %3142
      %3145 = vset.pattern.permute.xlu0 1
      %3146 = vperm.xlu0 %3145, %v669
      %v3147 = vpop.permute.xlu0 %3146
      %3149 = vset.pattern.permute.xlu0 1
      %3150 = vperm.xlu0 %3149, %v670
      %v3151 = vpop.permute.xlu0 %3150
      %3153 = vset.pattern.permute.xlu0 1
      %3154 = vperm.xlu0 %3153, %v671
      %v3155 = vpop.permute.xlu0 %3154
      %3157 = vset.pattern.permute.xlu0 1
      %3158 = vperm.xlu0 %3157, %v672
      %v3159 = vpop.permute.xlu0 %3158
      %3161 = vset.pattern.permute.xlu0 1
      %3162 = vperm.xlu0 %3161, %v673
      %v3163 = vpop.permute.xlu0 %3162
      %3165 = vset.pattern.permute.xlu0 1
      %3166 = vperm.xlu0 %3165, %v674
      %v3167 = vpop.permute.xlu0 %3166
      %3169 = vset.pattern.permute.xlu0 1
      %3170 = vperm.xlu0 %3169, %v675
      %v3171 = vpop.permute.xlu0 %3170
      %3173 = vset.pattern.permute.xlu0 1
      %3174 = vperm.xlu0 %3173, %v676
      %v3175 = vpop.permute.xlu0 %3174
      %3177 = vset.pattern.permute.xlu0 1
      %3178 = vperm.xlu0 %3177, %v677
      %v3179 = vpop.permute.xlu0 %3178
      %3181 = vset.pattern.permute.xlu0 1
      %3182 = vperm.xlu0 %3181, %v678
      %v3183 = vpop.permute.xlu0 %3182
      %3185 = vset.pattern.permute.xlu0 1
      %3186 = vperm.xlu0 %3185, %v679
      %v3187 = vpop.permute.xlu0 %3186
      %3189 = vset.pattern.permute.xlu0 1
      %3190 = vperm.xlu0 %3189, %v680
      %v3191 = vpop.permute.xlu0 %3190
      %3193 = vset.pattern.permute.xlu0 1
      %3194 = vperm.xlu0 %3193, %v681
      %v3195 = vpop.permute.xlu0 %3194
      %3197 = vset.pattern.permute.xlu0 1
      %3198 = vperm.xlu0 %3197, %v682
      %v3199 = vpop.permute.xlu0 %3198
      %3201 = vset.pattern.permute.xlu0 1
      %3202 = vperm.xlu0 %3201, %v683
      %v3203 = vpop.permute.xlu0 %3202
      %3205 = vset.pattern.permute.xlu0 1
      %3206 = vperm.xlu0 %3205, %v684
      %v3207 = vpop.permute.xlu0 %3206
      %3209 = vset.pattern.permute.xlu0 1
      %3210 = vperm.xlu0 %3209, %v685
      %v3211 = vpop.permute.xlu0 %3210
      %3213 = vset.pattern.permute.xlu0 1
      %3214 = vperm.xlu0 %3213, %v686
      %v3215 = vpop.permute.xlu0 %3214
      %3217 = vset.pattern.permute.xlu0 1
      %3218 = vperm.xlu0 %3217, %v687
      %v3219 = vpop.permute.xlu0 %3218
      %3221 = vset.pattern.permute.xlu0 1
      %3222 = vperm.xlu0 %3221, %v688
      %v3223 = vpop.permute.xlu0 %3222
      %3225 = vset.pattern.permute.xlu0 1
      %3226 = vperm.xlu0 %3225, %v689
      %v3227 = vpop.permute.xlu0 %3226
      %3229 = vset.pattern.permute.xlu0 1
      %3230 = vperm.xlu0 %3229, %v690
      %v3231 = vpop.permute.xlu0 %3230
      %3233 = vset.pattern.permute.xlu0 1
      %3234 = vperm.xlu0 %3233, %v691
      %v3235 = vpop.permute.xlu0 %3234
      %3237 = vset.pattern.permute.xlu0 1
      %3238 = vperm.xlu0 %3237, %v692
      %v3239 = vpop.permute.xlu0 %3238
      %3241 = vset.pattern.permute.xlu0 1
      %3242 = vperm.xlu0 %3241, %v693
      %v3243 = vpop.permute.xlu0 %3242
      %3245 = vset.pattern.permute.xlu0 1
      %3246 = vperm.xlu0 %3245, %v694
      %v3247 = vpop.permute.xlu0 %3246
      %3249 = vset.pattern.permute.xlu0 1
      %3250 = vperm.xlu0 %3249, %v695
      %v3251 = vpop.permute.xlu0 %3250
      %3253 = vset.pattern.permute.xlu0 1
      %3254 = vperm.xlu0 %3253, %v696
      %v3255 = vpop.permute.xlu0 %3254
      %3257 = vset.pattern.permute.xlu0 1
      %3258 = vperm.xlu0 %3257, %v697
      %v3259 = vpop.permute.xlu0 %3258
      %3261 = vset.pattern.permute.xlu0 1
      %3262 = vperm.xlu0 %3261, %v698
      %v3263 = vpop.permute.xlu0 %3262
      %v3265 = vlaneseq
      %v3266 = vshrl.u32 %v3265, 7
      %v3267 = vsub.s32 1, %v3266
      %v3268 = vrot.slane %v700, %v3267
      %v3269 = vmul.f32 %v2243, %v3268
      %v3270 = vmul.f32 %v2247, %v3268
      %v3271 = vmul.f32 %v2251, %v3268
      %v3272 = vmul.f32 %v2255, %v3268
      %v3273 = vmul.f32 %v2259, %v3268
      %v3274 = vmul.f32 %v2263, %v3268
      %v3275 = vmul.f32 %v2267, %v3268
      %v3276 = vmul.f32 %v2271, %v3268
      %v3277 = vmul.f32 %v2275, %v3268
      %v3278 = vmul.f32 %v2279, %v3268
      %v3279 = vmul.f32 %v2283, %v3268
      %v3280 = vmul.f32 %v2287, %v3268
      %v3281 = vmul.f32 %v2291, %v3268
      %v3282 = vmul.f32 %v2295, %v3268
      %v3283 = vmul.f32 %v2299, %v3268
      %v3284 = vmul.f32 %v2303, %v3268
      %v3285 = vmul.f32 %v2307, %v3268
      %v3286 = vmul.f32 %v2311, %v3268
      %v3287 = vmul.f32 %v2315, %v3268
      %v3288 = vmul.f32 %v2319, %v3268
      %v3289 = vmul.f32 %v2323, %v3268
      %v3290 = vmul.f32 %v2327, %v3268
      %v3291 = vmul.f32 %v2331, %v3268
      %v3292 = vmul.f32 %v2335, %v3268
      %v3293 = vmul.f32 %v2339, %v3268
      %v3294 = vmul.f32 %v2343, %v3268
      %v3295 = vmul.f32 %v2347, %v3268
      %v3296 = vmul.f32 %v2351, %v3268
      %v3297 = vmul.f32 %v2355, %v3268
      %v3298 = vmul.f32 %v2359, %v3268
      %v3299 = vmul.f32 %v2363, %v3268
      %v3300 = vmul.f32 %v2367, %v3268
      %v3301 = vmul.f32 %v2371, %v3268
      %v3302 = vmul.f32 %v2375, %v3268
      %v3303 = vmul.f32 %v2379, %v3268
      %v3304 = vmul.f32 %v2383, %v3268
      %v3305 = vmul.f32 %v2387, %v3268
      %v3306 = vmul.f32 %v2391, %v3268
      %v3307 = vmul.f32 %v2395, %v3268
      %v3308 = vmul.f32 %v2399, %v3268
      %v3309 = vmul.f32 %v2403, %v3268
      %v3310 = vmul.f32 %v2407, %v3268
      %v3311 = vmul.f32 %v2411, %v3268
      %v3312 = vmul.f32 %v2415, %v3268
      %v3313 = vmul.f32 %v2419, %v3268
      %v3314 = vmul.f32 %v2423, %v3268
      %v3315 = vmul.f32 %v2427, %v3268
      %v3316 = vmul.f32 %v2431, %v3268
      %v3317 = vmul.f32 %v2435, %v3268
      %v3318 = vmul.f32 %v2439, %v3268
      %v3319 = vmul.f32 %v2443, %v3268
      %v3320 = vmul.f32 %v2447, %v3268
      %v3321 = vmul.f32 %v2451, %v3268
      %v3322 = vmul.f32 %v2455, %v3268
      %v3323 = vmul.f32 %v2459, %v3268
      %v3324 = vmul.f32 %v2463, %v3268
      %v3325 = vmul.f32 %v2467, %v3268
      %v3326 = vmul.f32 %v2471, %v3268
      %v3327 = vmul.f32 %v2475, %v3268
      %v3328 = vmul.f32 %v2479, %v3268
      %v3329 = vmul.f32 %v2483, %v3268
      %v3330 = vmul.f32 %v2487, %v3268
      %v3331 = vmul.f32 %v2491, %v3268
      %v3332 = vmul.f32 %v2495, %v3268
      %v3333 = vmul.f32 %v2499, %v3268
      %v3334 = vmul.f32 %v2503, %v3268
      %v3335 = vmul.f32 %v2507, %v3268
      %v3336 = vmul.f32 %v2511, %v3268
      %v3337 = vmul.f32 %v2515, %v3268
      %v3338 = vmul.f32 %v2519, %v3268
      %v3339 = vmul.f32 %v2523, %v3268
      %v3340 = vmul.f32 %v2527, %v3268
      %v3341 = vmul.f32 %v2531, %v3268
      %v3342 = vmul.f32 %v2535, %v3268
      %v3343 = vmul.f32 %v2539, %v3268
      %v3344 = vmul.f32 %v2543, %v3268
      %v3345 = vmul.f32 %v2547, %v3268
      %v3346 = vmul.f32 %v2551, %v3268
      %v3347 = vmul.f32 %v2555, %v3268
      %v3348 = vmul.f32 %v2559, %v3268
      %v3349 = vmul.f32 %v2563, %v3268
      %v3350 = vmul.f32 %v2567, %v3268
      %v3351 = vmul.f32 %v2571, %v3268
      %v3352 = vmul.f32 %v2575, %v3268
      %v3353 = vmul.f32 %v2579, %v3268
      %v3354 = vmul.f32 %v2583, %v3268
      %v3355 = vmul.f32 %v2587, %v3268
      %v3356 = vmul.f32 %v2591, %v3268
      %v3357 = vmul.f32 %v2595, %v3268
      %v3358 = vmul.f32 %v2599, %v3268
      %v3359 = vmul.f32 %v2603, %v3268
      %v3360 = vmul.f32 %v2607, %v3268
      %v3361 = vmul.f32 %v2611, %v3268
      %v3362 = vmul.f32 %v2615, %v3268
      %v3363 = vmul.f32 %v2619, %v3268
      %v3364 = vmul.f32 %v2623, %v3268
      %v3365 = vmul.f32 %v2627, %v3268
      %v3366 = vmul.f32 %v2631, %v3268
      %v3367 = vmul.f32 %v2635, %v3268
      %v3368 = vmul.f32 %v2639, %v3268
      %v3369 = vmul.f32 %v2643, %v3268
      %v3370 = vmul.f32 %v2647, %v3268
      %v3371 = vmul.f32 %v2651, %v3268
      %v3372 = vmul.f32 %v2655, %v3268
      %v3373 = vmul.f32 %v2659, %v3268
      %v3374 = vmul.f32 %v2663, %v3268
      %v3375 = vmul.f32 %v2667, %v3268
      %v3376 = vmul.f32 %v2671, %v3268
      %v3377 = vmul.f32 %v2675, %v3268
      %v3378 = vmul.f32 %v2679, %v3268
      %v3379 = vmul.f32 %v2683, %v3268
      %v3380 = vmul.f32 %v2687, %v3268
      %v3381 = vmul.f32 %v2691, %v3268
      %v3382 = vmul.f32 %v2695, %v3268
      %v3383 = vmul.f32 %v2699, %v3268
      %v3384 = vmul.f32 %v2703, %v3268
      %v3385 = vmul.f32 %v2707, %v3268
      %v3386 = vmul.f32 %v2711, %v3268
      %v3387 = vmul.f32 %v2715, %v3268
      %v3388 = vmul.f32 %v2719, %v3268
      %v3389 = vmul.f32 %v2723, %v3268
      %v3390 = vmul.f32 %v2727, %v3268
      %v3391 = vmul.f32 %v2731, %v3268
      %v3392 = vmul.f32 %v2735, %v3268
      %v3393 = vmul.f32 %v2739, %v3268
      %v3394 = vmul.f32 %v2743, %v3268
      %v3395 = vmul.f32 %v2747, %v3268
      %v3396 = vmul.f32 %v2751, %v3268
      %v3397 = vmul.f32 %v2755, %v3268
      %v3398 = vmul.f32 %v2759, %v3268
      %v3399 = vmul.f32 %v2763, %v3268
      %v3400 = vmul.f32 %v2767, %v3268
      %v3401 = vmul.f32 %v2771, %v3268
      %v3402 = vmul.f32 %v2775, %v3268
      %v3403 = vmul.f32 %v2779, %v3268
      %v3404 = vmul.f32 %v2783, %v3268
      %v3405 = vmul.f32 %v2787, %v3268
      %v3406 = vmul.f32 %v2791, %v3268
      %v3407 = vmul.f32 %v2795, %v3268
      %v3408 = vmul.f32 %v2799, %v3268
      %v3409 = vmul.f32 %v2803, %v3268
      %v3410 = vmul.f32 %v2807, %v3268
      %v3411 = vmul.f32 %v2811, %v3268
      %v3412 = vmul.f32 %v2815, %v3268
      %v3413 = vmul.f32 %v2819, %v3268
      %v3414 = vmul.f32 %v2823, %v3268
      %v3415 = vmul.f32 %v2827, %v3268
      %v3416 = vmul.f32 %v2831, %v3268
      %v3417 = vmul.f32 %v2835, %v3268
      %v3418 = vmul.f32 %v2839, %v3268
      %v3419 = vmul.f32 %v2843, %v3268
      %v3420 = vmul.f32 %v2847, %v3268
      %v3421 = vmul.f32 %v2851, %v3268
      %v3422 = vmul.f32 %v2855, %v3268
      %v3423 = vmul.f32 %v2859, %v3268
      %v3424 = vmul.f32 %v2863, %v3268
      %v3425 = vmul.f32 %v2867, %v3268
      %v3426 = vmul.f32 %v2871, %v3268
      %v3427 = vmul.f32 %v2875, %v3268
      %v3428 = vmul.f32 %v2879, %v3268
      %v3429 = vmul.f32 %v2883, %v3268
      %v3430 = vmul.f32 %v2887, %v3268
      %v3431 = vmul.f32 %v2891, %v3268
      %v3432 = vmul.f32 %v2895, %v3268
      %v3433 = vmul.f32 %v2899, %v3268
      %v3434 = vmul.f32 %v2903, %v3268
      %v3435 = vmul.f32 %v2907, %v3268
      %v3436 = vmul.f32 %v2911, %v3268
      %v3437 = vmul.f32 %v2915, %v3268
      %v3438 = vmul.f32 %v2919, %v3268
      %v3439 = vmul.f32 %v2923, %v3268
      %v3440 = vmul.f32 %v2927, %v3268
      %v3441 = vmul.f32 %v2931, %v3268
      %v3442 = vmul.f32 %v2935, %v3268
      %v3443 = vmul.f32 %v2939, %v3268
      %v3444 = vmul.f32 %v2943, %v3268
      %v3445 = vmul.f32 %v2947, %v3268
      %v3446 = vmul.f32 %v2951, %v3268
      %v3447 = vmul.f32 %v2955, %v3268
      %v3448 = vmul.f32 %v2959, %v3268
      %v3449 = vmul.f32 %v2963, %v3268
      %v3450 = vmul.f32 %v2967, %v3268
      %v3451 = vmul.f32 %v2971, %v3268
      %v3452 = vmul.f32 %v2975, %v3268
      %v3453 = vmul.f32 %v2979, %v3268
      %v3454 = vmul.f32 %v2983, %v3268
      %v3455 = vmul.f32 %v2987, %v3268
      %v3456 = vmul.f32 %v2991, %v3268
      %v3457 = vmul.f32 %v2995, %v3268
      %v3458 = vmul.f32 %v2999, %v3268
      %v3459 = vmul.f32 %v3003, %v3268
      %v3460 = vmul.f32 %v3007, %v3268
      %v3461 = vmul.f32 %v3011, %v3268
      %v3462 = vmul.f32 %v3015, %v3268
      %v3463 = vmul.f32 %v3019, %v3268
      %v3464 = vmul.f32 %v3023, %v3268
      %v3465 = vmul.f32 %v3027, %v3268
      %v3466 = vmul.f32 %v3031, %v3268
      %v3467 = vmul.f32 %v3035, %v3268
      %v3468 = vmul.f32 %v3039, %v3268
      %v3469 = vmul.f32 %v3043, %v3268
      %v3470 = vmul.f32 %v3047, %v3268
      %v3471 = vmul.f32 %v3051, %v3268
      %v3472 = vmul.f32 %v3055, %v3268
      %v3473 = vmul.f32 %v3059, %v3268
      %v3474 = vmul.f32 %v3063, %v3268
      %v3475 = vmul.f32 %v3067, %v3268
      %v3476 = vmul.f32 %v3071, %v3268
      %v3477 = vmul.f32 %v3075, %v3268
      %v3478 = vmul.f32 %v3079, %v3268
      %v3479 = vmul.f32 %v3083, %v3268
      %v3480 = vmul.f32 %v3087, %v3268
      %v3481 = vmul.f32 %v3091, %v3268
      %v3482 = vmul.f32 %v3095, %v3268
      %v3483 = vmul.f32 %v3099, %v3268
      %v3484 = vmul.f32 %v3103, %v3268
      %v3485 = vmul.f32 %v3107, %v3268
      %v3486 = vmul.f32 %v3111, %v3268
      %v3487 = vmul.f32 %v3115, %v3268
      %v3488 = vmul.f32 %v3119, %v3268
      %v3489 = vmul.f32 %v3123, %v3268
      %v3490 = vmul.f32 %v3127, %v3268
      %v3491 = vmul.f32 %v3131, %v3268
      %v3492 = vmul.f32 %v3135, %v3268
      %v3493 = vmul.f32 %v3139, %v3268
      %v3494 = vmul.f32 %v3143, %v3268
      %v3495 = vmul.f32 %v3147, %v3268
      %v3496 = vmul.f32 %v3151, %v3268
      %v3497 = vmul.f32 %v3155, %v3268
      %v3498 = vmul.f32 %v3159, %v3268
      %v3499 = vmul.f32 %v3163, %v3268
      %v3500 = vmul.f32 %v3167, %v3268
      %v3501 = vmul.f32 %v3171, %v3268
      %v3502 = vmul.f32 %v3175, %v3268
      %v3503 = vmul.f32 %v3179, %v3268
      %v3504 = vmul.f32 %v3183, %v3268
      %v3505 = vmul.f32 %v3187, %v3268
      %v3506 = vmul.f32 %v3191, %v3268
      %v3507 = vmul.f32 %v3195, %v3268
      %v3508 = vmul.f32 %v3199, %v3268
      %v3509 = vmul.f32 %v3203, %v3268
      %v3510 = vmul.f32 %v3207, %v3268
      %v3511 = vmul.f32 %v3211, %v3268
      %v3512 = vmul.f32 %v3215, %v3268
      %v3513 = vmul.f32 %v3219, %v3268
      %v3514 = vmul.f32 %v3223, %v3268
      %v3515 = vmul.f32 %v3227, %v3268
      %v3516 = vmul.f32 %v3231, %v3268
      %v3517 = vmul.f32 %v3235, %v3268
      %v3518 = vmul.f32 %v3239, %v3268
      %v3519 = vmul.f32 %v3243, %v3268
      %v3520 = vmul.f32 %v3247, %v3268
      %v3521 = vmul.f32 %v3251, %v3268
      %v3522 = vmul.f32 %v3255, %v3268
      %v3523 = vmul.f32 %v3259, %v3268
      %v3524 = vmul.f32 %v3263, %v3268
      %v3525 = vadd.f32 %v1985, %v3269
      %v3526 = vadd.f32 %v1986, %v3270
      %v3527 = vadd.f32 %v1987, %v3271
      %v3528 = vadd.f32 %v1988, %v3272
      %v3529 = vadd.f32 %v1989, %v3273
      %v3530 = vadd.f32 %v1990, %v3274
      %v3531 = vadd.f32 %v1991, %v3275
      %v3532 = vadd.f32 %v1992, %v3276
      %v3533 = vadd.f32 %v1993, %v3277
      %v3534 = vadd.f32 %v1994, %v3278
      %v3535 = vadd.f32 %v1995, %v3279
      %v3536 = vadd.f32 %v1996, %v3280
      %v3537 = vadd.f32 %v1997, %v3281
      %v3538 = vadd.f32 %v1998, %v3282
      %v3539 = vadd.f32 %v1999, %v3283
      %v3540 = vadd.f32 %v2000, %v3284
      %v3541 = vadd.f32 %v2001, %v3285
      %v3542 = vadd.f32 %v2002, %v3286
      %v3543 = vadd.f32 %v2003, %v3287
      %v3544 = vadd.f32 %v2004, %v3288
      %v3545 = vadd.f32 %v2005, %v3289
      %v3546 = vadd.f32 %v2006, %v3290
      %v3547 = vadd.f32 %v2007, %v3291
      %v3548 = vadd.f32 %v2008, %v3292
      %v3549 = vadd.f32 %v2009, %v3293
      %v3550 = vadd.f32 %v2010, %v3294
      %v3551 = vadd.f32 %v2011, %v3295
      %v3552 = vadd.f32 %v2012, %v3296
      %v3553 = vadd.f32 %v2013, %v3297
      %v3554 = vadd.f32 %v2014, %v3298
      %v3555 = vadd.f32 %v2015, %v3299
      %v3556 = vadd.f32 %v2016, %v3300
      %v3557 = vadd.f32 %v2017, %v3301
      %v3558 = vadd.f32 %v2018, %v3302
      %v3559 = vadd.f32 %v2019, %v3303
      %v3560 = vadd.f32 %v2020, %v3304
      %v3561 = vadd.f32 %v2021, %v3305
      %v3562 = vadd.f32 %v2022, %v3306
      %v3563 = vadd.f32 %v2023, %v3307
      %v3564 = vadd.f32 %v2024, %v3308
      %v3565 = vadd.f32 %v2025, %v3309
      %v3566 = vadd.f32 %v2026, %v3310
      %v3567 = vadd.f32 %v2027, %v3311
      %v3568 = vadd.f32 %v2028, %v3312
      %v3569 = vadd.f32 %v2029, %v3313
      %v3570 = vadd.f32 %v2030, %v3314
      %v3571 = vadd.f32 %v2031, %v3315
      %v3572 = vadd.f32 %v2032, %v3316
      %v3573 = vadd.f32 %v2033, %v3317
      %v3574 = vadd.f32 %v2034, %v3318
      %v3575 = vadd.f32 %v2035, %v3319
      %v3576 = vadd.f32 %v2036, %v3320
      %v3577 = vadd.f32 %v2037, %v3321
      %v3578 = vadd.f32 %v2038, %v3322
      %v3579 = vadd.f32 %v2039, %v3323
      %v3580 = vadd.f32 %v2040, %v3324
      %v3581 = vadd.f32 %v2041, %v3325
      %v3582 = vadd.f32 %v2042, %v3326
      %v3583 = vadd.f32 %v2043, %v3327
      %v3584 = vadd.f32 %v2044, %v3328
      %v3585 = vadd.f32 %v2045, %v3329
      %v3586 = vadd.f32 %v2046, %v3330
      %v3587 = vadd.f32 %v2047, %v3331
      %v3588 = vadd.f32 %v2048, %v3332
      %v3589 = vadd.f32 %v2049, %v3333
      %v3590 = vadd.f32 %v2050, %v3334
      %v3591 = vadd.f32 %v2051, %v3335
      %v3592 = vadd.f32 %v2052, %v3336
      %v3593 = vadd.f32 %v2053, %v3337
      %v3594 = vadd.f32 %v2054, %v3338
      %v3595 = vadd.f32 %v2055, %v3339
      %v3596 = vadd.f32 %v2056, %v3340
      %v3597 = vadd.f32 %v2057, %v3341
      %v3598 = vadd.f32 %v2058, %v3342
      %v3599 = vadd.f32 %v2059, %v3343
      %v3600 = vadd.f32 %v2060, %v3344
      %v3601 = vadd.f32 %v2061, %v3345
      %v3602 = vadd.f32 %v2062, %v3346
      %v3603 = vadd.f32 %v2063, %v3347
      %v3604 = vadd.f32 %v2064, %v3348
      %v3605 = vadd.f32 %v2065, %v3349
      %v3606 = vadd.f32 %v2066, %v3350
      %v3607 = vadd.f32 %v2067, %v3351
      %v3608 = vadd.f32 %v2068, %v3352
      %v3609 = vadd.f32 %v2069, %v3353
      %v3610 = vadd.f32 %v2070, %v3354
      %v3611 = vadd.f32 %v2071, %v3355
      %v3612 = vadd.f32 %v2072, %v3356
      %v3613 = vadd.f32 %v2073, %v3357
      %v3614 = vadd.f32 %v2074, %v3358
      %v3615 = vadd.f32 %v2075, %v3359
      %v3616 = vadd.f32 %v2076, %v3360
      %v3617 = vadd.f32 %v2077, %v3361
      %v3618 = vadd.f32 %v2078, %v3362
      %v3619 = vadd.f32 %v2079, %v3363
      %v3620 = vadd.f32 %v2080, %v3364
      %v3621 = vadd.f32 %v2081, %v3365
      %v3622 = vadd.f32 %v2082, %v3366
      %v3623 = vadd.f32 %v2083, %v3367
      %v3624 = vadd.f32 %v2084, %v3368
      %v3625 = vadd.f32 %v2085, %v3369
      %v3626 = vadd.f32 %v2086, %v3370
      %v3627 = vadd.f32 %v2087, %v3371
      %v3628 = vadd.f32 %v2088, %v3372
      %v3629 = vadd.f32 %v2089, %v3373
      %v3630 = vadd.f32 %v2090, %v3374
      %v3631 = vadd.f32 %v2091, %v3375
      %v3632 = vadd.f32 %v2092, %v3376
      %v3633 = vadd.f32 %v2093, %v3377
      %v3634 = vadd.f32 %v2094, %v3378
      %v3635 = vadd.f32 %v2095, %v3379
      %v3636 = vadd.f32 %v2096, %v3380
      %v3637 = vadd.f32 %v2097, %v3381
      %v3638 = vadd.f32 %v2098, %v3382
      %v3639 = vadd.f32 %v2099, %v3383
      %v3640 = vadd.f32 %v2100, %v3384
      %v3641 = vadd.f32 %v2101, %v3385
      %v3642 = vadd.f32 %v2102, %v3386
      %v3643 = vadd.f32 %v2103, %v3387
      %v3644 = vadd.f32 %v2104, %v3388
      %v3645 = vadd.f32 %v2105, %v3389
      %v3646 = vadd.f32 %v2106, %v3390
      %v3647 = vadd.f32 %v2107, %v3391
      %v3648 = vadd.f32 %v2108, %v3392
      %v3649 = vadd.f32 %v2109, %v3393
      %v3650 = vadd.f32 %v2110, %v3394
      %v3651 = vadd.f32 %v2111, %v3395
      %v3652 = vadd.f32 %v2112, %v3396
      %v3653 = vadd.f32 %v2113, %v3397
      %v3654 = vadd.f32 %v2114, %v3398
      %v3655 = vadd.f32 %v2115, %v3399
      %v3656 = vadd.f32 %v2116, %v3400
      %v3657 = vadd.f32 %v2117, %v3401
      %v3658 = vadd.f32 %v2118, %v3402
      %v3659 = vadd.f32 %v2119, %v3403
      %v3660 = vadd.f32 %v2120, %v3404
      %v3661 = vadd.f32 %v2121, %v3405
      %v3662 = vadd.f32 %v2122, %v3406
      %v3663 = vadd.f32 %v2123, %v3407
      %v3664 = vadd.f32 %v2124, %v3408
      %v3665 = vadd.f32 %v2125, %v3409
      %v3666 = vadd.f32 %v2126, %v3410
      %v3667 = vadd.f32 %v2127, %v3411
      %v3668 = vadd.f32 %v2128, %v3412
      %v3669 = vadd.f32 %v2129, %v3413
      %v3670 = vadd.f32 %v2130, %v3414
      %v3671 = vadd.f32 %v2131, %v3415
      %v3672 = vadd.f32 %v2132, %v3416
      %v3673 = vadd.f32 %v2133, %v3417
      %v3674 = vadd.f32 %v2134, %v3418
      %v3675 = vadd.f32 %v2135, %v3419
      %v3676 = vadd.f32 %v2136, %v3420
      %v3677 = vadd.f32 %v2137, %v3421
      %v3678 = vadd.f32 %v2138, %v3422
      %v3679 = vadd.f32 %v2139, %v3423
      %v3680 = vadd.f32 %v2140, %v3424
      %v3681 = vadd.f32 %v2141, %v3425
      %v3682 = vadd.f32 %v2142, %v3426
      %v3683 = vadd.f32 %v2143, %v3427
      %v3684 = vadd.f32 %v2144, %v3428
      %v3685 = vadd.f32 %v2145, %v3429
      %v3686 = vadd.f32 %v2146, %v3430
      %v3687 = vadd.f32 %v2147, %v3431
      %v3688 = vadd.f32 %v2148, %v3432
      %v3689 = vadd.f32 %v2149, %v3433
      %v3690 = vadd.f32 %v2150, %v3434
      %v3691 = vadd.f32 %v2151, %v3435
      %v3692 = vadd.f32 %v2152, %v3436
      %v3693 = vadd.f32 %v2153, %v3437
      %v3694 = vadd.f32 %v2154, %v3438
      %v3695 = vadd.f32 %v2155, %v3439
      %v3696 = vadd.f32 %v2156, %v3440
      %v3697 = vadd.f32 %v2157, %v3441
      %v3698 = vadd.f32 %v2158, %v3442
      %v3699 = vadd.f32 %v2159, %v3443
      %v3700 = vadd.f32 %v2160, %v3444
      %v3701 = vadd.f32 %v2161, %v3445
      %v3702 = vadd.f32 %v2162, %v3446
      %v3703 = vadd.f32 %v2163, %v3447
      %v3704 = vadd.f32 %v2164, %v3448
      %v3705 = vadd.f32 %v2165, %v3449
      %v3706 = vadd.f32 %v2166, %v3450
      %v3707 = vadd.f32 %v2167, %v3451
      %v3708 = vadd.f32 %v2168, %v3452
      %v3709 = vadd.f32 %v2169, %v3453
      %v3710 = vadd.f32 %v2170, %v3454
      %v3711 = vadd.f32 %v2171, %v3455
      %v3712 = vadd.f32 %v2172, %v3456
      %v3713 = vadd.f32 %v2173, %v3457
      %v3714 = vadd.f32 %v2174, %v3458
      %v3715 = vadd.f32 %v2175, %v3459
      %v3716 = vadd.f32 %v2176, %v3460
      %v3717 = vadd.f32 %v2177, %v3461
      %v3718 = vadd.f32 %v2178, %v3462
      %v3719 = vadd.f32 %v2179, %v3463
      %v3720 = vadd.f32 %v2180, %v3464
      %v3721 = vadd.f32 %v2181, %v3465
      %v3722 = vadd.f32 %v2182, %v3466
      %v3723 = vadd.f32 %v2183, %v3467
      %v3724 = vadd.f32 %v2184, %v3468
      %v3725 = vadd.f32 %v2185, %v3469
      %v3726 = vadd.f32 %v2186, %v3470
      %v3727 = vadd.f32 %v2187, %v3471
      %v3728 = vadd.f32 %v2188, %v3472
      %v3729 = vadd.f32 %v2189, %v3473
      %v3730 = vadd.f32 %v2190, %v3474
      %v3731 = vadd.f32 %v2191, %v3475
      %v3732 = vadd.f32 %v2192, %v3476
      %v3733 = vadd.f32 %v2193, %v3477
      %v3734 = vadd.f32 %v2194, %v3478
      %v3735 = vadd.f32 %v2195, %v3479
      %v3736 = vadd.f32 %v2196, %v3480
      %v3737 = vadd.f32 %v2197, %v3481
      %v3738 = vadd.f32 %v2198, %v3482
      %v3739 = vadd.f32 %v2199, %v3483
      %v3740 = vadd.f32 %v2200, %v3484
      %v3741 = vadd.f32 %v2201, %v3485
      %v3742 = vadd.f32 %v2202, %v3486
      %v3743 = vadd.f32 %v2203, %v3487
      %v3744 = vadd.f32 %v2204, %v3488
      %v3745 = vadd.f32 %v2205, %v3489
      %v3746 = vadd.f32 %v2206, %v3490
      %v3747 = vadd.f32 %v2207, %v3491
      %v3748 = vadd.f32 %v2208, %v3492
      %v3749 = vadd.f32 %v2209, %v3493
      %v3750 = vadd.f32 %v2210, %v3494
      %v3751 = vadd.f32 %v2211, %v3495
      %v3752 = vadd.f32 %v2212, %v3496
      %v3753 = vadd.f32 %v2213, %v3497
      %v3754 = vadd.f32 %v2214, %v3498
      %v3755 = vadd.f32 %v2215, %v3499
      %v3756 = vadd.f32 %v2216, %v3500
      %v3757 = vadd.f32 %v2217, %v3501
      %v3758 = vadd.f32 %v2218, %v3502
      %v3759 = vadd.f32 %v2219, %v3503
      %v3760 = vadd.f32 %v2220, %v3504
      %v3761 = vadd.f32 %v2221, %v3505
      %v3762 = vadd.f32 %v2222, %v3506
      %v3763 = vadd.f32 %v2223, %v3507
      %v3764 = vadd.f32 %v2224, %v3508
      %v3765 = vadd.f32 %v2225, %v3509
      %v3766 = vadd.f32 %v2226, %v3510
      %v3767 = vadd.f32 %v2227, %v3511
      %v3768 = vadd.f32 %v2228, %v3512
      %v3769 = vadd.f32 %v2229, %v3513
      %v3770 = vadd.f32 %v2230, %v3514
      %v3771 = vadd.f32 %v2231, %v3515
      %v3772 = vadd.f32 %v2232, %v3516
      %v3773 = vadd.f32 %v2233, %v3517
      %v3774 = vadd.f32 %v2234, %v3518
      %v3775 = vadd.f32 %v2235, %v3519
      %v3776 = vadd.f32 %v2236, %v3520
      %v3777 = vadd.f32 %v2237, %v3521
      %v3778 = vadd.f32 %v2238, %v3522
      %v3779 = vadd.f32 %v2239, %v3523
      %v3780 = vadd.f32 %v2240, %v3524
      %3781 = vset.pattern.permute.xlu0 2
      %3782 = vperm.xlu0 %3781, %v443
      %v3783 = vpop.permute.xlu0 %3782
      %3785 = vset.pattern.permute.xlu0 2
      %3786 = vperm.xlu0 %3785, %v444
      %v3787 = vpop.permute.xlu0 %3786
      %3789 = vset.pattern.permute.xlu0 2
      %3790 = vperm.xlu0 %3789, %v445
      %v3791 = vpop.permute.xlu0 %3790
      %3793 = vset.pattern.permute.xlu0 2
      %3794 = vperm.xlu0 %3793, %v446
      %v3795 = vpop.permute.xlu0 %3794
      %3797 = vset.pattern.permute.xlu0 2
      %3798 = vperm.xlu0 %3797, %v447
      %v3799 = vpop.permute.xlu0 %3798
      %3801 = vset.pattern.permute.xlu0 2
      %3802 = vperm.xlu0 %3801, %v448
      %v3803 = vpop.permute.xlu0 %3802
      %3805 = vset.pattern.permute.xlu0 2
      %3806 = vperm.xlu0 %3805, %v449
      %v3807 = vpop.permute.xlu0 %3806
      %3809 = vset.pattern.permute.xlu0 2
      %3810 = vperm.xlu0 %3809, %v450
      %v3811 = vpop.permute.xlu0 %3810
      %3813 = vset.pattern.permute.xlu0 2
      %3814 = vperm.xlu0 %3813, %v451
      %v3815 = vpop.permute.xlu0 %3814
      %3817 = vset.pattern.permute.xlu0 2
      %3818 = vperm.xlu0 %3817, %v452
      %v3819 = vpop.permute.xlu0 %3818
      %3821 = vset.pattern.permute.xlu0 2
      %3822 = vperm.xlu0 %3821, %v453
      %v3823 = vpop.permute.xlu0 %3822
      %3825 = vset.pattern.permute.xlu0 2
      %3826 = vperm.xlu0 %3825, %v454
      %v3827 = vpop.permute.xlu0 %3826
      %3829 = vset.pattern.permute.xlu0 2
      %3830 = vperm.xlu0 %3829, %v455
      %v3831 = vpop.permute.xlu0 %3830
      %3833 = vset.pattern.permute.xlu0 2
      %3834 = vperm.xlu0 %3833, %v456
      %v3835 = vpop.permute.xlu0 %3834
      %3837 = vset.pattern.permute.xlu0 2
      %3838 = vperm.xlu0 %3837, %v457
      %v3839 = vpop.permute.xlu0 %3838
      %3841 = vset.pattern.permute.xlu0 2
      %3842 = vperm.xlu0 %3841, %v458
      %v3843 = vpop.permute.xlu0 %3842
      %3845 = vset.pattern.permute.xlu0 2
      %3846 = vperm.xlu0 %3845, %v459
      %v3847 = vpop.permute.xlu0 %3846
      %3849 = vset.pattern.permute.xlu0 2
      %3850 = vperm.xlu0 %3849, %v460
      %v3851 = vpop.permute.xlu0 %3850
      %3853 = vset.pattern.permute.xlu0 2
      %3854 = vperm.xlu0 %3853, %v461
      %v3855 = vpop.permute.xlu0 %3854
      %3857 = vset.pattern.permute.xlu0 2
      %3858 = vperm.xlu0 %3857, %v462
      %v3859 = vpop.permute.xlu0 %3858
      %3861 = vset.pattern.permute.xlu0 2
      %3862 = vperm.xlu0 %3861, %v463
      %v3863 = vpop.permute.xlu0 %3862
      %3865 = vset.pattern.permute.xlu0 2
      %3866 = vperm.xlu0 %3865, %v464
      %v3867 = vpop.permute.xlu0 %3866
      %3869 = vset.pattern.permute.xlu0 2
      %3870 = vperm.xlu0 %3869, %v465
      %v3871 = vpop.permute.xlu0 %3870
      %3873 = vset.pattern.permute.xlu0 2
      %3874 = vperm.xlu0 %3873, %v466
      %v3875 = vpop.permute.xlu0 %3874
      %3877 = vset.pattern.permute.xlu0 2
      %3878 = vperm.xlu0 %3877, %v467
      %v3879 = vpop.permute.xlu0 %3878
      %3881 = vset.pattern.permute.xlu0 2
      %3882 = vperm.xlu0 %3881, %v468
      %v3883 = vpop.permute.xlu0 %3882
      %3885 = vset.pattern.permute.xlu0 2
      %3886 = vperm.xlu0 %3885, %v469
      %v3887 = vpop.permute.xlu0 %3886
      %3889 = vset.pattern.permute.xlu0 2
      %3890 = vperm.xlu0 %3889, %v470
      %v3891 = vpop.permute.xlu0 %3890
      %3893 = vset.pattern.permute.xlu0 2
      %3894 = vperm.xlu0 %3893, %v471
      %v3895 = vpop.permute.xlu0 %3894
      %3897 = vset.pattern.permute.xlu0 2
      %3898 = vperm.xlu0 %3897, %v472
      %v3899 = vpop.permute.xlu0 %3898
      %3901 = vset.pattern.permute.xlu0 2
      %3902 = vperm.xlu0 %3901, %v473
      %v3903 = vpop.permute.xlu0 %3902
      %3905 = vset.pattern.permute.xlu0 2
      %3906 = vperm.xlu0 %3905, %v474
      %v3907 = vpop.permute.xlu0 %3906
      %3909 = vset.pattern.permute.xlu0 2
      %3910 = vperm.xlu0 %3909, %v475
      %v3911 = vpop.permute.xlu0 %3910
      %3913 = vset.pattern.permute.xlu0 2
      %3914 = vperm.xlu0 %3913, %v476
      %v3915 = vpop.permute.xlu0 %3914
      %3917 = vset.pattern.permute.xlu0 2
      %3918 = vperm.xlu0 %3917, %v477
      %v3919 = vpop.permute.xlu0 %3918
      %3921 = vset.pattern.permute.xlu0 2
      %3922 = vperm.xlu0 %3921, %v478
      %v3923 = vpop.permute.xlu0 %3922
      %3925 = vset.pattern.permute.xlu0 2
      %3926 = vperm.xlu0 %3925, %v479
      %v3927 = vpop.permute.xlu0 %3926
      %3929 = vset.pattern.permute.xlu0 2
      %3930 = vperm.xlu0 %3929, %v480
      %v3931 = vpop.permute.xlu0 %3930
      %3933 = vset.pattern.permute.xlu0 2
      %3934 = vperm.xlu0 %3933, %v481
      %v3935 = vpop.permute.xlu0 %3934
      %3937 = vset.pattern.permute.xlu0 2
      %3938 = vperm.xlu0 %3937, %v482
      %v3939 = vpop.permute.xlu0 %3938
      %3941 = vset.pattern.permute.xlu0 2
      %3942 = vperm.xlu0 %3941, %v483
      %v3943 = vpop.permute.xlu0 %3942
      %3945 = vset.pattern.permute.xlu0 2
      %3946 = vperm.xlu0 %3945, %v484
      %v3947 = vpop.permute.xlu0 %3946
      %3949 = vset.pattern.permute.xlu0 2
      %3950 = vperm.xlu0 %3949, %v485
      %v3951 = vpop.permute.xlu0 %3950
      %3953 = vset.pattern.permute.xlu0 2
      %3954 = vperm.xlu0 %3953, %v486
      %v3955 = vpop.permute.xlu0 %3954
      %3957 = vset.pattern.permute.xlu0 2
      %3958 = vperm.xlu0 %3957, %v487
      %v3959 = vpop.permute.xlu0 %3958
      %3961 = vset.pattern.permute.xlu0 2
      %3962 = vperm.xlu0 %3961, %v488
      %v3963 = vpop.permute.xlu0 %3962
      %3965 = vset.pattern.permute.xlu0 2
      %3966 = vperm.xlu0 %3965, %v489
      %v3967 = vpop.permute.xlu0 %3966
      %3969 = vset.pattern.permute.xlu0 2
      %3970 = vperm.xlu0 %3969, %v490
      %v3971 = vpop.permute.xlu0 %3970
      %3973 = vset.pattern.permute.xlu0 2
      %3974 = vperm.xlu0 %3973, %v491
      %v3975 = vpop.permute.xlu0 %3974
      %3977 = vset.pattern.permute.xlu0 2
      %3978 = vperm.xlu0 %3977, %v492
      %v3979 = vpop.permute.xlu0 %3978
      %3981 = vset.pattern.permute.xlu0 2
      %3982 = vperm.xlu0 %3981, %v493
      %v3983 = vpop.permute.xlu0 %3982
      %3985 = vset.pattern.permute.xlu0 2
      %3986 = vperm.xlu0 %3985, %v494
      %v3987 = vpop.permute.xlu0 %3986
      %3989 = vset.pattern.permute.xlu0 2
      %3990 = vperm.xlu0 %3989, %v495
      %v3991 = vpop.permute.xlu0 %3990
      %3993 = vset.pattern.permute.xlu0 2
      %3994 = vperm.xlu0 %3993, %v496
      %v3995 = vpop.permute.xlu0 %3994
      %3997 = vset.pattern.permute.xlu0 2
      %3998 = vperm.xlu0 %3997, %v497
      %v3999 = vpop.permute.xlu0 %3998
      %4001 = vset.pattern.permute.xlu0 2
      %4002 = vperm.xlu0 %4001, %v498
      %v4003 = vpop.permute.xlu0 %4002
      %4005 = vset.pattern.permute.xlu0 2
      %4006 = vperm.xlu0 %4005, %v499
      %v4007 = vpop.permute.xlu0 %4006
      %4009 = vset.pattern.permute.xlu0 2
      %4010 = vperm.xlu0 %4009, %v500
      %v4011 = vpop.permute.xlu0 %4010
      %4013 = vset.pattern.permute.xlu0 2
      %4014 = vperm.xlu0 %4013, %v501
      %v4015 = vpop.permute.xlu0 %4014
      %4017 = vset.pattern.permute.xlu0 2
      %4018 = vperm.xlu0 %4017, %v502
      %v4019 = vpop.permute.xlu0 %4018
      %4021 = vset.pattern.permute.xlu0 2
      %4022 = vperm.xlu0 %4021, %v503
      %v4023 = vpop.permute.xlu0 %4022
      %4025 = vset.pattern.permute.xlu0 2
      %4026 = vperm.xlu0 %4025, %v504
      %v4027 = vpop.permute.xlu0 %4026
      %4029 = vset.pattern.permute.xlu0 2
      %4030 = vperm.xlu0 %4029, %v505
      %v4031 = vpop.permute.xlu0 %4030
      %4033 = vset.pattern.permute.xlu0 2
      %4034 = vperm.xlu0 %4033, %v506
      %v4035 = vpop.permute.xlu0 %4034
      %4037 = vset.pattern.permute.xlu0 2
      %4038 = vperm.xlu0 %4037, %v507
      %v4039 = vpop.permute.xlu0 %4038
      %4041 = vset.pattern.permute.xlu0 2
      %4042 = vperm.xlu0 %4041, %v508
      %v4043 = vpop.permute.xlu0 %4042
      %4045 = vset.pattern.permute.xlu0 2
      %4046 = vperm.xlu0 %4045, %v509
      %v4047 = vpop.permute.xlu0 %4046
      %4049 = vset.pattern.permute.xlu0 2
      %4050 = vperm.xlu0 %4049, %v510
      %v4051 = vpop.permute.xlu0 %4050
      %4053 = vset.pattern.permute.xlu0 2
      %4054 = vperm.xlu0 %4053, %v511
      %v4055 = vpop.permute.xlu0 %4054
      %4057 = vset.pattern.permute.xlu0 2
      %4058 = vperm.xlu0 %4057, %v512
      %v4059 = vpop.permute.xlu0 %4058
      %4061 = vset.pattern.permute.xlu0 2
      %4062 = vperm.xlu0 %4061, %v513
      %v4063 = vpop.permute.xlu0 %4062
      %4065 = vset.pattern.permute.xlu0 2
      %4066 = vperm.xlu0 %4065, %v514
      %v4067 = vpop.permute.xlu0 %4066
      %4069 = vset.pattern.permute.xlu0 2
      %4070 = vperm.xlu0 %4069, %v515
      %v4071 = vpop.permute.xlu0 %4070
      %4073 = vset.pattern.permute.xlu0 2
      %4074 = vperm.xlu0 %4073, %v516
      %v4075 = vpop.permute.xlu0 %4074
      %4077 = vset.pattern.permute.xlu0 2
      %4078 = vperm.xlu0 %4077, %v517
      %v4079 = vpop.permute.xlu0 %4078
      %4081 = vset.pattern.permute.xlu0 2
      %4082 = vperm.xlu0 %4081, %v518
      %v4083 = vpop.permute.xlu0 %4082
      %4085 = vset.pattern.permute.xlu0 2
      %4086 = vperm.xlu0 %4085, %v519
      %v4087 = vpop.permute.xlu0 %4086
      %4089 = vset.pattern.permute.xlu0 2
      %4090 = vperm.xlu0 %4089, %v520
      %v4091 = vpop.permute.xlu0 %4090
      %4093 = vset.pattern.permute.xlu0 2
      %4094 = vperm.xlu0 %4093, %v521
      %v4095 = vpop.permute.xlu0 %4094
      %4097 = vset.pattern.permute.xlu0 2
      %4098 = vperm.xlu0 %4097, %v522
      %v4099 = vpop.permute.xlu0 %4098
      %4101 = vset.pattern.permute.xlu0 2
      %4102 = vperm.xlu0 %4101, %v523
      %v4103 = vpop.permute.xlu0 %4102
      %4105 = vset.pattern.permute.xlu0 2
      %4106 = vperm.xlu0 %4105, %v524
      %v4107 = vpop.permute.xlu0 %4106
      %4109 = vset.pattern.permute.xlu0 2
      %4110 = vperm.xlu0 %4109, %v525
      %v4111 = vpop.permute.xlu0 %4110
      %4113 = vset.pattern.permute.xlu0 2
      %4114 = vperm.xlu0 %4113, %v526
      %v4115 = vpop.permute.xlu0 %4114
      %4117 = vset.pattern.permute.xlu0 2
      %4118 = vperm.xlu0 %4117, %v527
      %v4119 = vpop.permute.xlu0 %4118
      %4121 = vset.pattern.permute.xlu0 2
      %4122 = vperm.xlu0 %4121, %v528
      %v4123 = vpop.permute.xlu0 %4122
      %4125 = vset.pattern.permute.xlu0 2
      %4126 = vperm.xlu0 %4125, %v529
      %v4127 = vpop.permute.xlu0 %4126
      %4129 = vset.pattern.permute.xlu0 2
      %4130 = vperm.xlu0 %4129, %v530
      %v4131 = vpop.permute.xlu0 %4130
      %4133 = vset.pattern.permute.xlu0 2
      %4134 = vperm.xlu0 %4133, %v531
      %v4135 = vpop.permute.xlu0 %4134
      %4137 = vset.pattern.permute.xlu0 2
      %4138 = vperm.xlu0 %4137, %v532
      %v4139 = vpop.permute.xlu0 %4138
      %4141 = vset.pattern.permute.xlu0 2
      %4142 = vperm.xlu0 %4141, %v533
      %v4143 = vpop.permute.xlu0 %4142
      %4145 = vset.pattern.permute.xlu0 2
      %4146 = vperm.xlu0 %4145, %v534
      %v4147 = vpop.permute.xlu0 %4146
      %4149 = vset.pattern.permute.xlu0 2
      %4150 = vperm.xlu0 %4149, %v535
      %v4151 = vpop.permute.xlu0 %4150
      %4153 = vset.pattern.permute.xlu0 2
      %4154 = vperm.xlu0 %4153, %v536
      %v4155 = vpop.permute.xlu0 %4154
      %4157 = vset.pattern.permute.xlu0 2
      %4158 = vperm.xlu0 %4157, %v537
      %v4159 = vpop.permute.xlu0 %4158
      %4161 = vset.pattern.permute.xlu0 2
      %4162 = vperm.xlu0 %4161, %v538
      %v4163 = vpop.permute.xlu0 %4162
      %4165 = vset.pattern.permute.xlu0 2
      %4166 = vperm.xlu0 %4165, %v539
      %v4167 = vpop.permute.xlu0 %4166
      %4169 = vset.pattern.permute.xlu0 2
      %4170 = vperm.xlu0 %4169, %v540
      %v4171 = vpop.permute.xlu0 %4170
      %4173 = vset.pattern.permute.xlu0 2
      %4174 = vperm.xlu0 %4173, %v541
      %v4175 = vpop.permute.xlu0 %4174
      %4177 = vset.pattern.permute.xlu0 2
      %4178 = vperm.xlu0 %4177, %v542
      %v4179 = vpop.permute.xlu0 %4178
      %4181 = vset.pattern.permute.xlu0 2
      %4182 = vperm.xlu0 %4181, %v543
      %v4183 = vpop.permute.xlu0 %4182
      %4185 = vset.pattern.permute.xlu0 2
      %4186 = vperm.xlu0 %4185, %v544
      %v4187 = vpop.permute.xlu0 %4186
      %4189 = vset.pattern.permute.xlu0 2
      %4190 = vperm.xlu0 %4189, %v545
      %v4191 = vpop.permute.xlu0 %4190
      %4193 = vset.pattern.permute.xlu0 2
      %4194 = vperm.xlu0 %4193, %v546
      %v4195 = vpop.permute.xlu0 %4194
      %4197 = vset.pattern.permute.xlu0 2
      %4198 = vperm.xlu0 %4197, %v547
      %v4199 = vpop.permute.xlu0 %4198
      %4201 = vset.pattern.permute.xlu0 2
      %4202 = vperm.xlu0 %4201, %v548
      %v4203 = vpop.permute.xlu0 %4202
      %4205 = vset.pattern.permute.xlu0 2
      %4206 = vperm.xlu0 %4205, %v549
      %v4207 = vpop.permute.xlu0 %4206
      %4209 = vset.pattern.permute.xlu0 2
      %4210 = vperm.xlu0 %4209, %v550
      %v4211 = vpop.permute.xlu0 %4210
      %4213 = vset.pattern.permute.xlu0 2
      %4214 = vperm.xlu0 %4213, %v551
      %v4215 = vpop.permute.xlu0 %4214
      %4217 = vset.pattern.permute.xlu0 2
      %4218 = vperm.xlu0 %4217, %v552
      %v4219 = vpop.permute.xlu0 %4218
      %4221 = vset.pattern.permute.xlu0 2
      %4222 = vperm.xlu0 %4221, %v553
      %v4223 = vpop.permute.xlu0 %4222
      %4225 = vset.pattern.permute.xlu0 2
      %4226 = vperm.xlu0 %4225, %v554
      %v4227 = vpop.permute.xlu0 %4226
      %4229 = vset.pattern.permute.xlu0 2
      %4230 = vperm.xlu0 %4229, %v555
      %v4231 = vpop.permute.xlu0 %4230
      %4233 = vset.pattern.permute.xlu0 2
      %4234 = vperm.xlu0 %4233, %v556
      %v4235 = vpop.permute.xlu0 %4234
      %4237 = vset.pattern.permute.xlu0 2
      %4238 = vperm.xlu0 %4237, %v557
      %v4239 = vpop.permute.xlu0 %4238
      %4241 = vset.pattern.permute.xlu0 2
      %4242 = vperm.xlu0 %4241, %v558
      %v4243 = vpop.permute.xlu0 %4242
      %4245 = vset.pattern.permute.xlu0 2
      %4246 = vperm.xlu0 %4245, %v559
      %v4247 = vpop.permute.xlu0 %4246
      %4249 = vset.pattern.permute.xlu0 2
      %4250 = vperm.xlu0 %4249, %v560
      %v4251 = vpop.permute.xlu0 %4250
      %4253 = vset.pattern.permute.xlu0 2
      %4254 = vperm.xlu0 %4253, %v561
      %v4255 = vpop.permute.xlu0 %4254
      %4257 = vset.pattern.permute.xlu0 2
      %4258 = vperm.xlu0 %4257, %v562
      %v4259 = vpop.permute.xlu0 %4258
      %4261 = vset.pattern.permute.xlu0 2
      %4262 = vperm.xlu0 %4261, %v563
      %v4263 = vpop.permute.xlu0 %4262
      %4265 = vset.pattern.permute.xlu0 2
      %4266 = vperm.xlu0 %4265, %v564
      %v4267 = vpop.permute.xlu0 %4266
      %4269 = vset.pattern.permute.xlu0 2
      %4270 = vperm.xlu0 %4269, %v565
      %v4271 = vpop.permute.xlu0 %4270
      %4273 = vset.pattern.permute.xlu0 2
      %4274 = vperm.xlu0 %4273, %v566
      %v4275 = vpop.permute.xlu0 %4274
      %4277 = vset.pattern.permute.xlu0 2
      %4278 = vperm.xlu0 %4277, %v567
      %v4279 = vpop.permute.xlu0 %4278
      %4281 = vset.pattern.permute.xlu0 2
      %4282 = vperm.xlu0 %4281, %v568
      %v4283 = vpop.permute.xlu0 %4282
      %4285 = vset.pattern.permute.xlu0 2
      %4286 = vperm.xlu0 %4285, %v569
      %v4287 = vpop.permute.xlu0 %4286
      %4289 = vset.pattern.permute.xlu0 2
      %4290 = vperm.xlu0 %4289, %v570
      %v4291 = vpop.permute.xlu0 %4290
      %4293 = vset.pattern.permute.xlu0 2
      %4294 = vperm.xlu0 %4293, %v571
      %v4295 = vpop.permute.xlu0 %4294
      %4297 = vset.pattern.permute.xlu0 2
      %4298 = vperm.xlu0 %4297, %v572
      %v4299 = vpop.permute.xlu0 %4298
      %4301 = vset.pattern.permute.xlu0 2
      %4302 = vperm.xlu0 %4301, %v573
      %v4303 = vpop.permute.xlu0 %4302
      %4305 = vset.pattern.permute.xlu0 2
      %4306 = vperm.xlu0 %4305, %v574
      %v4307 = vpop.permute.xlu0 %4306
      %4309 = vset.pattern.permute.xlu0 2
      %4310 = vperm.xlu0 %4309, %v575
      %v4311 = vpop.permute.xlu0 %4310
      %4313 = vset.pattern.permute.xlu0 2
      %4314 = vperm.xlu0 %4313, %v576
      %v4315 = vpop.permute.xlu0 %4314
      %4317 = vset.pattern.permute.xlu0 2
      %4318 = vperm.xlu0 %4317, %v577
      %v4319 = vpop.permute.xlu0 %4318
      %4321 = vset.pattern.permute.xlu0 2
      %4322 = vperm.xlu0 %4321, %v578
      %v4323 = vpop.permute.xlu0 %4322
      %4325 = vset.pattern.permute.xlu0 2
      %4326 = vperm.xlu0 %4325, %v579
      %v4327 = vpop.permute.xlu0 %4326
      %4329 = vset.pattern.permute.xlu0 2
      %4330 = vperm.xlu0 %4329, %v580
      %v4331 = vpop.permute.xlu0 %4330
      %4333 = vset.pattern.permute.xlu0 2
      %4334 = vperm.xlu0 %4333, %v581
      %v4335 = vpop.permute.xlu0 %4334
      %4337 = vset.pattern.permute.xlu0 2
      %4338 = vperm.xlu0 %4337, %v582
      %v4339 = vpop.permute.xlu0 %4338
      %4341 = vset.pattern.permute.xlu0 2
      %4342 = vperm.xlu0 %4341, %v583
      %v4343 = vpop.permute.xlu0 %4342
      %4345 = vset.pattern.permute.xlu0 2
      %4346 = vperm.xlu0 %4345, %v584
      %v4347 = vpop.permute.xlu0 %4346
      %4349 = vset.pattern.permute.xlu0 2
      %4350 = vperm.xlu0 %4349, %v585
      %v4351 = vpop.permute.xlu0 %4350
      %4353 = vset.pattern.permute.xlu0 2
      %4354 = vperm.xlu0 %4353, %v586
      %v4355 = vpop.permute.xlu0 %4354
      %4357 = vset.pattern.permute.xlu0 2
      %4358 = vperm.xlu0 %4357, %v587
      %v4359 = vpop.permute.xlu0 %4358
      %4361 = vset.pattern.permute.xlu0 2
      %4362 = vperm.xlu0 %4361, %v588
      %v4363 = vpop.permute.xlu0 %4362
      %4365 = vset.pattern.permute.xlu0 2
      %4366 = vperm.xlu0 %4365, %v589
      %v4367 = vpop.permute.xlu0 %4366
      %4369 = vset.pattern.permute.xlu0 2
      %4370 = vperm.xlu0 %4369, %v590
      %v4371 = vpop.permute.xlu0 %4370
      %4373 = vset.pattern.permute.xlu0 2
      %4374 = vperm.xlu0 %4373, %v591
      %v4375 = vpop.permute.xlu0 %4374
      %4377 = vset.pattern.permute.xlu0 2
      %4378 = vperm.xlu0 %4377, %v592
      %v4379 = vpop.permute.xlu0 %4378
      %4381 = vset.pattern.permute.xlu0 2
      %4382 = vperm.xlu0 %4381, %v593
      %v4383 = vpop.permute.xlu0 %4382
      %4385 = vset.pattern.permute.xlu0 2
      %4386 = vperm.xlu0 %4385, %v594
      %v4387 = vpop.permute.xlu0 %4386
      %4389 = vset.pattern.permute.xlu0 2
      %4390 = vperm.xlu0 %4389, %v595
      %v4391 = vpop.permute.xlu0 %4390
      %4393 = vset.pattern.permute.xlu0 2
      %4394 = vperm.xlu0 %4393, %v596
      %v4395 = vpop.permute.xlu0 %4394
      %4397 = vset.pattern.permute.xlu0 2
      %4398 = vperm.xlu0 %4397, %v597
      %v4399 = vpop.permute.xlu0 %4398
      %4401 = vset.pattern.permute.xlu0 2
      %4402 = vperm.xlu0 %4401, %v598
      %v4403 = vpop.permute.xlu0 %4402
      %4405 = vset.pattern.permute.xlu0 2
      %4406 = vperm.xlu0 %4405, %v599
      %v4407 = vpop.permute.xlu0 %4406
      %4409 = vset.pattern.permute.xlu0 2
      %4410 = vperm.xlu0 %4409, %v600
      %v4411 = vpop.permute.xlu0 %4410
      %4413 = vset.pattern.permute.xlu0 2
      %4414 = vperm.xlu0 %4413, %v601
      %v4415 = vpop.permute.xlu0 %4414
      %4417 = vset.pattern.permute.xlu0 2
      %4418 = vperm.xlu0 %4417, %v602
      %v4419 = vpop.permute.xlu0 %4418
      %4421 = vset.pattern.permute.xlu0 2
      %4422 = vperm.xlu0 %4421, %v603
      %v4423 = vpop.permute.xlu0 %4422
      %4425 = vset.pattern.permute.xlu0 2
      %4426 = vperm.xlu0 %4425, %v604
      %v4427 = vpop.permute.xlu0 %4426
      %4429 = vset.pattern.permute.xlu0 2
      %4430 = vperm.xlu0 %4429, %v605
      %v4431 = vpop.permute.xlu0 %4430
      %4433 = vset.pattern.permute.xlu0 2
      %4434 = vperm.xlu0 %4433, %v606
      %v4435 = vpop.permute.xlu0 %4434
      %4437 = vset.pattern.permute.xlu0 2
      %4438 = vperm.xlu0 %4437, %v607
      %v4439 = vpop.permute.xlu0 %4438
      %4441 = vset.pattern.permute.xlu0 2
      %4442 = vperm.xlu0 %4441, %v608
      %v4443 = vpop.permute.xlu0 %4442
      %4445 = vset.pattern.permute.xlu0 2
      %4446 = vperm.xlu0 %4445, %v609
      %v4447 = vpop.permute.xlu0 %4446
      %4449 = vset.pattern.permute.xlu0 2
      %4450 = vperm.xlu0 %4449, %v610
      %v4451 = vpop.permute.xlu0 %4450
      %4453 = vset.pattern.permute.xlu0 2
      %4454 = vperm.xlu0 %4453, %v611
      %v4455 = vpop.permute.xlu0 %4454
      %4457 = vset.pattern.permute.xlu0 2
      %4458 = vperm.xlu0 %4457, %v612
      %v4459 = vpop.permute.xlu0 %4458
      %4461 = vset.pattern.permute.xlu0 2
      %4462 = vperm.xlu0 %4461, %v613
      %v4463 = vpop.permute.xlu0 %4462
      %4465 = vset.pattern.permute.xlu0 2
      %4466 = vperm.xlu0 %4465, %v614
      %v4467 = vpop.permute.xlu0 %4466
      %4469 = vset.pattern.permute.xlu0 2
      %4470 = vperm.xlu0 %4469, %v615
      %v4471 = vpop.permute.xlu0 %4470
      %4473 = vset.pattern.permute.xlu0 2
      %4474 = vperm.xlu0 %4473, %v616
      %v4475 = vpop.permute.xlu0 %4474
      %4477 = vset.pattern.permute.xlu0 2
      %4478 = vperm.xlu0 %4477, %v617
      %v4479 = vpop.permute.xlu0 %4478
      %4481 = vset.pattern.permute.xlu0 2
      %4482 = vperm.xlu0 %4481, %v618
      %v4483 = vpop.permute.xlu0 %4482
      %4485 = vset.pattern.permute.xlu0 2
      %4486 = vperm.xlu0 %4485, %v619
      %v4487 = vpop.permute.xlu0 %4486
      %4489 = vset.pattern.permute.xlu0 2
      %4490 = vperm.xlu0 %4489, %v620
      %v4491 = vpop.permute.xlu0 %4490
      %4493 = vset.pattern.permute.xlu0 2
      %4494 = vperm.xlu0 %4493, %v621
      %v4495 = vpop.permute.xlu0 %4494
      %4497 = vset.pattern.permute.xlu0 2
      %4498 = vperm.xlu0 %4497, %v622
      %v4499 = vpop.permute.xlu0 %4498
      %4501 = vset.pattern.permute.xlu0 2
      %4502 = vperm.xlu0 %4501, %v623
      %v4503 = vpop.permute.xlu0 %4502
      %4505 = vset.pattern.permute.xlu0 2
      %4506 = vperm.xlu0 %4505, %v624
      %v4507 = vpop.permute.xlu0 %4506
      %4509 = vset.pattern.permute.xlu0 2
      %4510 = vperm.xlu0 %4509, %v625
      %v4511 = vpop.permute.xlu0 %4510
      %4513 = vset.pattern.permute.xlu0 2
      %4514 = vperm.xlu0 %4513, %v626
      %v4515 = vpop.permute.xlu0 %4514
      %4517 = vset.pattern.permute.xlu0 2
      %4518 = vperm.xlu0 %4517, %v627
      %v4519 = vpop.permute.xlu0 %4518
      %4521 = vset.pattern.permute.xlu0 2
      %4522 = vperm.xlu0 %4521, %v628
      %v4523 = vpop.permute.xlu0 %4522
      %4525 = vset.pattern.permute.xlu0 2
      %4526 = vperm.xlu0 %4525, %v629
      %v4527 = vpop.permute.xlu0 %4526
      %4529 = vset.pattern.permute.xlu0 2
      %4530 = vperm.xlu0 %4529, %v630
      %v4531 = vpop.permute.xlu0 %4530
      %4533 = vset.pattern.permute.xlu0 2
      %4534 = vperm.xlu0 %4533, %v631
      %v4535 = vpop.permute.xlu0 %4534
      %4537 = vset.pattern.permute.xlu0 2
      %4538 = vperm.xlu0 %4537, %v632
      %v4539 = vpop.permute.xlu0 %4538
      %4541 = vset.pattern.permute.xlu0 2
      %4542 = vperm.xlu0 %4541, %v633
      %v4543 = vpop.permute.xlu0 %4542
      %4545 = vset.pattern.permute.xlu0 2
      %4546 = vperm.xlu0 %4545, %v634
      %v4547 = vpop.permute.xlu0 %4546
      %4549 = vset.pattern.permute.xlu0 2
      %4550 = vperm.xlu0 %4549, %v635
      %v4551 = vpop.permute.xlu0 %4550
      %4553 = vset.pattern.permute.xlu0 2
      %4554 = vperm.xlu0 %4553, %v636
      %v4555 = vpop.permute.xlu0 %4554
      %4557 = vset.pattern.permute.xlu0 2
      %4558 = vperm.xlu0 %4557, %v637
      %v4559 = vpop.permute.xlu0 %4558
      %4561 = vset.pattern.permute.xlu0 2
      %4562 = vperm.xlu0 %4561, %v638
      %v4563 = vpop.permute.xlu0 %4562
      %4565 = vset.pattern.permute.xlu0 2
      %4566 = vperm.xlu0 %4565, %v639
      %v4567 = vpop.permute.xlu0 %4566
      %4569 = vset.pattern.permute.xlu0 2
      %4570 = vperm.xlu0 %4569, %v640
      %v4571 = vpop.permute.xlu0 %4570
      %4573 = vset.pattern.permute.xlu0 2
      %4574 = vperm.xlu0 %4573, %v641
      %v4575 = vpop.permute.xlu0 %4574
      %4577 = vset.pattern.permute.xlu0 2
      %4578 = vperm.xlu0 %4577, %v642
      %v4579 = vpop.permute.xlu0 %4578
      %4581 = vset.pattern.permute.xlu0 2
      %4582 = vperm.xlu0 %4581, %v643
      %v4583 = vpop.permute.xlu0 %4582
      %4585 = vset.pattern.permute.xlu0 2
      %4586 = vperm.xlu0 %4585, %v644
      %v4587 = vpop.permute.xlu0 %4586
      %4589 = vset.pattern.permute.xlu0 2
      %4590 = vperm.xlu0 %4589, %v645
      %v4591 = vpop.permute.xlu0 %4590
      %4593 = vset.pattern.permute.xlu0 2
      %4594 = vperm.xlu0 %4593, %v646
      %v4595 = vpop.permute.xlu0 %4594
      %4597 = vset.pattern.permute.xlu0 2
      %4598 = vperm.xlu0 %4597, %v647
      %v4599 = vpop.permute.xlu0 %4598
      %4601 = vset.pattern.permute.xlu0 2
      %4602 = vperm.xlu0 %4601, %v648
      %v4603 = vpop.permute.xlu0 %4602
      %4605 = vset.pattern.permute.xlu0 2
      %4606 = vperm.xlu0 %4605, %v649
      %v4607 = vpop.permute.xlu0 %4606
      %4609 = vset.pattern.permute.xlu0 2
      %4610 = vperm.xlu0 %4609, %v650
      %v4611 = vpop.permute.xlu0 %4610
      %4613 = vset.pattern.permute.xlu0 2
      %4614 = vperm.xlu0 %4613, %v651
      %v4615 = vpop.permute.xlu0 %4614
      %4617 = vset.pattern.permute.xlu0 2
      %4618 = vperm.xlu0 %4617, %v652
      %v4619 = vpop.permute.xlu0 %4618
      %4621 = vset.pattern.permute.xlu0 2
      %4622 = vperm.xlu0 %4621, %v653
      %v4623 = vpop.permute.xlu0 %4622
      %4625 = vset.pattern.permute.xlu0 2
      %4626 = vperm.xlu0 %4625, %v654
      %v4627 = vpop.permute.xlu0 %4626
      %4629 = vset.pattern.permute.xlu0 2
      %4630 = vperm.xlu0 %4629, %v655
      %v4631 = vpop.permute.xlu0 %4630
      %4633 = vset.pattern.permute.xlu0 2
      %4634 = vperm.xlu0 %4633, %v656
      %v4635 = vpop.permute.xlu0 %4634
      %4637 = vset.pattern.permute.xlu0 2
      %4638 = vperm.xlu0 %4637, %v657
      %v4639 = vpop.permute.xlu0 %4638
      %4641 = vset.pattern.permute.xlu0 2
      %4642 = vperm.xlu0 %4641, %v658
      %v4643 = vpop.permute.xlu0 %4642
      %4645 = vset.pattern.permute.xlu0 2
      %4646 = vperm.xlu0 %4645, %v659
      %v4647 = vpop.permute.xlu0 %4646
      %4649 = vset.pattern.permute.xlu0 2
      %4650 = vperm.xlu0 %4649, %v660
      %v4651 = vpop.permute.xlu0 %4650
      %4653 = vset.pattern.permute.xlu0 2
      %4654 = vperm.xlu0 %4653, %v661
      %v4655 = vpop.permute.xlu0 %4654
      %4657 = vset.pattern.permute.xlu0 2
      %4658 = vperm.xlu0 %4657, %v662
      %v4659 = vpop.permute.xlu0 %4658
      %4661 = vset.pattern.permute.xlu0 2
      %4662 = vperm.xlu0 %4661, %v663
      %v4663 = vpop.permute.xlu0 %4662
      %4665 = vset.pattern.permute.xlu0 2
      %4666 = vperm.xlu0 %4665, %v664
      %v4667 = vpop.permute.xlu0 %4666
      %4669 = vset.pattern.permute.xlu0 2
      %4670 = vperm.xlu0 %4669, %v665
      %v4671 = vpop.permute.xlu0 %4670
      %4673 = vset.pattern.permute.xlu0 2
      %4674 = vperm.xlu0 %4673, %v666
      %v4675 = vpop.permute.xlu0 %4674
      %4677 = vset.pattern.permute.xlu0 2
      %4678 = vperm.xlu0 %4677, %v667
      %v4679 = vpop.permute.xlu0 %4678
      %4681 = vset.pattern.permute.xlu0 2
      %4682 = vperm.xlu0 %4681, %v668
      %v4683 = vpop.permute.xlu0 %4682
      %4685 = vset.pattern.permute.xlu0 2
      %4686 = vperm.xlu0 %4685, %v669
      %v4687 = vpop.permute.xlu0 %4686
      %4689 = vset.pattern.permute.xlu0 2
      %4690 = vperm.xlu0 %4689, %v670
      %v4691 = vpop.permute.xlu0 %4690
      %4693 = vset.pattern.permute.xlu0 2
      %4694 = vperm.xlu0 %4693, %v671
      %v4695 = vpop.permute.xlu0 %4694
      %4697 = vset.pattern.permute.xlu0 2
      %4698 = vperm.xlu0 %4697, %v672
      %v4699 = vpop.permute.xlu0 %4698
      %4701 = vset.pattern.permute.xlu0 2
      %4702 = vperm.xlu0 %4701, %v673
      %v4703 = vpop.permute.xlu0 %4702
      %4705 = vset.pattern.permute.xlu0 2
      %4706 = vperm.xlu0 %4705, %v674
      %v4707 = vpop.permute.xlu0 %4706
      %4709 = vset.pattern.permute.xlu0 2
      %4710 = vperm.xlu0 %4709, %v675
      %v4711 = vpop.permute.xlu0 %4710
      %4713 = vset.pattern.permute.xlu0 2
      %4714 = vperm.xlu0 %4713, %v676
      %v4715 = vpop.permute.xlu0 %4714
      %4717 = vset.pattern.permute.xlu0 2
      %4718 = vperm.xlu0 %4717, %v677
      %v4719 = vpop.permute.xlu0 %4718
      %4721 = vset.pattern.permute.xlu0 2
      %4722 = vperm.xlu0 %4721, %v678
      %v4723 = vpop.permute.xlu0 %4722
      %4725 = vset.pattern.permute.xlu0 2
      %4726 = vperm.xlu0 %4725, %v679
      %v4727 = vpop.permute.xlu0 %4726
      %4729 = vset.pattern.permute.xlu0 2
      %4730 = vperm.xlu0 %4729, %v680
      %v4731 = vpop.permute.xlu0 %4730
      %4733 = vset.pattern.permute.xlu0 2
      %4734 = vperm.xlu0 %4733, %v681
      %v4735 = vpop.permute.xlu0 %4734
      %4737 = vset.pattern.permute.xlu0 2
      %4738 = vperm.xlu0 %4737, %v682
      %v4739 = vpop.permute.xlu0 %4738
      %4741 = vset.pattern.permute.xlu0 2
      %4742 = vperm.xlu0 %4741, %v683
      %v4743 = vpop.permute.xlu0 %4742
      %4745 = vset.pattern.permute.xlu0 2
      %4746 = vperm.xlu0 %4745, %v684
      %v4747 = vpop.permute.xlu0 %4746
      %4749 = vset.pattern.permute.xlu0 2
      %4750 = vperm.xlu0 %4749, %v685
      %v4751 = vpop.permute.xlu0 %4750
      %4753 = vset.pattern.permute.xlu0 2
      %4754 = vperm.xlu0 %4753, %v686
      %v4755 = vpop.permute.xlu0 %4754
      %4757 = vset.pattern.permute.xlu0 2
      %4758 = vperm.xlu0 %4757, %v687
      %v4759 = vpop.permute.xlu0 %4758
      %4761 = vset.pattern.permute.xlu0 2
      %4762 = vperm.xlu0 %4761, %v688
      %v4763 = vpop.permute.xlu0 %4762
      %4765 = vset.pattern.permute.xlu0 2
      %4766 = vperm.xlu0 %4765, %v689
      %v4767 = vpop.permute.xlu0 %4766
      %4769 = vset.pattern.permute.xlu0 2
      %4770 = vperm.xlu0 %4769, %v690
      %v4771 = vpop.permute.xlu0 %4770
      %4773 = vset.pattern.permute.xlu0 2
      %4774 = vperm.xlu0 %4773, %v691
      %v4775 = vpop.permute.xlu0 %4774
      %4777 = vset.pattern.permute.xlu0 2
      %4778 = vperm.xlu0 %4777, %v692
      %v4779 = vpop.permute.xlu0 %4778
      %4781 = vset.pattern.permute.xlu0 2
      %4782 = vperm.xlu0 %4781, %v693
      %v4783 = vpop.permute.xlu0 %4782
      %4785 = vset.pattern.permute.xlu0 2
      %4786 = vperm.xlu0 %4785, %v694
      %v4787 = vpop.permute.xlu0 %4786
      %4789 = vset.pattern.permute.xlu0 2
      %4790 = vperm.xlu0 %4789, %v695
      %v4791 = vpop.permute.xlu0 %4790
      %4793 = vset.pattern.permute.xlu0 2
      %4794 = vperm.xlu0 %4793, %v696
      %v4795 = vpop.permute.xlu0 %4794
      %4797 = vset.pattern.permute.xlu0 2
      %4798 = vperm.xlu0 %4797, %v697
      %v4799 = vpop.permute.xlu0 %4798
      %4801 = vset.pattern.permute.xlu0 2
      %4802 = vperm.xlu0 %4801, %v698
      %v4803 = vpop.permute.xlu0 %4802
      %v4805 = vlaneseq
      %v4806 = vshrl.u32 %v4805, 7
      %v4807 = vsub.s32 2, %v4806
      %v4808 = vrot.slane %v700, %v4807
      %v4809 = vmul.f32 %v3783, %v4808
      %v4810 = vmul.f32 %v3787, %v4808
      %v4811 = vmul.f32 %v3791, %v4808
      %v4812 = vmul.f32 %v3795, %v4808
      %v4813 = vmul.f32 %v3799, %v4808
      %v4814 = vmul.f32 %v3803, %v4808
      %v4815 = vmul.f32 %v3807, %v4808
      %v4816 = vmul.f32 %v3811, %v4808
      %v4817 = vmul.f32 %v3815, %v4808
      %v4818 = vmul.f32 %v3819, %v4808
      %v4819 = vmul.f32 %v3823, %v4808
      %v4820 = vmul.f32 %v3827, %v4808
      %v4821 = vmul.f32 %v3831, %v4808
      %v4822 = vmul.f32 %v3835, %v4808
      %v4823 = vmul.f32 %v3839, %v4808
      %v4824 = vmul.f32 %v3843, %v4808
      %v4825 = vmul.f32 %v3847, %v4808
      %v4826 = vmul.f32 %v3851, %v4808
      %v4827 = vmul.f32 %v3855, %v4808
      %v4828 = vmul.f32 %v3859, %v4808
      %v4829 = vmul.f32 %v3863, %v4808
      %v4830 = vmul.f32 %v3867, %v4808
      %v4831 = vmul.f32 %v3871, %v4808
      %v4832 = vmul.f32 %v3875, %v4808
      %v4833 = vmul.f32 %v3879, %v4808
      %v4834 = vmul.f32 %v3883, %v4808
      %v4835 = vmul.f32 %v3887, %v4808
      %v4836 = vmul.f32 %v3891, %v4808
      %v4837 = vmul.f32 %v3895, %v4808
      %v4838 = vmul.f32 %v3899, %v4808
      %v4839 = vmul.f32 %v3903, %v4808
      %v4840 = vmul.f32 %v3907, %v4808
      %v4841 = vmul.f32 %v3911, %v4808
      %v4842 = vmul.f32 %v3915, %v4808
      %v4843 = vmul.f32 %v3919, %v4808
      %v4844 = vmul.f32 %v3923, %v4808
      %v4845 = vmul.f32 %v3927, %v4808
      %v4846 = vmul.f32 %v3931, %v4808
      %v4847 = vmul.f32 %v3935, %v4808
      %v4848 = vmul.f32 %v3939, %v4808
      %v4849 = vmul.f32 %v3943, %v4808
      %v4850 = vmul.f32 %v3947, %v4808
      %v4851 = vmul.f32 %v3951, %v4808
      %v4852 = vmul.f32 %v3955, %v4808
      %v4853 = vmul.f32 %v3959, %v4808
      %v4854 = vmul.f32 %v3963, %v4808
      %v4855 = vmul.f32 %v3967, %v4808
      %v4856 = vmul.f32 %v3971, %v4808
      %v4857 = vmul.f32 %v3975, %v4808
      %v4858 = vmul.f32 %v3979, %v4808
      %v4859 = vmul.f32 %v3983, %v4808
      %v4860 = vmul.f32 %v3987, %v4808
      %v4861 = vmul.f32 %v3991, %v4808
      %v4862 = vmul.f32 %v3995, %v4808
      %v4863 = vmul.f32 %v3999, %v4808
      %v4864 = vmul.f32 %v4003, %v4808
      %v4865 = vmul.f32 %v4007, %v4808
      %v4866 = vmul.f32 %v4011, %v4808
      %v4867 = vmul.f32 %v4015, %v4808
      %v4868 = vmul.f32 %v4019, %v4808
      %v4869 = vmul.f32 %v4023, %v4808
      %v4870 = vmul.f32 %v4027, %v4808
      %v4871 = vmul.f32 %v4031, %v4808
      %v4872 = vmul.f32 %v4035, %v4808
      %v4873 = vmul.f32 %v4039, %v4808
      %v4874 = vmul.f32 %v4043, %v4808
      %v4875 = vmul.f32 %v4047, %v4808
      %v4876 = vmul.f32 %v4051, %v4808
      %v4877 = vmul.f32 %v4055, %v4808
      %v4878 = vmul.f32 %v4059, %v4808
      %v4879 = vmul.f32 %v4063, %v4808
      %v4880 = vmul.f32 %v4067, %v4808
      %v4881 = vmul.f32 %v4071, %v4808
      %v4882 = vmul.f32 %v4075, %v4808
      %v4883 = vmul.f32 %v4079, %v4808
      %v4884 = vmul.f32 %v4083, %v4808
      %v4885 = vmul.f32 %v4087, %v4808
      %v4886 = vmul.f32 %v4091, %v4808
      %v4887 = vmul.f32 %v4095, %v4808
      %v4888 = vmul.f32 %v4099, %v4808
      %v4889 = vmul.f32 %v4103, %v4808
      %v4890 = vmul.f32 %v4107, %v4808
      %v4891 = vmul.f32 %v4111, %v4808
      %v4892 = vmul.f32 %v4115, %v4808
      %v4893 = vmul.f32 %v4119, %v4808
      %v4894 = vmul.f32 %v4123, %v4808
      %v4895 = vmul.f32 %v4127, %v4808
      %v4896 = vmul.f32 %v4131, %v4808
      %v4897 = vmul.f32 %v4135, %v4808
      %v4898 = vmul.f32 %v4139, %v4808
      %v4899 = vmul.f32 %v4143, %v4808
      %v4900 = vmul.f32 %v4147, %v4808
      %v4901 = vmul.f32 %v4151, %v4808
      %v4902 = vmul.f32 %v4155, %v4808
      %v4903 = vmul.f32 %v4159, %v4808
      %v4904 = vmul.f32 %v4163, %v4808
      %v4905 = vmul.f32 %v4167, %v4808
      %v4906 = vmul.f32 %v4171, %v4808
      %v4907 = vmul.f32 %v4175, %v4808
      %v4908 = vmul.f32 %v4179, %v4808
      %v4909 = vmul.f32 %v4183, %v4808
      %v4910 = vmul.f32 %v4187, %v4808
      %v4911 = vmul.f32 %v4191, %v4808
      %v4912 = vmul.f32 %v4195, %v4808
      %v4913 = vmul.f32 %v4199, %v4808
      %v4914 = vmul.f32 %v4203, %v4808
      %v4915 = vmul.f32 %v4207, %v4808
      %v4916 = vmul.f32 %v4211, %v4808
      %v4917 = vmul.f32 %v4215, %v4808
      %v4918 = vmul.f32 %v4219, %v4808
      %v4919 = vmul.f32 %v4223, %v4808
      %v4920 = vmul.f32 %v4227, %v4808
      %v4921 = vmul.f32 %v4231, %v4808
      %v4922 = vmul.f32 %v4235, %v4808
      %v4923 = vmul.f32 %v4239, %v4808
      %v4924 = vmul.f32 %v4243, %v4808
      %v4925 = vmul.f32 %v4247, %v4808
      %v4926 = vmul.f32 %v4251, %v4808
      %v4927 = vmul.f32 %v4255, %v4808
      %v4928 = vmul.f32 %v4259, %v4808
      %v4929 = vmul.f32 %v4263, %v4808
      %v4930 = vmul.f32 %v4267, %v4808
      %v4931 = vmul.f32 %v4271, %v4808
      %v4932 = vmul.f32 %v4275, %v4808
      %v4933 = vmul.f32 %v4279, %v4808
      %v4934 = vmul.f32 %v4283, %v4808
      %v4935 = vmul.f32 %v4287, %v4808
      %v4936 = vmul.f32 %v4291, %v4808
      %v4937 = vmul.f32 %v4295, %v4808
      %v4938 = vmul.f32 %v4299, %v4808
      %v4939 = vmul.f32 %v4303, %v4808
      %v4940 = vmul.f32 %v4307, %v4808
      %v4941 = vmul.f32 %v4311, %v4808
      %v4942 = vmul.f32 %v4315, %v4808
      %v4943 = vmul.f32 %v4319, %v4808
      %v4944 = vmul.f32 %v4323, %v4808
      %v4945 = vmul.f32 %v4327, %v4808
      %v4946 = vmul.f32 %v4331, %v4808
      %v4947 = vmul.f32 %v4335, %v4808
      %v4948 = vmul.f32 %v4339, %v4808
      %v4949 = vmul.f32 %v4343, %v4808
      %v4950 = vmul.f32 %v4347, %v4808
      %v4951 = vmul.f32 %v4351, %v4808
      %v4952 = vmul.f32 %v4355, %v4808
      %v4953 = vmul.f32 %v4359, %v4808
      %v4954 = vmul.f32 %v4363, %v4808
      %v4955 = vmul.f32 %v4367, %v4808
      %v4956 = vmul.f32 %v4371, %v4808
      %v4957 = vmul.f32 %v4375, %v4808
      %v4958 = vmul.f32 %v4379, %v4808
      %v4959 = vmul.f32 %v4383, %v4808
      %v4960 = vmul.f32 %v4387, %v4808
      %v4961 = vmul.f32 %v4391, %v4808
      %v4962 = vmul.f32 %v4395, %v4808
      %v4963 = vmul.f32 %v4399, %v4808
      %v4964 = vmul.f32 %v4403, %v4808
      %v4965 = vmul.f32 %v4407, %v4808
      %v4966 = vmul.f32 %v4411, %v4808
      %v4967 = vmul.f32 %v4415, %v4808
      %v4968 = vmul.f32 %v4419, %v4808
      %v4969 = vmul.f32 %v4423, %v4808
      %v4970 = vmul.f32 %v4427, %v4808
      %v4971 = vmul.f32 %v4431, %v4808
      %v4972 = vmul.f32 %v4435, %v4808
      %v4973 = vmul.f32 %v4439, %v4808
      %v4974 = vmul.f32 %v4443, %v4808
      %v4975 = vmul.f32 %v4447, %v4808
      %v4976 = vmul.f32 %v4451, %v4808
      %v4977 = vmul.f32 %v4455, %v4808
      %v4978 = vmul.f32 %v4459, %v4808
      %v4979 = vmul.f32 %v4463, %v4808
      %v4980 = vmul.f32 %v4467, %v4808
      %v4981 = vmul.f32 %v4471, %v4808
      %v4982 = vmul.f32 %v4475, %v4808
      %v4983 = vmul.f32 %v4479, %v4808
      %v4984 = vmul.f32 %v4483, %v4808
      %v4985 = vmul.f32 %v4487, %v4808
      %v4986 = vmul.f32 %v4491, %v4808
      %v4987 = vmul.f32 %v4495, %v4808
      %v4988 = vmul.f32 %v4499, %v4808
      %v4989 = vmul.f32 %v4503, %v4808
      %v4990 = vmul.f32 %v4507, %v4808
      %v4991 = vmul.f32 %v4511, %v4808
      %v4992 = vmul.f32 %v4515, %v4808
      %v4993 = vmul.f32 %v4519, %v4808
      %v4994 = vmul.f32 %v4523, %v4808
      %v4995 = vmul.f32 %v4527, %v4808
      %v4996 = vmul.f32 %v4531, %v4808
      %v4997 = vmul.f32 %v4535, %v4808
      %v4998 = vmul.f32 %v4539, %v4808
      %v4999 = vmul.f32 %v4543, %v4808
      %v5000 = vmul.f32 %v4547, %v4808
      %v5001 = vmul.f32 %v4551, %v4808
      %v5002 = vmul.f32 %v4555, %v4808
      %v5003 = vmul.f32 %v4559, %v4808
      %v5004 = vmul.f32 %v4563, %v4808
      %v5005 = vmul.f32 %v4567, %v4808
      %v5006 = vmul.f32 %v4571, %v4808
      %v5007 = vmul.f32 %v4575, %v4808
      %v5008 = vmul.f32 %v4579, %v4808
      %v5009 = vmul.f32 %v4583, %v4808
      %v5010 = vmul.f32 %v4587, %v4808
      %v5011 = vmul.f32 %v4591, %v4808
      %v5012 = vmul.f32 %v4595, %v4808
      %v5013 = vmul.f32 %v4599, %v4808
      %v5014 = vmul.f32 %v4603, %v4808
      %v5015 = vmul.f32 %v4607, %v4808
      %v5016 = vmul.f32 %v4611, %v4808
      %v5017 = vmul.f32 %v4615, %v4808
      %v5018 = vmul.f32 %v4619, %v4808
      %v5019 = vmul.f32 %v4623, %v4808
      %v5020 = vmul.f32 %v4627, %v4808
      %v5021 = vmul.f32 %v4631, %v4808
      %v5022 = vmul.f32 %v4635, %v4808
      %v5023 = vmul.f32 %v4639, %v4808
      %v5024 = vmul.f32 %v4643, %v4808
      %v5025 = vmul.f32 %v4647, %v4808
      %v5026 = vmul.f32 %v4651, %v4808
      %v5027 = vmul.f32 %v4655, %v4808
      %v5028 = vmul.f32 %v4659, %v4808
      %v5029 = vmul.f32 %v4663, %v4808
      %v5030 = vmul.f32 %v4667, %v4808
      %v5031 = vmul.f32 %v4671, %v4808
      %v5032 = vmul.f32 %v4675, %v4808
      %v5033 = vmul.f32 %v4679, %v4808
      %v5034 = vmul.f32 %v4683, %v4808
      %v5035 = vmul.f32 %v4687, %v4808
      %v5036 = vmul.f32 %v4691, %v4808
      %v5037 = vmul.f32 %v4695, %v4808
      %v5038 = vmul.f32 %v4699, %v4808
      %v5039 = vmul.f32 %v4703, %v4808
      %v5040 = vmul.f32 %v4707, %v4808
      %v5041 = vmul.f32 %v4711, %v4808
      %v5042 = vmul.f32 %v4715, %v4808
      %v5043 = vmul.f32 %v4719, %v4808
      %v5044 = vmul.f32 %v4723, %v4808
      %v5045 = vmul.f32 %v4727, %v4808
      %v5046 = vmul.f32 %v4731, %v4808
      %v5047 = vmul.f32 %v4735, %v4808
      %v5048 = vmul.f32 %v4739, %v4808
      %v5049 = vmul.f32 %v4743, %v4808
      %v5050 = vmul.f32 %v4747, %v4808
      %v5051 = vmul.f32 %v4751, %v4808
      %v5052 = vmul.f32 %v4755, %v4808
      %v5053 = vmul.f32 %v4759, %v4808
      %v5054 = vmul.f32 %v4763, %v4808
      %v5055 = vmul.f32 %v4767, %v4808
      %v5056 = vmul.f32 %v4771, %v4808
      %v5057 = vmul.f32 %v4775, %v4808
      %v5058 = vmul.f32 %v4779, %v4808
      %v5059 = vmul.f32 %v4783, %v4808
      %v5060 = vmul.f32 %v4787, %v4808
      %v5061 = vmul.f32 %v4791, %v4808
      %v5062 = vmul.f32 %v4795, %v4808
      %v5063 = vmul.f32 %v4799, %v4808
      %v5064 = vmul.f32 %v4803, %v4808
      %v5065 = vadd.f32 %v3525, %v4809
      %v5066 = vadd.f32 %v3526, %v4810
      %v5067 = vadd.f32 %v3527, %v4811
      %v5068 = vadd.f32 %v3528, %v4812
      %v5069 = vadd.f32 %v3529, %v4813
      %v5070 = vadd.f32 %v3530, %v4814
      %v5071 = vadd.f32 %v3531, %v4815
      %v5072 = vadd.f32 %v3532, %v4816
      %v5073 = vadd.f32 %v3533, %v4817
      %v5074 = vadd.f32 %v3534, %v4818
      %v5075 = vadd.f32 %v3535, %v4819
      %v5076 = vadd.f32 %v3536, %v4820
      %v5077 = vadd.f32 %v3537, %v4821
      %v5078 = vadd.f32 %v3538, %v4822
      %v5079 = vadd.f32 %v3539, %v4823
      %v5080 = vadd.f32 %v3540, %v4824
      %v5081 = vadd.f32 %v3541, %v4825
      %v5082 = vadd.f32 %v3542, %v4826
      %v5083 = vadd.f32 %v3543, %v4827
      %v5084 = vadd.f32 %v3544, %v4828
      %v5085 = vadd.f32 %v3545, %v4829
      %v5086 = vadd.f32 %v3546, %v4830
      %v5087 = vadd.f32 %v3547, %v4831
      %v5088 = vadd.f32 %v3548, %v4832
      %v5089 = vadd.f32 %v3549, %v4833
      %v5090 = vadd.f32 %v3550, %v4834
      %v5091 = vadd.f32 %v3551, %v4835
      %v5092 = vadd.f32 %v3552, %v4836
      %v5093 = vadd.f32 %v3553, %v4837
      %v5094 = vadd.f32 %v3554, %v4838
      %v5095 = vadd.f32 %v3555, %v4839
      %v5096 = vadd.f32 %v3556, %v4840
      %v5097 = vadd.f32 %v3557, %v4841
      %v5098 = vadd.f32 %v3558, %v4842
      %v5099 = vadd.f32 %v3559, %v4843
      %v5100 = vadd.f32 %v3560, %v4844
      %v5101 = vadd.f32 %v3561, %v4845
      %v5102 = vadd.f32 %v3562, %v4846
      %v5103 = vadd.f32 %v3563, %v4847
      %v5104 = vadd.f32 %v3564, %v4848
      %v5105 = vadd.f32 %v3565, %v4849
      %v5106 = vadd.f32 %v3566, %v4850
      %v5107 = vadd.f32 %v3567, %v4851
      %v5108 = vadd.f32 %v3568, %v4852
      %v5109 = vadd.f32 %v3569, %v4853
      %v5110 = vadd.f32 %v3570, %v4854
      %v5111 = vadd.f32 %v3571, %v4855
      %v5112 = vadd.f32 %v3572, %v4856
      %v5113 = vadd.f32 %v3573, %v4857
      %v5114 = vadd.f32 %v3574, %v4858
      %v5115 = vadd.f32 %v3575, %v4859
      %v5116 = vadd.f32 %v3576, %v4860
      %v5117 = vadd.f32 %v3577, %v4861
      %v5118 = vadd.f32 %v3578, %v4862
      %v5119 = vadd.f32 %v3579, %v4863
      %v5120 = vadd.f32 %v3580, %v4864
      %v5121 = vadd.f32 %v3581, %v4865
      %v5122 = vadd.f32 %v3582, %v4866
      %v5123 = vadd.f32 %v3583, %v4867
      %v5124 = vadd.f32 %v3584, %v4868
      %v5125 = vadd.f32 %v3585, %v4869
      %v5126 = vadd.f32 %v3586, %v4870
      %v5127 = vadd.f32 %v3587, %v4871
      %v5128 = vadd.f32 %v3588, %v4872
      %v5129 = vadd.f32 %v3589, %v4873
      %v5130 = vadd.f32 %v3590, %v4874
      %v5131 = vadd.f32 %v3591, %v4875
      %v5132 = vadd.f32 %v3592, %v4876
      %v5133 = vadd.f32 %v3593, %v4877
      %v5134 = vadd.f32 %v3594, %v4878
      %v5135 = vadd.f32 %v3595, %v4879
      %v5136 = vadd.f32 %v3596, %v4880
      %v5137 = vadd.f32 %v3597, %v4881
      %v5138 = vadd.f32 %v3598, %v4882
      %v5139 = vadd.f32 %v3599, %v4883
      %v5140 = vadd.f32 %v3600, %v4884
      %v5141 = vadd.f32 %v3601, %v4885
      %v5142 = vadd.f32 %v3602, %v4886
      %v5143 = vadd.f32 %v3603, %v4887
      %v5144 = vadd.f32 %v3604, %v4888
      %v5145 = vadd.f32 %v3605, %v4889
      %v5146 = vadd.f32 %v3606, %v4890
      %v5147 = vadd.f32 %v3607, %v4891
      %v5148 = vadd.f32 %v3608, %v4892
      %v5149 = vadd.f32 %v3609, %v4893
      %v5150 = vadd.f32 %v3610, %v4894
      %v5151 = vadd.f32 %v3611, %v4895
      %v5152 = vadd.f32 %v3612, %v4896
      %v5153 = vadd.f32 %v3613, %v4897
      %v5154 = vadd.f32 %v3614, %v4898
      %v5155 = vadd.f32 %v3615, %v4899
      %v5156 = vadd.f32 %v3616, %v4900
      %v5157 = vadd.f32 %v3617, %v4901
      %v5158 = vadd.f32 %v3618, %v4902
      %v5159 = vadd.f32 %v3619, %v4903
      %v5160 = vadd.f32 %v3620, %v4904
      %v5161 = vadd.f32 %v3621, %v4905
      %v5162 = vadd.f32 %v3622, %v4906
      %v5163 = vadd.f32 %v3623, %v4907
      %v5164 = vadd.f32 %v3624, %v4908
      %v5165 = vadd.f32 %v3625, %v4909
      %v5166 = vadd.f32 %v3626, %v4910
      %v5167 = vadd.f32 %v3627, %v4911
      %v5168 = vadd.f32 %v3628, %v4912
      %v5169 = vadd.f32 %v3629, %v4913
      %v5170 = vadd.f32 %v3630, %v4914
      %v5171 = vadd.f32 %v3631, %v4915
      %v5172 = vadd.f32 %v3632, %v4916
      %v5173 = vadd.f32 %v3633, %v4917
      %v5174 = vadd.f32 %v3634, %v4918
      %v5175 = vadd.f32 %v3635, %v4919
      %v5176 = vadd.f32 %v3636, %v4920
      %v5177 = vadd.f32 %v3637, %v4921
      %v5178 = vadd.f32 %v3638, %v4922
      %v5179 = vadd.f32 %v3639, %v4923
      %v5180 = vadd.f32 %v3640, %v4924
      %v5181 = vadd.f32 %v3641, %v4925
      %v5182 = vadd.f32 %v3642, %v4926
      %v5183 = vadd.f32 %v3643, %v4927
      %v5184 = vadd.f32 %v3644, %v4928
      %v5185 = vadd.f32 %v3645, %v4929
      %v5186 = vadd.f32 %v3646, %v4930
      %v5187 = vadd.f32 %v3647, %v4931
      %v5188 = vadd.f32 %v3648, %v4932
      %v5189 = vadd.f32 %v3649, %v4933
      %v5190 = vadd.f32 %v3650, %v4934
      %v5191 = vadd.f32 %v3651, %v4935
      %v5192 = vadd.f32 %v3652, %v4936
      %v5193 = vadd.f32 %v3653, %v4937
      %v5194 = vadd.f32 %v3654, %v4938
      %v5195 = vadd.f32 %v3655, %v4939
      %v5196 = vadd.f32 %v3656, %v4940
      %v5197 = vadd.f32 %v3657, %v4941
      %v5198 = vadd.f32 %v3658, %v4942
      %v5199 = vadd.f32 %v3659, %v4943
      %v5200 = vadd.f32 %v3660, %v4944
      %v5201 = vadd.f32 %v3661, %v4945
      %v5202 = vadd.f32 %v3662, %v4946
      %v5203 = vadd.f32 %v3663, %v4947
      %v5204 = vadd.f32 %v3664, %v4948
      %v5205 = vadd.f32 %v3665, %v4949
      %v5206 = vadd.f32 %v3666, %v4950
      %v5207 = vadd.f32 %v3667, %v4951
      %v5208 = vadd.f32 %v3668, %v4952
      %v5209 = vadd.f32 %v3669, %v4953
      %v5210 = vadd.f32 %v3670, %v4954
      %v5211 = vadd.f32 %v3671, %v4955
      %v5212 = vadd.f32 %v3672, %v4956
      %v5213 = vadd.f32 %v3673, %v4957
      %v5214 = vadd.f32 %v3674, %v4958
      %v5215 = vadd.f32 %v3675, %v4959
      %v5216 = vadd.f32 %v3676, %v4960
      %v5217 = vadd.f32 %v3677, %v4961
      %v5218 = vadd.f32 %v3678, %v4962
      %v5219 = vadd.f32 %v3679, %v4963
      %v5220 = vadd.f32 %v3680, %v4964
      %v5221 = vadd.f32 %v3681, %v4965
      %v5222 = vadd.f32 %v3682, %v4966
      %v5223 = vadd.f32 %v3683, %v4967
      %v5224 = vadd.f32 %v3684, %v4968
      %v5225 = vadd.f32 %v3685, %v4969
      %v5226 = vadd.f32 %v3686, %v4970
      %v5227 = vadd.f32 %v3687, %v4971
      %v5228 = vadd.f32 %v3688, %v4972
      %v5229 = vadd.f32 %v3689, %v4973
      %v5230 = vadd.f32 %v3690, %v4974
      %v5231 = vadd.f32 %v3691, %v4975
      %v5232 = vadd.f32 %v3692, %v4976
      %v5233 = vadd.f32 %v3693, %v4977
      %v5234 = vadd.f32 %v3694, %v4978
      %v5235 = vadd.f32 %v3695, %v4979
      %v5236 = vadd.f32 %v3696, %v4980
      %v5237 = vadd.f32 %v3697, %v4981
      %v5238 = vadd.f32 %v3698, %v4982
      %v5239 = vadd.f32 %v3699, %v4983
      %v5240 = vadd.f32 %v3700, %v4984
      %v5241 = vadd.f32 %v3701, %v4985
      %v5242 = vadd.f32 %v3702, %v4986
      %v5243 = vadd.f32 %v3703, %v4987
      %v5244 = vadd.f32 %v3704, %v4988
      %v5245 = vadd.f32 %v3705, %v4989
      %v5246 = vadd.f32 %v3706, %v4990
      %v5247 = vadd.f32 %v3707, %v4991
      %v5248 = vadd.f32 %v3708, %v4992
      %v5249 = vadd.f32 %v3709, %v4993
      %v5250 = vadd.f32 %v3710, %v4994
      %v5251 = vadd.f32 %v3711, %v4995
      %v5252 = vadd.f32 %v3712, %v4996
      %v5253 = vadd.f32 %v3713, %v4997
      %v5254 = vadd.f32 %v3714, %v4998
      %v5255 = vadd.f32 %v3715, %v4999
      %v5256 = vadd.f32 %v3716, %v5000
      %v5257 = vadd.f32 %v3717, %v5001
      %v5258 = vadd.f32 %v3718, %v5002
      %v5259 = vadd.f32 %v3719, %v5003
      %v5260 = vadd.f32 %v3720, %v5004
      %v5261 = vadd.f32 %v3721, %v5005
      %v5262 = vadd.f32 %v3722, %v5006
      %v5263 = vadd.f32 %v3723, %v5007
      %v5264 = vadd.f32 %v3724, %v5008
      %v5265 = vadd.f32 %v3725, %v5009
      %v5266 = vadd.f32 %v3726, %v5010
      %v5267 = vadd.f32 %v3727, %v5011
      %v5268 = vadd.f32 %v3728, %v5012
      %v5269 = vadd.f32 %v3729, %v5013
      %v5270 = vadd.f32 %v3730, %v5014
      %v5271 = vadd.f32 %v3731, %v5015
      %v5272 = vadd.f32 %v3732, %v5016
      %v5273 = vadd.f32 %v3733, %v5017
      %v5274 = vadd.f32 %v3734, %v5018
      %v5275 = vadd.f32 %v3735, %v5019
      %v5276 = vadd.f32 %v3736, %v5020
      %v5277 = vadd.f32 %v3737, %v5021
      %v5278 = vadd.f32 %v3738, %v5022
      %v5279 = vadd.f32 %v3739, %v5023
      %v5280 = vadd.f32 %v3740, %v5024
      %v5281 = vadd.f32 %v3741, %v5025
      %v5282 = vadd.f32 %v3742, %v5026
      %v5283 = vadd.f32 %v3743, %v5027
      %v5284 = vadd.f32 %v3744, %v5028
      %v5285 = vadd.f32 %v3745, %v5029
      %v5286 = vadd.f32 %v3746, %v5030
      %v5287 = vadd.f32 %v3747, %v5031
      %v5288 = vadd.f32 %v3748, %v5032
      %v5289 = vadd.f32 %v3749, %v5033
      %v5290 = vadd.f32 %v3750, %v5034
      %v5291 = vadd.f32 %v3751, %v5035
      %v5292 = vadd.f32 %v3752, %v5036
      %v5293 = vadd.f32 %v3753, %v5037
      %v5294 = vadd.f32 %v3754, %v5038
      %v5295 = vadd.f32 %v3755, %v5039
      %v5296 = vadd.f32 %v3756, %v5040
      %v5297 = vadd.f32 %v3757, %v5041
      %v5298 = vadd.f32 %v3758, %v5042
      %v5299 = vadd.f32 %v3759, %v5043
      %v5300 = vadd.f32 %v3760, %v5044
      %v5301 = vadd.f32 %v3761, %v5045
      %v5302 = vadd.f32 %v3762, %v5046
      %v5303 = vadd.f32 %v3763, %v5047
      %v5304 = vadd.f32 %v3764, %v5048
      %v5305 = vadd.f32 %v3765, %v5049
      %v5306 = vadd.f32 %v3766, %v5050
      %v5307 = vadd.f32 %v3767, %v5051
      %v5308 = vadd.f32 %v3768, %v5052
      %v5309 = vadd.f32 %v3769, %v5053
      %v5310 = vadd.f32 %v3770, %v5054
      %v5311 = vadd.f32 %v3771, %v5055
      %v5312 = vadd.f32 %v3772, %v5056
      %v5313 = vadd.f32 %v3773, %v5057
      %v5314 = vadd.f32 %v3774, %v5058
      %v5315 = vadd.f32 %v3775, %v5059
      %v5316 = vadd.f32 %v3776, %v5060
      %v5317 = vadd.f32 %v3777, %v5061
      %v5318 = vadd.f32 %v3778, %v5062
      %v5319 = vadd.f32 %v3779, %v5063
      %v5320 = vadd.f32 %v3780, %v5064
      %5321 = vset.pattern.permute.xlu0 3
      %5322 = vperm.xlu0 %5321, %v443
      %v5323 = vpop.permute.xlu0 %5322
      %5325 = vset.pattern.permute.xlu0 3
      %5326 = vperm.xlu0 %5325, %v444
      %v5327 = vpop.permute.xlu0 %5326
      %5329 = vset.pattern.permute.xlu0 3
      %5330 = vperm.xlu0 %5329, %v445
      %v5331 = vpop.permute.xlu0 %5330
      %5333 = vset.pattern.permute.xlu0 3
      %5334 = vperm.xlu0 %5333, %v446
      %v5335 = vpop.permute.xlu0 %5334
      %5337 = vset.pattern.permute.xlu0 3
      %5338 = vperm.xlu0 %5337, %v447
      %v5339 = vpop.permute.xlu0 %5338
      %5341 = vset.pattern.permute.xlu0 3
      %5342 = vperm.xlu0 %5341, %v448
      %v5343 = vpop.permute.xlu0 %5342
      %5345 = vset.pattern.permute.xlu0 3
      %5346 = vperm.xlu0 %5345, %v449
      %v5347 = vpop.permute.xlu0 %5346
      %5349 = vset.pattern.permute.xlu0 3
      %5350 = vperm.xlu0 %5349, %v450
      %v5351 = vpop.permute.xlu0 %5350
      %5353 = vset.pattern.permute.xlu0 3
      %5354 = vperm.xlu0 %5353, %v451
      %v5355 = vpop.permute.xlu0 %5354
      %5357 = vset.pattern.permute.xlu0 3
      %5358 = vperm.xlu0 %5357, %v452
      %v5359 = vpop.permute.xlu0 %5358
      %5361 = vset.pattern.permute.xlu0 3
      %5362 = vperm.xlu0 %5361, %v453
      %v5363 = vpop.permute.xlu0 %5362
      %5365 = vset.pattern.permute.xlu0 3
      %5366 = vperm.xlu0 %5365, %v454
      %v5367 = vpop.permute.xlu0 %5366
      %5369 = vset.pattern.permute.xlu0 3
      %5370 = vperm.xlu0 %5369, %v455
      %v5371 = vpop.permute.xlu0 %5370
      %5373 = vset.pattern.permute.xlu0 3
      %5374 = vperm.xlu0 %5373, %v456
      %v5375 = vpop.permute.xlu0 %5374
      %5377 = vset.pattern.permute.xlu0 3
      %5378 = vperm.xlu0 %5377, %v457
      %v5379 = vpop.permute.xlu0 %5378
      %5381 = vset.pattern.permute.xlu0 3
      %5382 = vperm.xlu0 %5381, %v458
      %v5383 = vpop.permute.xlu0 %5382
      %5385 = vset.pattern.permute.xlu0 3
      %5386 = vperm.xlu0 %5385, %v459
      %v5387 = vpop.permute.xlu0 %5386
      %5389 = vset.pattern.permute.xlu0 3
      %5390 = vperm.xlu0 %5389, %v460
      %v5391 = vpop.permute.xlu0 %5390
      %5393 = vset.pattern.permute.xlu0 3
      %5394 = vperm.xlu0 %5393, %v461
      %v5395 = vpop.permute.xlu0 %5394
      %5397 = vset.pattern.permute.xlu0 3
      %5398 = vperm.xlu0 %5397, %v462
      %v5399 = vpop.permute.xlu0 %5398
      %5401 = vset.pattern.permute.xlu0 3
      %5402 = vperm.xlu0 %5401, %v463
      %v5403 = vpop.permute.xlu0 %5402
      %5405 = vset.pattern.permute.xlu0 3
      %5406 = vperm.xlu0 %5405, %v464
      %v5407 = vpop.permute.xlu0 %5406
      %5409 = vset.pattern.permute.xlu0 3
      %5410 = vperm.xlu0 %5409, %v465
      %v5411 = vpop.permute.xlu0 %5410
      %5413 = vset.pattern.permute.xlu0 3
      %5414 = vperm.xlu0 %5413, %v466
      %v5415 = vpop.permute.xlu0 %5414
      %5417 = vset.pattern.permute.xlu0 3
      %5418 = vperm.xlu0 %5417, %v467
      %v5419 = vpop.permute.xlu0 %5418
      %5421 = vset.pattern.permute.xlu0 3
      %5422 = vperm.xlu0 %5421, %v468
      %v5423 = vpop.permute.xlu0 %5422
      %5425 = vset.pattern.permute.xlu0 3
      %5426 = vperm.xlu0 %5425, %v469
      %v5427 = vpop.permute.xlu0 %5426
      %5429 = vset.pattern.permute.xlu0 3
      %5430 = vperm.xlu0 %5429, %v470
      %v5431 = vpop.permute.xlu0 %5430
      %5433 = vset.pattern.permute.xlu0 3
      %5434 = vperm.xlu0 %5433, %v471
      %v5435 = vpop.permute.xlu0 %5434
      %5437 = vset.pattern.permute.xlu0 3
      %5438 = vperm.xlu0 %5437, %v472
      %v5439 = vpop.permute.xlu0 %5438
      %5441 = vset.pattern.permute.xlu0 3
      %5442 = vperm.xlu0 %5441, %v473
      %v5443 = vpop.permute.xlu0 %5442
      %5445 = vset.pattern.permute.xlu0 3
      %5446 = vperm.xlu0 %5445, %v474
      %v5447 = vpop.permute.xlu0 %5446
      %5449 = vset.pattern.permute.xlu0 3
      %5450 = vperm.xlu0 %5449, %v475
      %v5451 = vpop.permute.xlu0 %5450
      %5453 = vset.pattern.permute.xlu0 3
      %5454 = vperm.xlu0 %5453, %v476
      %v5455 = vpop.permute.xlu0 %5454
      %5457 = vset.pattern.permute.xlu0 3
      %5458 = vperm.xlu0 %5457, %v477
      %v5459 = vpop.permute.xlu0 %5458
      %5461 = vset.pattern.permute.xlu0 3
      %5462 = vperm.xlu0 %5461, %v478
      %v5463 = vpop.permute.xlu0 %5462
      %5465 = vset.pattern.permute.xlu0 3
      %5466 = vperm.xlu0 %5465, %v479
      %v5467 = vpop.permute.xlu0 %5466
      %5469 = vset.pattern.permute.xlu0 3
      %5470 = vperm.xlu0 %5469, %v480
      %v5471 = vpop.permute.xlu0 %5470
      %5473 = vset.pattern.permute.xlu0 3
      %5474 = vperm.xlu0 %5473, %v481
      %v5475 = vpop.permute.xlu0 %5474
      %5477 = vset.pattern.permute.xlu0 3
      %5478 = vperm.xlu0 %5477, %v482
      %v5479 = vpop.permute.xlu0 %5478
      %5481 = vset.pattern.permute.xlu0 3
      %5482 = vperm.xlu0 %5481, %v483
      %v5483 = vpop.permute.xlu0 %5482
      %5485 = vset.pattern.permute.xlu0 3
      %5486 = vperm.xlu0 %5485, %v484
      %v5487 = vpop.permute.xlu0 %5486
      %5489 = vset.pattern.permute.xlu0 3
      %5490 = vperm.xlu0 %5489, %v485
      %v5491 = vpop.permute.xlu0 %5490
      %5493 = vset.pattern.permute.xlu0 3
      %5494 = vperm.xlu0 %5493, %v486
      %v5495 = vpop.permute.xlu0 %5494
      %5497 = vset.pattern.permute.xlu0 3
      %5498 = vperm.xlu0 %5497, %v487
      %v5499 = vpop.permute.xlu0 %5498
      %5501 = vset.pattern.permute.xlu0 3
      %5502 = vperm.xlu0 %5501, %v488
      %v5503 = vpop.permute.xlu0 %5502
      %5505 = vset.pattern.permute.xlu0 3
      %5506 = vperm.xlu0 %5505, %v489
      %v5507 = vpop.permute.xlu0 %5506
      %5509 = vset.pattern.permute.xlu0 3
      %5510 = vperm.xlu0 %5509, %v490
      %v5511 = vpop.permute.xlu0 %5510
      %5513 = vset.pattern.permute.xlu0 3
      %5514 = vperm.xlu0 %5513, %v491
      %v5515 = vpop.permute.xlu0 %5514
      %5517 = vset.pattern.permute.xlu0 3
      %5518 = vperm.xlu0 %5517, %v492
      %v5519 = vpop.permute.xlu0 %5518
      %5521 = vset.pattern.permute.xlu0 3
      %5522 = vperm.xlu0 %5521, %v493
      %v5523 = vpop.permute.xlu0 %5522
      %5525 = vset.pattern.permute.xlu0 3
      %5526 = vperm.xlu0 %5525, %v494
      %v5527 = vpop.permute.xlu0 %5526
      %5529 = vset.pattern.permute.xlu0 3
      %5530 = vperm.xlu0 %5529, %v495
      %v5531 = vpop.permute.xlu0 %5530
      %5533 = vset.pattern.permute.xlu0 3
      %5534 = vperm.xlu0 %5533, %v496
      %v5535 = vpop.permute.xlu0 %5534
      %5537 = vset.pattern.permute.xlu0 3
      %5538 = vperm.xlu0 %5537, %v497
      %v5539 = vpop.permute.xlu0 %5538
      %5541 = vset.pattern.permute.xlu0 3
      %5542 = vperm.xlu0 %5541, %v498
      %v5543 = vpop.permute.xlu0 %5542
      %5545 = vset.pattern.permute.xlu0 3
      %5546 = vperm.xlu0 %5545, %v499
      %v5547 = vpop.permute.xlu0 %5546
      %5549 = vset.pattern.permute.xlu0 3
      %5550 = vperm.xlu0 %5549, %v500
      %v5551 = vpop.permute.xlu0 %5550
      %5553 = vset.pattern.permute.xlu0 3
      %5554 = vperm.xlu0 %5553, %v501
      %v5555 = vpop.permute.xlu0 %5554
      %5557 = vset.pattern.permute.xlu0 3
      %5558 = vperm.xlu0 %5557, %v502
      %v5559 = vpop.permute.xlu0 %5558
      %5561 = vset.pattern.permute.xlu0 3
      %5562 = vperm.xlu0 %5561, %v503
      %v5563 = vpop.permute.xlu0 %5562
      %5565 = vset.pattern.permute.xlu0 3
      %5566 = vperm.xlu0 %5565, %v504
      %v5567 = vpop.permute.xlu0 %5566
      %5569 = vset.pattern.permute.xlu0 3
      %5570 = vperm.xlu0 %5569, %v505
      %v5571 = vpop.permute.xlu0 %5570
      %5573 = vset.pattern.permute.xlu0 3
      %5574 = vperm.xlu0 %5573, %v506
      %v5575 = vpop.permute.xlu0 %5574
      %5577 = vset.pattern.permute.xlu0 3
      %5578 = vperm.xlu0 %5577, %v507
      %v5579 = vpop.permute.xlu0 %5578
      %5581 = vset.pattern.permute.xlu0 3
      %5582 = vperm.xlu0 %5581, %v508
      %v5583 = vpop.permute.xlu0 %5582
      %5585 = vset.pattern.permute.xlu0 3
      %5586 = vperm.xlu0 %5585, %v509
      %v5587 = vpop.permute.xlu0 %5586
      %5589 = vset.pattern.permute.xlu0 3
      %5590 = vperm.xlu0 %5589, %v510
      %v5591 = vpop.permute.xlu0 %5590
      %5593 = vset.pattern.permute.xlu0 3
      %5594 = vperm.xlu0 %5593, %v511
      %v5595 = vpop.permute.xlu0 %5594
      %5597 = vset.pattern.permute.xlu0 3
      %5598 = vperm.xlu0 %5597, %v512
      %v5599 = vpop.permute.xlu0 %5598
      %5601 = vset.pattern.permute.xlu0 3
      %5602 = vperm.xlu0 %5601, %v513
      %v5603 = vpop.permute.xlu0 %5602
      %5605 = vset.pattern.permute.xlu0 3
      %5606 = vperm.xlu0 %5605, %v514
      %v5607 = vpop.permute.xlu0 %5606
      %5609 = vset.pattern.permute.xlu0 3
      %5610 = vperm.xlu0 %5609, %v515
      %v5611 = vpop.permute.xlu0 %5610
      %5613 = vset.pattern.permute.xlu0 3
      %5614 = vperm.xlu0 %5613, %v516
      %v5615 = vpop.permute.xlu0 %5614
      %5617 = vset.pattern.permute.xlu0 3
      %5618 = vperm.xlu0 %5617, %v517
      %v5619 = vpop.permute.xlu0 %5618
      %5621 = vset.pattern.permute.xlu0 3
      %5622 = vperm.xlu0 %5621, %v518
      %v5623 = vpop.permute.xlu0 %5622
      %5625 = vset.pattern.permute.xlu0 3
      %5626 = vperm.xlu0 %5625, %v519
      %v5627 = vpop.permute.xlu0 %5626
      %5629 = vset.pattern.permute.xlu0 3
      %5630 = vperm.xlu0 %5629, %v520
      %v5631 = vpop.permute.xlu0 %5630
      %5633 = vset.pattern.permute.xlu0 3
      %5634 = vperm.xlu0 %5633, %v521
      %v5635 = vpop.permute.xlu0 %5634
      %5637 = vset.pattern.permute.xlu0 3
      %5638 = vperm.xlu0 %5637, %v522
      %v5639 = vpop.permute.xlu0 %5638
      %5641 = vset.pattern.permute.xlu0 3
      %5642 = vperm.xlu0 %5641, %v523
      %v5643 = vpop.permute.xlu0 %5642
      %5645 = vset.pattern.permute.xlu0 3
      %5646 = vperm.xlu0 %5645, %v524
      %v5647 = vpop.permute.xlu0 %5646
      %5649 = vset.pattern.permute.xlu0 3
      %5650 = vperm.xlu0 %5649, %v525
      %v5651 = vpop.permute.xlu0 %5650
      %5653 = vset.pattern.permute.xlu0 3
      %5654 = vperm.xlu0 %5653, %v526
      %v5655 = vpop.permute.xlu0 %5654
      %5657 = vset.pattern.permute.xlu0 3
      %5658 = vperm.xlu0 %5657, %v527
      %v5659 = vpop.permute.xlu0 %5658
      %5661 = vset.pattern.permute.xlu0 3
      %5662 = vperm.xlu0 %5661, %v528
      %v5663 = vpop.permute.xlu0 %5662
      %5665 = vset.pattern.permute.xlu0 3
      %5666 = vperm.xlu0 %5665, %v529
      %v5667 = vpop.permute.xlu0 %5666
      %5669 = vset.pattern.permute.xlu0 3
      %5670 = vperm.xlu0 %5669, %v530
      %v5671 = vpop.permute.xlu0 %5670
      %5673 = vset.pattern.permute.xlu0 3
      %5674 = vperm.xlu0 %5673, %v531
      %v5675 = vpop.permute.xlu0 %5674
      %5677 = vset.pattern.permute.xlu0 3
      %5678 = vperm.xlu0 %5677, %v532
      %v5679 = vpop.permute.xlu0 %5678
      %5681 = vset.pattern.permute.xlu0 3
      %5682 = vperm.xlu0 %5681, %v533
      %v5683 = vpop.permute.xlu0 %5682
      %5685 = vset.pattern.permute.xlu0 3
      %5686 = vperm.xlu0 %5685, %v534
      %v5687 = vpop.permute.xlu0 %5686
      %5689 = vset.pattern.permute.xlu0 3
      %5690 = vperm.xlu0 %5689, %v535
      %v5691 = vpop.permute.xlu0 %5690
      %5693 = vset.pattern.permute.xlu0 3
      %5694 = vperm.xlu0 %5693, %v536
      %v5695 = vpop.permute.xlu0 %5694
      %5697 = vset.pattern.permute.xlu0 3
      %5698 = vperm.xlu0 %5697, %v537
      %v5699 = vpop.permute.xlu0 %5698
      %5701 = vset.pattern.permute.xlu0 3
      %5702 = vperm.xlu0 %5701, %v538
      %v5703 = vpop.permute.xlu0 %5702
      %5705 = vset.pattern.permute.xlu0 3
      %5706 = vperm.xlu0 %5705, %v539
      %v5707 = vpop.permute.xlu0 %5706
      %5709 = vset.pattern.permute.xlu0 3
      %5710 = vperm.xlu0 %5709, %v540
      %v5711 = vpop.permute.xlu0 %5710
      %5713 = vset.pattern.permute.xlu0 3
      %5714 = vperm.xlu0 %5713, %v541
      %v5715 = vpop.permute.xlu0 %5714
      %5717 = vset.pattern.permute.xlu0 3
      %5718 = vperm.xlu0 %5717, %v542
      %v5719 = vpop.permute.xlu0 %5718
      %5721 = vset.pattern.permute.xlu0 3
      %5722 = vperm.xlu0 %5721, %v543
      %v5723 = vpop.permute.xlu0 %5722
      %5725 = vset.pattern.permute.xlu0 3
      %5726 = vperm.xlu0 %5725, %v544
      %v5727 = vpop.permute.xlu0 %5726
      %5729 = vset.pattern.permute.xlu0 3
      %5730 = vperm.xlu0 %5729, %v545
      %v5731 = vpop.permute.xlu0 %5730
      %5733 = vset.pattern.permute.xlu0 3
      %5734 = vperm.xlu0 %5733, %v546
      %v5735 = vpop.permute.xlu0 %5734
      %5737 = vset.pattern.permute.xlu0 3
      %5738 = vperm.xlu0 %5737, %v547
      %v5739 = vpop.permute.xlu0 %5738
      %5741 = vset.pattern.permute.xlu0 3
      %5742 = vperm.xlu0 %5741, %v548
      %v5743 = vpop.permute.xlu0 %5742
      %5745 = vset.pattern.permute.xlu0 3
      %5746 = vperm.xlu0 %5745, %v549
      %v5747 = vpop.permute.xlu0 %5746
      %5749 = vset.pattern.permute.xlu0 3
      %5750 = vperm.xlu0 %5749, %v550
      %v5751 = vpop.permute.xlu0 %5750
      %5753 = vset.pattern.permute.xlu0 3
      %5754 = vperm.xlu0 %5753, %v551
      %v5755 = vpop.permute.xlu0 %5754
      %5757 = vset.pattern.permute.xlu0 3
      %5758 = vperm.xlu0 %5757, %v552
      %v5759 = vpop.permute.xlu0 %5758
      %5761 = vset.pattern.permute.xlu0 3
      %5762 = vperm.xlu0 %5761, %v553
      %v5763 = vpop.permute.xlu0 %5762
      %5765 = vset.pattern.permute.xlu0 3
      %5766 = vperm.xlu0 %5765, %v554
      %v5767 = vpop.permute.xlu0 %5766
      %5769 = vset.pattern.permute.xlu0 3
      %5770 = vperm.xlu0 %5769, %v555
      %v5771 = vpop.permute.xlu0 %5770
      %5773 = vset.pattern.permute.xlu0 3
      %5774 = vperm.xlu0 %5773, %v556
      %v5775 = vpop.permute.xlu0 %5774
      %5777 = vset.pattern.permute.xlu0 3
      %5778 = vperm.xlu0 %5777, %v557
      %v5779 = vpop.permute.xlu0 %5778
      %5781 = vset.pattern.permute.xlu0 3
      %5782 = vperm.xlu0 %5781, %v558
      %v5783 = vpop.permute.xlu0 %5782
      %5785 = vset.pattern.permute.xlu0 3
      %5786 = vperm.xlu0 %5785, %v559
      %v5787 = vpop.permute.xlu0 %5786
      %5789 = vset.pattern.permute.xlu0 3
      %5790 = vperm.xlu0 %5789, %v560
      %v5791 = vpop.permute.xlu0 %5790
      %5793 = vset.pattern.permute.xlu0 3
      %5794 = vperm.xlu0 %5793, %v561
      %v5795 = vpop.permute.xlu0 %5794
      %5797 = vset.pattern.permute.xlu0 3
      %5798 = vperm.xlu0 %5797, %v562
      %v5799 = vpop.permute.xlu0 %5798
      %5801 = vset.pattern.permute.xlu0 3
      %5802 = vperm.xlu0 %5801, %v563
      %v5803 = vpop.permute.xlu0 %5802
      %5805 = vset.pattern.permute.xlu0 3
      %5806 = vperm.xlu0 %5805, %v564
      %v5807 = vpop.permute.xlu0 %5806
      %5809 = vset.pattern.permute.xlu0 3
      %5810 = vperm.xlu0 %5809, %v565
      %v5811 = vpop.permute.xlu0 %5810
      %5813 = vset.pattern.permute.xlu0 3
      %5814 = vperm.xlu0 %5813, %v566
      %v5815 = vpop.permute.xlu0 %5814
      %5817 = vset.pattern.permute.xlu0 3
      %5818 = vperm.xlu0 %5817, %v567
      %v5819 = vpop.permute.xlu0 %5818
      %5821 = vset.pattern.permute.xlu0 3
      %5822 = vperm.xlu0 %5821, %v568
      %v5823 = vpop.permute.xlu0 %5822
      %5825 = vset.pattern.permute.xlu0 3
      %5826 = vperm.xlu0 %5825, %v569
      %v5827 = vpop.permute.xlu0 %5826
      %5829 = vset.pattern.permute.xlu0 3
      %5830 = vperm.xlu0 %5829, %v570
      %v5831 = vpop.permute.xlu0 %5830
      %5833 = vset.pattern.permute.xlu0 3
      %5834 = vperm.xlu0 %5833, %v571
      %v5835 = vpop.permute.xlu0 %5834
      %5837 = vset.pattern.permute.xlu0 3
      %5838 = vperm.xlu0 %5837, %v572
      %v5839 = vpop.permute.xlu0 %5838
      %5841 = vset.pattern.permute.xlu0 3
      %5842 = vperm.xlu0 %5841, %v573
      %v5843 = vpop.permute.xlu0 %5842
      %5845 = vset.pattern.permute.xlu0 3
      %5846 = vperm.xlu0 %5845, %v574
      %v5847 = vpop.permute.xlu0 %5846
      %5849 = vset.pattern.permute.xlu0 3
      %5850 = vperm.xlu0 %5849, %v575
      %v5851 = vpop.permute.xlu0 %5850
      %5853 = vset.pattern.permute.xlu0 3
      %5854 = vperm.xlu0 %5853, %v576
      %v5855 = vpop.permute.xlu0 %5854
      %5857 = vset.pattern.permute.xlu0 3
      %5858 = vperm.xlu0 %5857, %v577
      %v5859 = vpop.permute.xlu0 %5858
      %5861 = vset.pattern.permute.xlu0 3
      %5862 = vperm.xlu0 %5861, %v578
      %v5863 = vpop.permute.xlu0 %5862
      %5865 = vset.pattern.permute.xlu0 3
      %5866 = vperm.xlu0 %5865, %v579
      %v5867 = vpop.permute.xlu0 %5866
      %5869 = vset.pattern.permute.xlu0 3
      %5870 = vperm.xlu0 %5869, %v580
      %v5871 = vpop.permute.xlu0 %5870
      %5873 = vset.pattern.permute.xlu0 3
      %5874 = vperm.xlu0 %5873, %v581
      %v5875 = vpop.permute.xlu0 %5874
      %5877 = vset.pattern.permute.xlu0 3
      %5878 = vperm.xlu0 %5877, %v582
      %v5879 = vpop.permute.xlu0 %5878
      %5881 = vset.pattern.permute.xlu0 3
      %5882 = vperm.xlu0 %5881, %v583
      %v5883 = vpop.permute.xlu0 %5882
      %5885 = vset.pattern.permute.xlu0 3
      %5886 = vperm.xlu0 %5885, %v584
      %v5887 = vpop.permute.xlu0 %5886
      %5889 = vset.pattern.permute.xlu0 3
      %5890 = vperm.xlu0 %5889, %v585
      %v5891 = vpop.permute.xlu0 %5890
      %5893 = vset.pattern.permute.xlu0 3
      %5894 = vperm.xlu0 %5893, %v586
      %v5895 = vpop.permute.xlu0 %5894
      %5897 = vset.pattern.permute.xlu0 3
      %5898 = vperm.xlu0 %5897, %v587
      %v5899 = vpop.permute.xlu0 %5898
      %5901 = vset.pattern.permute.xlu0 3
      %5902 = vperm.xlu0 %5901, %v588
      %v5903 = vpop.permute.xlu0 %5902
      %5905 = vset.pattern.permute.xlu0 3
      %5906 = vperm.xlu0 %5905, %v589
      %v5907 = vpop.permute.xlu0 %5906
      %5909 = vset.pattern.permute.xlu0 3
      %5910 = vperm.xlu0 %5909, %v590
      %v5911 = vpop.permute.xlu0 %5910
      %5913 = vset.pattern.permute.xlu0 3
      %5914 = vperm.xlu0 %5913, %v591
      %v5915 = vpop.permute.xlu0 %5914
      %5917 = vset.pattern.permute.xlu0 3
      %5918 = vperm.xlu0 %5917, %v592
      %v5919 = vpop.permute.xlu0 %5918
      %5921 = vset.pattern.permute.xlu0 3
      %5922 = vperm.xlu0 %5921, %v593
      %v5923 = vpop.permute.xlu0 %5922
      %5925 = vset.pattern.permute.xlu0 3
      %5926 = vperm.xlu0 %5925, %v594
      %v5927 = vpop.permute.xlu0 %5926
      %5929 = vset.pattern.permute.xlu0 3
      %5930 = vperm.xlu0 %5929, %v595
      %v5931 = vpop.permute.xlu0 %5930
      %5933 = vset.pattern.permute.xlu0 3
      %5934 = vperm.xlu0 %5933, %v596
      %v5935 = vpop.permute.xlu0 %5934
      %5937 = vset.pattern.permute.xlu0 3
      %5938 = vperm.xlu0 %5937, %v597
      %v5939 = vpop.permute.xlu0 %5938
      %5941 = vset.pattern.permute.xlu0 3
      %5942 = vperm.xlu0 %5941, %v598
      %v5943 = vpop.permute.xlu0 %5942
      %5945 = vset.pattern.permute.xlu0 3
      %5946 = vperm.xlu0 %5945, %v599
      %v5947 = vpop.permute.xlu0 %5946
      %5949 = vset.pattern.permute.xlu0 3
      %5950 = vperm.xlu0 %5949, %v600
      %v5951 = vpop.permute.xlu0 %5950
      %5953 = vset.pattern.permute.xlu0 3
      %5954 = vperm.xlu0 %5953, %v601
      %v5955 = vpop.permute.xlu0 %5954
      %5957 = vset.pattern.permute.xlu0 3
      %5958 = vperm.xlu0 %5957, %v602
      %v5959 = vpop.permute.xlu0 %5958
      %5961 = vset.pattern.permute.xlu0 3
      %5962 = vperm.xlu0 %5961, %v603
      %v5963 = vpop.permute.xlu0 %5962
      %5965 = vset.pattern.permute.xlu0 3
      %5966 = vperm.xlu0 %5965, %v604
      %v5967 = vpop.permute.xlu0 %5966
      %5969 = vset.pattern.permute.xlu0 3
      %5970 = vperm.xlu0 %5969, %v605
      %v5971 = vpop.permute.xlu0 %5970
      %5973 = vset.pattern.permute.xlu0 3
      %5974 = vperm.xlu0 %5973, %v606
      %v5975 = vpop.permute.xlu0 %5974
      %5977 = vset.pattern.permute.xlu0 3
      %5978 = vperm.xlu0 %5977, %v607
      %v5979 = vpop.permute.xlu0 %5978
      %5981 = vset.pattern.permute.xlu0 3
      %5982 = vperm.xlu0 %5981, %v608
      %v5983 = vpop.permute.xlu0 %5982
      %5985 = vset.pattern.permute.xlu0 3
      %5986 = vperm.xlu0 %5985, %v609
      %v5987 = vpop.permute.xlu0 %5986
      %5989 = vset.pattern.permute.xlu0 3
      %5990 = vperm.xlu0 %5989, %v610
      %v5991 = vpop.permute.xlu0 %5990
      %5993 = vset.pattern.permute.xlu0 3
      %5994 = vperm.xlu0 %5993, %v611
      %v5995 = vpop.permute.xlu0 %5994
      %5997 = vset.pattern.permute.xlu0 3
      %5998 = vperm.xlu0 %5997, %v612
      %v5999 = vpop.permute.xlu0 %5998
      %6001 = vset.pattern.permute.xlu0 3
      %6002 = vperm.xlu0 %6001, %v613
      %v6003 = vpop.permute.xlu0 %6002
      %6005 = vset.pattern.permute.xlu0 3
      %6006 = vperm.xlu0 %6005, %v614
      %v6007 = vpop.permute.xlu0 %6006
      %6009 = vset.pattern.permute.xlu0 3
      %6010 = vperm.xlu0 %6009, %v615
      %v6011 = vpop.permute.xlu0 %6010
      %6013 = vset.pattern.permute.xlu0 3
      %6014 = vperm.xlu0 %6013, %v616
      %v6015 = vpop.permute.xlu0 %6014
      %6017 = vset.pattern.permute.xlu0 3
      %6018 = vperm.xlu0 %6017, %v617
      %v6019 = vpop.permute.xlu0 %6018
      %6021 = vset.pattern.permute.xlu0 3
      %6022 = vperm.xlu0 %6021, %v618
      %v6023 = vpop.permute.xlu0 %6022
      %6025 = vset.pattern.permute.xlu0 3
      %6026 = vperm.xlu0 %6025, %v619
      %v6027 = vpop.permute.xlu0 %6026
      %6029 = vset.pattern.permute.xlu0 3
      %6030 = vperm.xlu0 %6029, %v620
      %v6031 = vpop.permute.xlu0 %6030
      %6033 = vset.pattern.permute.xlu0 3
      %6034 = vperm.xlu0 %6033, %v621
      %v6035 = vpop.permute.xlu0 %6034
      %6037 = vset.pattern.permute.xlu0 3
      %6038 = vperm.xlu0 %6037, %v622
      %v6039 = vpop.permute.xlu0 %6038
      %6041 = vset.pattern.permute.xlu0 3
      %6042 = vperm.xlu0 %6041, %v623
      %v6043 = vpop.permute.xlu0 %6042
      %6045 = vset.pattern.permute.xlu0 3
      %6046 = vperm.xlu0 %6045, %v624
      %v6047 = vpop.permute.xlu0 %6046
      %6049 = vset.pattern.permute.xlu0 3
      %6050 = vperm.xlu0 %6049, %v625
      %v6051 = vpop.permute.xlu0 %6050
      %6053 = vset.pattern.permute.xlu0 3
      %6054 = vperm.xlu0 %6053, %v626
      %v6055 = vpop.permute.xlu0 %6054
      %6057 = vset.pattern.permute.xlu0 3
      %6058 = vperm.xlu0 %6057, %v627
      %v6059 = vpop.permute.xlu0 %6058
      %6061 = vset.pattern.permute.xlu0 3
      %6062 = vperm.xlu0 %6061, %v628
      %v6063 = vpop.permute.xlu0 %6062
      %6065 = vset.pattern.permute.xlu0 3
      %6066 = vperm.xlu0 %6065, %v629
      %v6067 = vpop.permute.xlu0 %6066
      %6069 = vset.pattern.permute.xlu0 3
      %6070 = vperm.xlu0 %6069, %v630
      %v6071 = vpop.permute.xlu0 %6070
      %6073 = vset.pattern.permute.xlu0 3
      %6074 = vperm.xlu0 %6073, %v631
      %v6075 = vpop.permute.xlu0 %6074
      %6077 = vset.pattern.permute.xlu0 3
      %6078 = vperm.xlu0 %6077, %v632
      %v6079 = vpop.permute.xlu0 %6078
      %6081 = vset.pattern.permute.xlu0 3
      %6082 = vperm.xlu0 %6081, %v633
      %v6083 = vpop.permute.xlu0 %6082
      %6085 = vset.pattern.permute.xlu0 3
      %6086 = vperm.xlu0 %6085, %v634
      %v6087 = vpop.permute.xlu0 %6086
      %6089 = vset.pattern.permute.xlu0 3
      %6090 = vperm.xlu0 %6089, %v635
      %v6091 = vpop.permute.xlu0 %6090
      %6093 = vset.pattern.permute.xlu0 3
      %6094 = vperm.xlu0 %6093, %v636
      %v6095 = vpop.permute.xlu0 %6094
      %6097 = vset.pattern.permute.xlu0 3
      %6098 = vperm.xlu0 %6097, %v637
      %v6099 = vpop.permute.xlu0 %6098
      %6101 = vset.pattern.permute.xlu0 3
      %6102 = vperm.xlu0 %6101, %v638
      %v6103 = vpop.permute.xlu0 %6102
      %6105 = vset.pattern.permute.xlu0 3
      %6106 = vperm.xlu0 %6105, %v639
      %v6107 = vpop.permute.xlu0 %6106
      %6109 = vset.pattern.permute.xlu0 3
      %6110 = vperm.xlu0 %6109, %v640
      %v6111 = vpop.permute.xlu0 %6110
      %6113 = vset.pattern.permute.xlu0 3
      %6114 = vperm.xlu0 %6113, %v641
      %v6115 = vpop.permute.xlu0 %6114
      %6117 = vset.pattern.permute.xlu0 3
      %6118 = vperm.xlu0 %6117, %v642
      %v6119 = vpop.permute.xlu0 %6118
      %6121 = vset.pattern.permute.xlu0 3
      %6122 = vperm.xlu0 %6121, %v643
      %v6123 = vpop.permute.xlu0 %6122
      %6125 = vset.pattern.permute.xlu0 3
      %6126 = vperm.xlu0 %6125, %v644
      %v6127 = vpop.permute.xlu0 %6126
      %6129 = vset.pattern.permute.xlu0 3
      %6130 = vperm.xlu0 %6129, %v645
      %v6131 = vpop.permute.xlu0 %6130
      %6133 = vset.pattern.permute.xlu0 3
      %6134 = vperm.xlu0 %6133, %v646
      %v6135 = vpop.permute.xlu0 %6134
      %6137 = vset.pattern.permute.xlu0 3
      %6138 = vperm.xlu0 %6137, %v647
      %v6139 = vpop.permute.xlu0 %6138
      %6141 = vset.pattern.permute.xlu0 3
      %6142 = vperm.xlu0 %6141, %v648
      %v6143 = vpop.permute.xlu0 %6142
      %6145 = vset.pattern.permute.xlu0 3
      %6146 = vperm.xlu0 %6145, %v649
      %v6147 = vpop.permute.xlu0 %6146
      %6149 = vset.pattern.permute.xlu0 3
      %6150 = vperm.xlu0 %6149, %v650
      %v6151 = vpop.permute.xlu0 %6150
      %6153 = vset.pattern.permute.xlu0 3
      %6154 = vperm.xlu0 %6153, %v651
      %v6155 = vpop.permute.xlu0 %6154
      %6157 = vset.pattern.permute.xlu0 3
      %6158 = vperm.xlu0 %6157, %v652
      %v6159 = vpop.permute.xlu0 %6158
      %6161 = vset.pattern.permute.xlu0 3
      %6162 = vperm.xlu0 %6161, %v653
      %v6163 = vpop.permute.xlu0 %6162
      %6165 = vset.pattern.permute.xlu0 3
      %6166 = vperm.xlu0 %6165, %v654
      %v6167 = vpop.permute.xlu0 %6166
      %6169 = vset.pattern.permute.xlu0 3
      %6170 = vperm.xlu0 %6169, %v655
      %v6171 = vpop.permute.xlu0 %6170
      %6173 = vset.pattern.permute.xlu0 3
      %6174 = vperm.xlu0 %6173, %v656
      %v6175 = vpop.permute.xlu0 %6174
      %6177 = vset.pattern.permute.xlu0 3
      %6178 = vperm.xlu0 %6177, %v657
      %v6179 = vpop.permute.xlu0 %6178
      %6181 = vset.pattern.permute.xlu0 3
      %6182 = vperm.xlu0 %6181, %v658
      %v6183 = vpop.permute.xlu0 %6182
      %6185 = vset.pattern.permute.xlu0 3
      %6186 = vperm.xlu0 %6185, %v659
      %v6187 = vpop.permute.xlu0 %6186
      %6189 = vset.pattern.permute.xlu0 3
      %6190 = vperm.xlu0 %6189, %v660
      %v6191 = vpop.permute.xlu0 %6190
      %6193 = vset.pattern.permute.xlu0 3
      %6194 = vperm.xlu0 %6193, %v661
      %v6195 = vpop.permute.xlu0 %6194
      %6197 = vset.pattern.permute.xlu0 3
      %6198 = vperm.xlu0 %6197, %v662
      %v6199 = vpop.permute.xlu0 %6198
      %6201 = vset.pattern.permute.xlu0 3
      %6202 = vperm.xlu0 %6201, %v663
      %v6203 = vpop.permute.xlu0 %6202
      %6205 = vset.pattern.permute.xlu0 3
      %6206 = vperm.xlu0 %6205, %v664
      %v6207 = vpop.permute.xlu0 %6206
      %6209 = vset.pattern.permute.xlu0 3
      %6210 = vperm.xlu0 %6209, %v665
      %v6211 = vpop.permute.xlu0 %6210
      %6213 = vset.pattern.permute.xlu0 3
      %6214 = vperm.xlu0 %6213, %v666
      %v6215 = vpop.permute.xlu0 %6214
      %6217 = vset.pattern.permute.xlu0 3
      %6218 = vperm.xlu0 %6217, %v667
      %v6219 = vpop.permute.xlu0 %6218
      %6221 = vset.pattern.permute.xlu0 3
      %6222 = vperm.xlu0 %6221, %v668
      %v6223 = vpop.permute.xlu0 %6222
      %6225 = vset.pattern.permute.xlu0 3
      %6226 = vperm.xlu0 %6225, %v669
      %v6227 = vpop.permute.xlu0 %6226
      %6229 = vset.pattern.permute.xlu0 3
      %6230 = vperm.xlu0 %6229, %v670
      %v6231 = vpop.permute.xlu0 %6230
      %6233 = vset.pattern.permute.xlu0 3
      %6234 = vperm.xlu0 %6233, %v671
      %v6235 = vpop.permute.xlu0 %6234
      %6237 = vset.pattern.permute.xlu0 3
      %6238 = vperm.xlu0 %6237, %v672
      %v6239 = vpop.permute.xlu0 %6238
      %6241 = vset.pattern.permute.xlu0 3
      %6242 = vperm.xlu0 %6241, %v673
      %v6243 = vpop.permute.xlu0 %6242
      %6245 = vset.pattern.permute.xlu0 3
      %6246 = vperm.xlu0 %6245, %v674
      %v6247 = vpop.permute.xlu0 %6246
      %6249 = vset.pattern.permute.xlu0 3
      %6250 = vperm.xlu0 %6249, %v675
      %v6251 = vpop.permute.xlu0 %6250
      %6253 = vset.pattern.permute.xlu0 3
      %6254 = vperm.xlu0 %6253, %v676
      %v6255 = vpop.permute.xlu0 %6254
      %6257 = vset.pattern.permute.xlu0 3
      %6258 = vperm.xlu0 %6257, %v677
      %v6259 = vpop.permute.xlu0 %6258
      %6261 = vset.pattern.permute.xlu0 3
      %6262 = vperm.xlu0 %6261, %v678
      %v6263 = vpop.permute.xlu0 %6262
      %6265 = vset.pattern.permute.xlu0 3
      %6266 = vperm.xlu0 %6265, %v679
      %v6267 = vpop.permute.xlu0 %6266
      %6269 = vset.pattern.permute.xlu0 3
      %6270 = vperm.xlu0 %6269, %v680
      %v6271 = vpop.permute.xlu0 %6270
      %6273 = vset.pattern.permute.xlu0 3
      %6274 = vperm.xlu0 %6273, %v681
      %v6275 = vpop.permute.xlu0 %6274
      %6277 = vset.pattern.permute.xlu0 3
      %6278 = vperm.xlu0 %6277, %v682
      %v6279 = vpop.permute.xlu0 %6278
      %6281 = vset.pattern.permute.xlu0 3
      %6282 = vperm.xlu0 %6281, %v683
      %v6283 = vpop.permute.xlu0 %6282
      %6285 = vset.pattern.permute.xlu0 3
      %6286 = vperm.xlu0 %6285, %v684
      %v6287 = vpop.permute.xlu0 %6286
      %6289 = vset.pattern.permute.xlu0 3
      %6290 = vperm.xlu0 %6289, %v685
      %v6291 = vpop.permute.xlu0 %6290
      %6293 = vset.pattern.permute.xlu0 3
      %6294 = vperm.xlu0 %6293, %v686
      %v6295 = vpop.permute.xlu0 %6294
      %6297 = vset.pattern.permute.xlu0 3
      %6298 = vperm.xlu0 %6297, %v687
      %v6299 = vpop.permute.xlu0 %6298
      %6301 = vset.pattern.permute.xlu0 3
      %6302 = vperm.xlu0 %6301, %v688
      %v6303 = vpop.permute.xlu0 %6302
      %6305 = vset.pattern.permute.xlu0 3
      %6306 = vperm.xlu0 %6305, %v689
      %v6307 = vpop.permute.xlu0 %6306
      %6309 = vset.pattern.permute.xlu0 3
      %6310 = vperm.xlu0 %6309, %v690
      %v6311 = vpop.permute.xlu0 %6310
      %6313 = vset.pattern.permute.xlu0 3
      %6314 = vperm.xlu0 %6313, %v691
      %v6315 = vpop.permute.xlu0 %6314
      %6317 = vset.pattern.permute.xlu0 3
      %6318 = vperm.xlu0 %6317, %v692
      %v6319 = vpop.permute.xlu0 %6318
      %6321 = vset.pattern.permute.xlu0 3
      %6322 = vperm.xlu0 %6321, %v693
      %v6323 = vpop.permute.xlu0 %6322
      %6325 = vset.pattern.permute.xlu0 3
      %6326 = vperm.xlu0 %6325, %v694
      %v6327 = vpop.permute.xlu0 %6326
      %6329 = vset.pattern.permute.xlu0 3
      %6330 = vperm.xlu0 %6329, %v695
      %v6331 = vpop.permute.xlu0 %6330
      %6333 = vset.pattern.permute.xlu0 3
      %6334 = vperm.xlu0 %6333, %v696
      %v6335 = vpop.permute.xlu0 %6334
      %6337 = vset.pattern.permute.xlu0 3
      %6338 = vperm.xlu0 %6337, %v697
      %v6339 = vpop.permute.xlu0 %6338
      %6341 = vset.pattern.permute.xlu0 3
      %6342 = vperm.xlu0 %6341, %v698
      %v6343 = vpop.permute.xlu0 %6342
      %v6345 = vlaneseq
      %v6346 = vshrl.u32 %v6345, 7
      %v6347 = vsub.s32 3, %v6346
      %v6348 = vrot.slane %v700, %v6347
      %v6349 = vmul.f32 %v5323, %v6348
      %v6350 = vmul.f32 %v5327, %v6348
      %v6351 = vmul.f32 %v5331, %v6348
      %v6352 = vmul.f32 %v5335, %v6348
      %v6353 = vmul.f32 %v5339, %v6348
      %v6354 = vmul.f32 %v5343, %v6348
      %v6355 = vmul.f32 %v5347, %v6348
      %v6356 = vmul.f32 %v5351, %v6348
      %v6357 = vmul.f32 %v5355, %v6348
      %v6358 = vmul.f32 %v5359, %v6348
      %v6359 = vmul.f32 %v5363, %v6348
      %v6360 = vmul.f32 %v5367, %v6348
      %v6361 = vmul.f32 %v5371, %v6348
      %v6362 = vmul.f32 %v5375, %v6348
      %v6363 = vmul.f32 %v5379, %v6348
      %v6364 = vmul.f32 %v5383, %v6348
      %v6365 = vmul.f32 %v5387, %v6348
      %v6366 = vmul.f32 %v5391, %v6348
      %v6367 = vmul.f32 %v5395, %v6348
      %v6368 = vmul.f32 %v5399, %v6348
      %v6369 = vmul.f32 %v5403, %v6348
      %v6370 = vmul.f32 %v5407, %v6348
      %v6371 = vmul.f32 %v5411, %v6348
      %v6372 = vmul.f32 %v5415, %v6348
      %v6373 = vmul.f32 %v5419, %v6348
      %v6374 = vmul.f32 %v5423, %v6348
      %v6375 = vmul.f32 %v5427, %v6348
      %v6376 = vmul.f32 %v5431, %v6348
      %v6377 = vmul.f32 %v5435, %v6348
      %v6378 = vmul.f32 %v5439, %v6348
      %v6379 = vmul.f32 %v5443, %v6348
      %v6380 = vmul.f32 %v5447, %v6348
      %v6381 = vmul.f32 %v5451, %v6348
      %v6382 = vmul.f32 %v5455, %v6348
      %v6383 = vmul.f32 %v5459, %v6348
      %v6384 = vmul.f32 %v5463, %v6348
      %v6385 = vmul.f32 %v5467, %v6348
      %v6386 = vmul.f32 %v5471, %v6348
      %v6387 = vmul.f32 %v5475, %v6348
      %v6388 = vmul.f32 %v5479, %v6348
      %v6389 = vmul.f32 %v5483, %v6348
      %v6390 = vmul.f32 %v5487, %v6348
      %v6391 = vmul.f32 %v5491, %v6348
      %v6392 = vmul.f32 %v5495, %v6348
      %v6393 = vmul.f32 %v5499, %v6348
      %v6394 = vmul.f32 %v5503, %v6348
      %v6395 = vmul.f32 %v5507, %v6348
      %v6396 = vmul.f32 %v5511, %v6348
      %v6397 = vmul.f32 %v5515, %v6348
      %v6398 = vmul.f32 %v5519, %v6348
      %v6399 = vmul.f32 %v5523, %v6348
      %v6400 = vmul.f32 %v5527, %v6348
      %v6401 = vmul.f32 %v5531, %v6348
      %v6402 = vmul.f32 %v5535, %v6348
      %v6403 = vmul.f32 %v5539, %v6348
      %v6404 = vmul.f32 %v5543, %v6348
      %v6405 = vmul.f32 %v5547, %v6348
      %v6406 = vmul.f32 %v5551, %v6348
      %v6407 = vmul.f32 %v5555, %v6348
      %v6408 = vmul.f32 %v5559, %v6348
      %v6409 = vmul.f32 %v5563, %v6348
      %v6410 = vmul.f32 %v5567, %v6348
      %v6411 = vmul.f32 %v5571, %v6348
      %v6412 = vmul.f32 %v5575, %v6348
      %v6413 = vmul.f32 %v5579, %v6348
      %v6414 = vmul.f32 %v5583, %v6348
      %v6415 = vmul.f32 %v5587, %v6348
      %v6416 = vmul.f32 %v5591, %v6348
      %v6417 = vmul.f32 %v5595, %v6348
      %v6418 = vmul.f32 %v5599, %v6348
      %v6419 = vmul.f32 %v5603, %v6348
      %v6420 = vmul.f32 %v5607, %v6348
      %v6421 = vmul.f32 %v5611, %v6348
      %v6422 = vmul.f32 %v5615, %v6348
      %v6423 = vmul.f32 %v5619, %v6348
      %v6424 = vmul.f32 %v5623, %v6348
      %v6425 = vmul.f32 %v5627, %v6348
      %v6426 = vmul.f32 %v5631, %v6348
      %v6427 = vmul.f32 %v5635, %v6348
      %v6428 = vmul.f32 %v5639, %v6348
      %v6429 = vmul.f32 %v5643, %v6348
      %v6430 = vmul.f32 %v5647, %v6348
      %v6431 = vmul.f32 %v5651, %v6348
      %v6432 = vmul.f32 %v5655, %v6348
      %v6433 = vmul.f32 %v5659, %v6348
      %v6434 = vmul.f32 %v5663, %v6348
      %v6435 = vmul.f32 %v5667, %v6348
      %v6436 = vmul.f32 %v5671, %v6348
      %v6437 = vmul.f32 %v5675, %v6348
      %v6438 = vmul.f32 %v5679, %v6348
      %v6439 = vmul.f32 %v5683, %v6348
      %v6440 = vmul.f32 %v5687, %v6348
      %v6441 = vmul.f32 %v5691, %v6348
      %v6442 = vmul.f32 %v5695, %v6348
      %v6443 = vmul.f32 %v5699, %v6348
      %v6444 = vmul.f32 %v5703, %v6348
      %v6445 = vmul.f32 %v5707, %v6348
      %v6446 = vmul.f32 %v5711, %v6348
      %v6447 = vmul.f32 %v5715, %v6348
      %v6448 = vmul.f32 %v5719, %v6348
      %v6449 = vmul.f32 %v5723, %v6348
      %v6450 = vmul.f32 %v5727, %v6348
      %v6451 = vmul.f32 %v5731, %v6348
      %v6452 = vmul.f32 %v5735, %v6348
      %v6453 = vmul.f32 %v5739, %v6348
      %v6454 = vmul.f32 %v5743, %v6348
      %v6455 = vmul.f32 %v5747, %v6348
      %v6456 = vmul.f32 %v5751, %v6348
      %v6457 = vmul.f32 %v5755, %v6348
      %v6458 = vmul.f32 %v5759, %v6348
      %v6459 = vmul.f32 %v5763, %v6348
      %v6460 = vmul.f32 %v5767, %v6348
      %v6461 = vmul.f32 %v5771, %v6348
      %v6462 = vmul.f32 %v5775, %v6348
      %v6463 = vmul.f32 %v5779, %v6348
      %v6464 = vmul.f32 %v5783, %v6348
      %v6465 = vmul.f32 %v5787, %v6348
      %v6466 = vmul.f32 %v5791, %v6348
      %v6467 = vmul.f32 %v5795, %v6348
      %v6468 = vmul.f32 %v5799, %v6348
      %v6469 = vmul.f32 %v5803, %v6348
      %v6470 = vmul.f32 %v5807, %v6348
      %v6471 = vmul.f32 %v5811, %v6348
      %v6472 = vmul.f32 %v5815, %v6348
      %v6473 = vmul.f32 %v5819, %v6348
      %v6474 = vmul.f32 %v5823, %v6348
      %v6475 = vmul.f32 %v5827, %v6348
      %v6476 = vmul.f32 %v5831, %v6348
      %v6477 = vmul.f32 %v5835, %v6348
      %v6478 = vmul.f32 %v5839, %v6348
      %v6479 = vmul.f32 %v5843, %v6348
      %v6480 = vmul.f32 %v5847, %v6348
      %v6481 = vmul.f32 %v5851, %v6348
      %v6482 = vmul.f32 %v5855, %v6348
      %v6483 = vmul.f32 %v5859, %v6348
      %v6484 = vmul.f32 %v5863, %v6348
      %v6485 = vmul.f32 %v5867, %v6348
      %v6486 = vmul.f32 %v5871, %v6348
      %v6487 = vmul.f32 %v5875, %v6348
      %v6488 = vmul.f32 %v5879, %v6348
      %v6489 = vmul.f32 %v5883, %v6348
      %v6490 = vmul.f32 %v5887, %v6348
      %v6491 = vmul.f32 %v5891, %v6348
      %v6492 = vmul.f32 %v5895, %v6348
      %v6493 = vmul.f32 %v5899, %v6348
      %v6494 = vmul.f32 %v5903, %v6348
      %v6495 = vmul.f32 %v5907, %v6348
      %v6496 = vmul.f32 %v5911, %v6348
      %v6497 = vmul.f32 %v5915, %v6348
      %v6498 = vmul.f32 %v5919, %v6348
      %v6499 = vmul.f32 %v5923, %v6348
      %v6500 = vmul.f32 %v5927, %v6348
      %v6501 = vmul.f32 %v5931, %v6348
      %v6502 = vmul.f32 %v5935, %v6348
      %v6503 = vmul.f32 %v5939, %v6348
      %v6504 = vmul.f32 %v5943, %v6348
      %v6505 = vmul.f32 %v5947, %v6348
      %v6506 = vmul.f32 %v5951, %v6348
      %v6507 = vmul.f32 %v5955, %v6348
      %v6508 = vmul.f32 %v5959, %v6348
      %v6509 = vmul.f32 %v5963, %v6348
      %v6510 = vmul.f32 %v5967, %v6348
      %v6511 = vmul.f32 %v5971, %v6348
      %v6512 = vmul.f32 %v5975, %v6348
      %v6513 = vmul.f32 %v5979, %v6348
      %v6514 = vmul.f32 %v5983, %v6348
      %v6515 = vmul.f32 %v5987, %v6348
      %v6516 = vmul.f32 %v5991, %v6348
      %v6517 = vmul.f32 %v5995, %v6348
      %v6518 = vmul.f32 %v5999, %v6348
      %v6519 = vmul.f32 %v6003, %v6348
      %v6520 = vmul.f32 %v6007, %v6348
      %v6521 = vmul.f32 %v6011, %v6348
      %v6522 = vmul.f32 %v6015, %v6348
      %v6523 = vmul.f32 %v6019, %v6348
      %v6524 = vmul.f32 %v6023, %v6348
      %v6525 = vmul.f32 %v6027, %v6348
      %v6526 = vmul.f32 %v6031, %v6348
      %v6527 = vmul.f32 %v6035, %v6348
      %v6528 = vmul.f32 %v6039, %v6348
      %v6529 = vmul.f32 %v6043, %v6348
      %v6530 = vmul.f32 %v6047, %v6348
      %v6531 = vmul.f32 %v6051, %v6348
      %v6532 = vmul.f32 %v6055, %v6348
      %v6533 = vmul.f32 %v6059, %v6348
      %v6534 = vmul.f32 %v6063, %v6348
      %v6535 = vmul.f32 %v6067, %v6348
      %v6536 = vmul.f32 %v6071, %v6348
      %v6537 = vmul.f32 %v6075, %v6348
      %v6538 = vmul.f32 %v6079, %v6348
      %v6539 = vmul.f32 %v6083, %v6348
      %v6540 = vmul.f32 %v6087, %v6348
      %v6541 = vmul.f32 %v6091, %v6348
      %v6542 = vmul.f32 %v6095, %v6348
      %v6543 = vmul.f32 %v6099, %v6348
      %v6544 = vmul.f32 %v6103, %v6348
      %v6545 = vmul.f32 %v6107, %v6348
      %v6546 = vmul.f32 %v6111, %v6348
      %v6547 = vmul.f32 %v6115, %v6348
      %v6548 = vmul.f32 %v6119, %v6348
      %v6549 = vmul.f32 %v6123, %v6348
      %v6550 = vmul.f32 %v6127, %v6348
      %v6551 = vmul.f32 %v6131, %v6348
      %v6552 = vmul.f32 %v6135, %v6348
      %v6553 = vmul.f32 %v6139, %v6348
      %v6554 = vmul.f32 %v6143, %v6348
      %v6555 = vmul.f32 %v6147, %v6348
      %v6556 = vmul.f32 %v6151, %v6348
      %v6557 = vmul.f32 %v6155, %v6348
      %v6558 = vmul.f32 %v6159, %v6348
      %v6559 = vmul.f32 %v6163, %v6348
      %v6560 = vmul.f32 %v6167, %v6348
      %v6561 = vmul.f32 %v6171, %v6348
      %v6562 = vmul.f32 %v6175, %v6348
      %v6563 = vmul.f32 %v6179, %v6348
      %v6564 = vmul.f32 %v6183, %v6348
      %v6565 = vmul.f32 %v6187, %v6348
      %v6566 = vmul.f32 %v6191, %v6348
      %v6567 = vmul.f32 %v6195, %v6348
      %v6568 = vmul.f32 %v6199, %v6348
      %v6569 = vmul.f32 %v6203, %v6348
      %v6570 = vmul.f32 %v6207, %v6348
      %v6571 = vmul.f32 %v6211, %v6348
      %v6572 = vmul.f32 %v6215, %v6348
      %v6573 = vmul.f32 %v6219, %v6348
      %v6574 = vmul.f32 %v6223, %v6348
      %v6575 = vmul.f32 %v6227, %v6348
      %v6576 = vmul.f32 %v6231, %v6348
      %v6577 = vmul.f32 %v6235, %v6348
      %v6578 = vmul.f32 %v6239, %v6348
      %v6579 = vmul.f32 %v6243, %v6348
      %v6580 = vmul.f32 %v6247, %v6348
      %v6581 = vmul.f32 %v6251, %v6348
      %v6582 = vmul.f32 %v6255, %v6348
      %v6583 = vmul.f32 %v6259, %v6348
      %v6584 = vmul.f32 %v6263, %v6348
      %v6585 = vmul.f32 %v6267, %v6348
      %v6586 = vmul.f32 %v6271, %v6348
      %v6587 = vmul.f32 %v6275, %v6348
      %v6588 = vmul.f32 %v6279, %v6348
      %v6589 = vmul.f32 %v6283, %v6348
      %v6590 = vmul.f32 %v6287, %v6348
      %v6591 = vmul.f32 %v6291, %v6348
      %v6592 = vmul.f32 %v6295, %v6348
      %v6593 = vmul.f32 %v6299, %v6348
      %v6594 = vmul.f32 %v6303, %v6348
      %v6595 = vmul.f32 %v6307, %v6348
      %v6596 = vmul.f32 %v6311, %v6348
      %v6597 = vmul.f32 %v6315, %v6348
      %v6598 = vmul.f32 %v6319, %v6348
      %v6599 = vmul.f32 %v6323, %v6348
      %v6600 = vmul.f32 %v6327, %v6348
      %v6601 = vmul.f32 %v6331, %v6348
      %v6602 = vmul.f32 %v6335, %v6348
      %v6603 = vmul.f32 %v6339, %v6348
      %v6604 = vmul.f32 %v6343, %v6348
      %v6605 = vadd.f32 %v5065, %v6349
      %v6606 = vadd.f32 %v5066, %v6350
      %v6607 = vadd.f32 %v5067, %v6351
      %v6608 = vadd.f32 %v5068, %v6352
      %v6609 = vadd.f32 %v5069, %v6353
      %v6610 = vadd.f32 %v5070, %v6354
      %v6611 = vadd.f32 %v5071, %v6355
      %v6612 = vadd.f32 %v5072, %v6356
      %v6613 = vadd.f32 %v5073, %v6357
      %v6614 = vadd.f32 %v5074, %v6358
      %v6615 = vadd.f32 %v5075, %v6359
      %v6616 = vadd.f32 %v5076, %v6360
      %v6617 = vadd.f32 %v5077, %v6361
      %v6618 = vadd.f32 %v5078, %v6362
      %v6619 = vadd.f32 %v5079, %v6363
      %v6620 = vadd.f32 %v5080, %v6364
      %v6621 = vadd.f32 %v5081, %v6365
      %v6622 = vadd.f32 %v5082, %v6366
      %v6623 = vadd.f32 %v5083, %v6367
      %v6624 = vadd.f32 %v5084, %v6368
      %v6625 = vadd.f32 %v5085, %v6369
      %v6626 = vadd.f32 %v5086, %v6370
      %v6627 = vadd.f32 %v5087, %v6371
      %v6628 = vadd.f32 %v5088, %v6372
      %v6629 = vadd.f32 %v5089, %v6373
      %v6630 = vadd.f32 %v5090, %v6374
      %v6631 = vadd.f32 %v5091, %v6375
      %v6632 = vadd.f32 %v5092, %v6376
      %v6633 = vadd.f32 %v5093, %v6377
      %v6634 = vadd.f32 %v5094, %v6378
      %v6635 = vadd.f32 %v5095, %v6379
      %v6636 = vadd.f32 %v5096, %v6380
      %v6637 = vadd.f32 %v5097, %v6381
      %v6638 = vadd.f32 %v5098, %v6382
      %v6639 = vadd.f32 %v5099, %v6383
      %v6640 = vadd.f32 %v5100, %v6384
      %v6641 = vadd.f32 %v5101, %v6385
      %v6642 = vadd.f32 %v5102, %v6386
      %v6643 = vadd.f32 %v5103, %v6387
      %v6644 = vadd.f32 %v5104, %v6388
      %v6645 = vadd.f32 %v5105, %v6389
      %v6646 = vadd.f32 %v5106, %v6390
      %v6647 = vadd.f32 %v5107, %v6391
      %v6648 = vadd.f32 %v5108, %v6392
      %v6649 = vadd.f32 %v5109, %v6393
      %v6650 = vadd.f32 %v5110, %v6394
      %v6651 = vadd.f32 %v5111, %v6395
      %v6652 = vadd.f32 %v5112, %v6396
      %v6653 = vadd.f32 %v5113, %v6397
      %v6654 = vadd.f32 %v5114, %v6398
      %v6655 = vadd.f32 %v5115, %v6399
      %v6656 = vadd.f32 %v5116, %v6400
      %v6657 = vadd.f32 %v5117, %v6401
      %v6658 = vadd.f32 %v5118, %v6402
      %v6659 = vadd.f32 %v5119, %v6403
      %v6660 = vadd.f32 %v5120, %v6404
      %v6661 = vadd.f32 %v5121, %v6405
      %v6662 = vadd.f32 %v5122, %v6406
      %v6663 = vadd.f32 %v5123, %v6407
      %v6664 = vadd.f32 %v5124, %v6408
      %v6665 = vadd.f32 %v5125, %v6409
      %v6666 = vadd.f32 %v5126, %v6410
      %v6667 = vadd.f32 %v5127, %v6411
      %v6668 = vadd.f32 %v5128, %v6412
      %v6669 = vadd.f32 %v5129, %v6413
      %v6670 = vadd.f32 %v5130, %v6414
      %v6671 = vadd.f32 %v5131, %v6415
      %v6672 = vadd.f32 %v5132, %v6416
      %v6673 = vadd.f32 %v5133, %v6417
      %v6674 = vadd.f32 %v5134, %v6418
      %v6675 = vadd.f32 %v5135, %v6419
      %v6676 = vadd.f32 %v5136, %v6420
      %v6677 = vadd.f32 %v5137, %v6421
      %v6678 = vadd.f32 %v5138, %v6422
      %v6679 = vadd.f32 %v5139, %v6423
      %v6680 = vadd.f32 %v5140, %v6424
      %v6681 = vadd.f32 %v5141, %v6425
      %v6682 = vadd.f32 %v5142, %v6426
      %v6683 = vadd.f32 %v5143, %v6427
      %v6684 = vadd.f32 %v5144, %v6428
      %v6685 = vadd.f32 %v5145, %v6429
      %v6686 = vadd.f32 %v5146, %v6430
      %v6687 = vadd.f32 %v5147, %v6431
      %v6688 = vadd.f32 %v5148, %v6432
      %v6689 = vadd.f32 %v5149, %v6433
      %v6690 = vadd.f32 %v5150, %v6434
      %v6691 = vadd.f32 %v5151, %v6435
      %v6692 = vadd.f32 %v5152, %v6436
      %v6693 = vadd.f32 %v5153, %v6437
      %v6694 = vadd.f32 %v5154, %v6438
      %v6695 = vadd.f32 %v5155, %v6439
      %v6696 = vadd.f32 %v5156, %v6440
      %v6697 = vadd.f32 %v5157, %v6441
      %v6698 = vadd.f32 %v5158, %v6442
      %v6699 = vadd.f32 %v5159, %v6443
      %v6700 = vadd.f32 %v5160, %v6444
      %v6701 = vadd.f32 %v5161, %v6445
      %v6702 = vadd.f32 %v5162, %v6446
      %v6703 = vadd.f32 %v5163, %v6447
      %v6704 = vadd.f32 %v5164, %v6448
      %v6705 = vadd.f32 %v5165, %v6449
      %v6706 = vadd.f32 %v5166, %v6450
      %v6707 = vadd.f32 %v5167, %v6451
      %v6708 = vadd.f32 %v5168, %v6452
      %v6709 = vadd.f32 %v5169, %v6453
      %v6710 = vadd.f32 %v5170, %v6454
      %v6711 = vadd.f32 %v5171, %v6455
      %v6712 = vadd.f32 %v5172, %v6456
      %v6713 = vadd.f32 %v5173, %v6457
      %v6714 = vadd.f32 %v5174, %v6458
      %v6715 = vadd.f32 %v5175, %v6459
      %v6716 = vadd.f32 %v5176, %v6460
      %v6717 = vadd.f32 %v5177, %v6461
      %v6718 = vadd.f32 %v5178, %v6462
      %v6719 = vadd.f32 %v5179, %v6463
      %v6720 = vadd.f32 %v5180, %v6464
      %v6721 = vadd.f32 %v5181, %v6465
      %v6722 = vadd.f32 %v5182, %v6466
      %v6723 = vadd.f32 %v5183, %v6467
      %v6724 = vadd.f32 %v5184, %v6468
      %v6725 = vadd.f32 %v5185, %v6469
      %v6726 = vadd.f32 %v5186, %v6470
      %v6727 = vadd.f32 %v5187, %v6471
      %v6728 = vadd.f32 %v5188, %v6472
      %v6729 = vadd.f32 %v5189, %v6473
      %v6730 = vadd.f32 %v5190, %v6474
      %v6731 = vadd.f32 %v5191, %v6475
      %v6732 = vadd.f32 %v5192, %v6476
      %v6733 = vadd.f32 %v5193, %v6477
      %v6734 = vadd.f32 %v5194, %v6478
      %v6735 = vadd.f32 %v5195, %v6479
      %v6736 = vadd.f32 %v5196, %v6480
      %v6737 = vadd.f32 %v5197, %v6481
      %v6738 = vadd.f32 %v5198, %v6482
      %v6739 = vadd.f32 %v5199, %v6483
      %v6740 = vadd.f32 %v5200, %v6484
      %v6741 = vadd.f32 %v5201, %v6485
      %v6742 = vadd.f32 %v5202, %v6486
      %v6743 = vadd.f32 %v5203, %v6487
      %v6744 = vadd.f32 %v5204, %v6488
      %v6745 = vadd.f32 %v5205, %v6489
      %v6746 = vadd.f32 %v5206, %v6490
      %v6747 = vadd.f32 %v5207, %v6491
      %v6748 = vadd.f32 %v5208, %v6492
      %v6749 = vadd.f32 %v5209, %v6493
      %v6750 = vadd.f32 %v5210, %v6494
      %v6751 = vadd.f32 %v5211, %v6495
      %v6752 = vadd.f32 %v5212, %v6496
      %v6753 = vadd.f32 %v5213, %v6497
      %v6754 = vadd.f32 %v5214, %v6498
      %v6755 = vadd.f32 %v5215, %v6499
      %v6756 = vadd.f32 %v5216, %v6500
      %v6757 = vadd.f32 %v5217, %v6501
      %v6758 = vadd.f32 %v5218, %v6502
      %v6759 = vadd.f32 %v5219, %v6503
      %v6760 = vadd.f32 %v5220, %v6504
      %v6761 = vadd.f32 %v5221, %v6505
      %v6762 = vadd.f32 %v5222, %v6506
      %v6763 = vadd.f32 %v5223, %v6507
      %v6764 = vadd.f32 %v5224, %v6508
      %v6765 = vadd.f32 %v5225, %v6509
      %v6766 = vadd.f32 %v5226, %v6510
      %v6767 = vadd.f32 %v5227, %v6511
      %v6768 = vadd.f32 %v5228, %v6512
      %v6769 = vadd.f32 %v5229, %v6513
      %v6770 = vadd.f32 %v5230, %v6514
      %v6771 = vadd.f32 %v5231, %v6515
      %v6772 = vadd.f32 %v5232, %v6516
      %v6773 = vadd.f32 %v5233, %v6517
      %v6774 = vadd.f32 %v5234, %v6518
      %v6775 = vadd.f32 %v5235, %v6519
      %v6776 = vadd.f32 %v5236, %v6520
      %v6777 = vadd.f32 %v5237, %v6521
      %v6778 = vadd.f32 %v5238, %v6522
      %v6779 = vadd.f32 %v5239, %v6523
      %v6780 = vadd.f32 %v5240, %v6524
      %v6781 = vadd.f32 %v5241, %v6525
      %v6782 = vadd.f32 %v5242, %v6526
      %v6783 = vadd.f32 %v5243, %v6527
      %v6784 = vadd.f32 %v5244, %v6528
      %v6785 = vadd.f32 %v5245, %v6529
      %v6786 = vadd.f32 %v5246, %v6530
      %v6787 = vadd.f32 %v5247, %v6531
      %v6788 = vadd.f32 %v5248, %v6532
      %v6789 = vadd.f32 %v5249, %v6533
      %v6790 = vadd.f32 %v5250, %v6534
      %v6791 = vadd.f32 %v5251, %v6535
      %v6792 = vadd.f32 %v5252, %v6536
      %v6793 = vadd.f32 %v5253, %v6537
      %v6794 = vadd.f32 %v5254, %v6538
      %v6795 = vadd.f32 %v5255, %v6539
      %v6796 = vadd.f32 %v5256, %v6540
      %v6797 = vadd.f32 %v5257, %v6541
      %v6798 = vadd.f32 %v5258, %v6542
      %v6799 = vadd.f32 %v5259, %v6543
      %v6800 = vadd.f32 %v5260, %v6544
      %v6801 = vadd.f32 %v5261, %v6545
      %v6802 = vadd.f32 %v5262, %v6546
      %v6803 = vadd.f32 %v5263, %v6547
      %v6804 = vadd.f32 %v5264, %v6548
      %v6805 = vadd.f32 %v5265, %v6549
      %v6806 = vadd.f32 %v5266, %v6550
      %v6807 = vadd.f32 %v5267, %v6551
      %v6808 = vadd.f32 %v5268, %v6552
      %v6809 = vadd.f32 %v5269, %v6553
      %v6810 = vadd.f32 %v5270, %v6554
      %v6811 = vadd.f32 %v5271, %v6555
      %v6812 = vadd.f32 %v5272, %v6556
      %v6813 = vadd.f32 %v5273, %v6557
      %v6814 = vadd.f32 %v5274, %v6558
      %v6815 = vadd.f32 %v5275, %v6559
      %v6816 = vadd.f32 %v5276, %v6560
      %v6817 = vadd.f32 %v5277, %v6561
      %v6818 = vadd.f32 %v5278, %v6562
      %v6819 = vadd.f32 %v5279, %v6563
      %v6820 = vadd.f32 %v5280, %v6564
      %v6821 = vadd.f32 %v5281, %v6565
      %v6822 = vadd.f32 %v5282, %v6566
      %v6823 = vadd.f32 %v5283, %v6567
      %v6824 = vadd.f32 %v5284, %v6568
      %v6825 = vadd.f32 %v5285, %v6569
      %v6826 = vadd.f32 %v5286, %v6570
      %v6827 = vadd.f32 %v5287, %v6571
      %v6828 = vadd.f32 %v5288, %v6572
      %v6829 = vadd.f32 %v5289, %v6573
      %v6830 = vadd.f32 %v5290, %v6574
      %v6831 = vadd.f32 %v5291, %v6575
      %v6832 = vadd.f32 %v5292, %v6576
      %v6833 = vadd.f32 %v5293, %v6577
      %v6834 = vadd.f32 %v5294, %v6578
      %v6835 = vadd.f32 %v5295, %v6579
      %v6836 = vadd.f32 %v5296, %v6580
      %v6837 = vadd.f32 %v5297, %v6581
      %v6838 = vadd.f32 %v5298, %v6582
      %v6839 = vadd.f32 %v5299, %v6583
      %v6840 = vadd.f32 %v5300, %v6584
      %v6841 = vadd.f32 %v5301, %v6585
      %v6842 = vadd.f32 %v5302, %v6586
      %v6843 = vadd.f32 %v5303, %v6587
      %v6844 = vadd.f32 %v5304, %v6588
      %v6845 = vadd.f32 %v5305, %v6589
      %v6846 = vadd.f32 %v5306, %v6590
      %v6847 = vadd.f32 %v5307, %v6591
      %v6848 = vadd.f32 %v5308, %v6592
      %v6849 = vadd.f32 %v5309, %v6593
      %v6850 = vadd.f32 %v5310, %v6594
      %v6851 = vadd.f32 %v5311, %v6595
      %v6852 = vadd.f32 %v5312, %v6596
      %v6853 = vadd.f32 %v5313, %v6597
      %v6854 = vadd.f32 %v5314, %v6598
      %v6855 = vadd.f32 %v5315, %v6599
      %v6856 = vadd.f32 %v5316, %v6600
      %v6857 = vadd.f32 %v5317, %v6601
      %v6858 = vadd.f32 %v5318, %v6602
      %v6859 = vadd.f32 %v5319, %v6603
      %v6860 = vadd.f32 %v5320, %v6604
      %v6861 = vmax.f32 %v6605, 0.0
      %v6862 = vmax.f32 %v6606, 0.0
      %v6863 = vmax.f32 %v6607, 0.0
      %v6864 = vmax.f32 %v6608, 0.0
      %v6865 = vmax.f32 %v6609, 0.0
      %v6866 = vmax.f32 %v6610, 0.0
      %v6867 = vmax.f32 %v6611, 0.0
      %v6868 = vmax.f32 %v6612, 0.0
      %v6869 = vmax.f32 %v6613, 0.0
      %v6870 = vmax.f32 %v6614, 0.0
      %v6871 = vmax.f32 %v6615, 0.0
      %v6872 = vmax.f32 %v6616, 0.0
      %v6873 = vmax.f32 %v6617, 0.0
      %v6874 = vmax.f32 %v6618, 0.0
      %v6875 = vmax.f32 %v6619, 0.0
      %v6876 = vmax.f32 %v6620, 0.0
      %v6877 = vmax.f32 %v6621, 0.0
      %v6878 = vmax.f32 %v6622, 0.0
      %v6879 = vmax.f32 %v6623, 0.0
      %v6880 = vmax.f32 %v6624, 0.0
      %v6881 = vmax.f32 %v6625, 0.0
      %v6882 = vmax.f32 %v6626, 0.0
      %v6883 = vmax.f32 %v6627, 0.0
      %v6884 = vmax.f32 %v6628, 0.0
      %v6885 = vmax.f32 %v6629, 0.0
      %v6886 = vmax.f32 %v6630, 0.0
      %v6887 = vmax.f32 %v6631, 0.0
      %v6888 = vmax.f32 %v6632, 0.0
      %v6889 = vmax.f32 %v6633, 0.0
      %v6890 = vmax.f32 %v6634, 0.0
      %v6891 = vmax.f32 %v6635, 0.0
      %v6892 = vmax.f32 %v6636, 0.0
      %v6893 = vmax.f32 %v6637, 0.0
      %v6894 = vmax.f32 %v6638, 0.0
      %v6895 = vmax.f32 %v6639, 0.0
      %v6896 = vmax.f32 %v6640, 0.0
      %v6897 = vmax.f32 %v6641, 0.0
      %v6898 = vmax.f32 %v6642, 0.0
      %v6899 = vmax.f32 %v6643, 0.0
      %v6900 = vmax.f32 %v6644, 0.0
      %v6901 = vmax.f32 %v6645, 0.0
      %v6902 = vmax.f32 %v6646, 0.0
      %v6903 = vmax.f32 %v6647, 0.0
      %v6904 = vmax.f32 %v6648, 0.0
      %v6905 = vmax.f32 %v6649, 0.0
      %v6906 = vmax.f32 %v6650, 0.0
      %v6907 = vmax.f32 %v6651, 0.0
      %v6908 = vmax.f32 %v6652, 0.0
      %v6909 = vmax.f32 %v6653, 0.0
      %v6910 = vmax.f32 %v6654, 0.0
      %v6911 = vmax.f32 %v6655, 0.0
      %v6912 = vmax.f32 %v6656, 0.0
      %v6913 = vmax.f32 %v6657, 0.0
      %v6914 = vmax.f32 %v6658, 0.0
      %v6915 = vmax.f32 %v6659, 0.0
      %v6916 = vmax.f32 %v6660, 0.0
      %v6917 = vmax.f32 %v6661, 0.0
      %v6918 = vmax.f32 %v6662, 0.0
      %v6919 = vmax.f32 %v6663, 0.0
      %v6920 = vmax.f32 %v6664, 0.0
      %v6921 = vmax.f32 %v6665, 0.0
      %v6922 = vmax.f32 %v6666, 0.0
      %v6923 = vmax.f32 %v6667, 0.0
      %v6924 = vmax.f32 %v6668, 0.0
      %v6925 = vmax.f32 %v6669, 0.0
      %v6926 = vmax.f32 %v6670, 0.0
      %v6927 = vmax.f32 %v6671, 0.0
      %v6928 = vmax.f32 %v6672, 0.0
      %v6929 = vmax.f32 %v6673, 0.0
      %v6930 = vmax.f32 %v6674, 0.0
      %v6931 = vmax.f32 %v6675, 0.0
      %v6932 = vmax.f32 %v6676, 0.0
      %v6933 = vmax.f32 %v6677, 0.0
      %v6934 = vmax.f32 %v6678, 0.0
      %v6935 = vmax.f32 %v6679, 0.0
      %v6936 = vmax.f32 %v6680, 0.0
      %v6937 = vmax.f32 %v6681, 0.0
      %v6938 = vmax.f32 %v6682, 0.0
      %v6939 = vmax.f32 %v6683, 0.0
      %v6940 = vmax.f32 %v6684, 0.0
      %v6941 = vmax.f32 %v6685, 0.0
      %v6942 = vmax.f32 %v6686, 0.0
      %v6943 = vmax.f32 %v6687, 0.0
      %v6944 = vmax.f32 %v6688, 0.0
      %v6945 = vmax.f32 %v6689, 0.0
      %v6946 = vmax.f32 %v6690, 0.0
      %v6947 = vmax.f32 %v6691, 0.0
      %v6948 = vmax.f32 %v6692, 0.0
      %v6949 = vmax.f32 %v6693, 0.0
      %v6950 = vmax.f32 %v6694, 0.0
      %v6951 = vmax.f32 %v6695, 0.0
      %v6952 = vmax.f32 %v6696, 0.0
      %v6953 = vmax.f32 %v6697, 0.0
      %v6954 = vmax.f32 %v6698, 0.0
      %v6955 = vmax.f32 %v6699, 0.0
      %v6956 = vmax.f32 %v6700, 0.0
      %v6957 = vmax.f32 %v6701, 0.0
      %v6958 = vmax.f32 %v6702, 0.0
      %v6959 = vmax.f32 %v6703, 0.0
      %v6960 = vmax.f32 %v6704, 0.0
      %v6961 = vmax.f32 %v6705, 0.0
      %v6962 = vmax.f32 %v6706, 0.0
      %v6963 = vmax.f32 %v6707, 0.0
      %v6964 = vmax.f32 %v6708, 0.0
      %v6965 = vmax.f32 %v6709, 0.0
      %v6966 = vmax.f32 %v6710, 0.0
      %v6967 = vmax.f32 %v6711, 0.0
      %v6968 = vmax.f32 %v6712, 0.0
      %v6969 = vmax.f32 %v6713, 0.0
      %v6970 = vmax.f32 %v6714, 0.0
      %v6971 = vmax.f32 %v6715, 0.0
      %v6972 = vmax.f32 %v6716, 0.0
      %v6973 = vmax.f32 %v6717, 0.0
      %v6974 = vmax.f32 %v6718, 0.0
      %v6975 = vmax.f32 %v6719, 0.0
      %v6976 = vmax.f32 %v6720, 0.0
      %v6977 = vmax.f32 %v6721, 0.0
      %v6978 = vmax.f32 %v6722, 0.0
      %v6979 = vmax.f32 %v6723, 0.0
      %v6980 = vmax.f32 %v6724, 0.0
      %v6981 = vmax.f32 %v6725, 0.0
      %v6982 = vmax.f32 %v6726, 0.0
      %v6983 = vmax.f32 %v6727, 0.0
      %v6984 = vmax.f32 %v6728, 0.0
      %v6985 = vmax.f32 %v6729, 0.0
      %v6986 = vmax.f32 %v6730, 0.0
      %v6987 = vmax.f32 %v6731, 0.0
      %v6988 = vmax.f32 %v6732, 0.0
      %v6989 = vmax.f32 %v6733, 0.0
      %v6990 = vmax.f32 %v6734, 0.0
      %v6991 = vmax.f32 %v6735, 0.0
      %v6992 = vmax.f32 %v6736, 0.0
      %v6993 = vmax.f32 %v6737, 0.0
      %v6994 = vmax.f32 %v6738, 0.0
      %v6995 = vmax.f32 %v6739, 0.0
      %v6996 = vmax.f32 %v6740, 0.0
      %v6997 = vmax.f32 %v6741, 0.0
      %v6998 = vmax.f32 %v6742, 0.0
      %v6999 = vmax.f32 %v6743, 0.0
      %v7000 = vmax.f32 %v6744, 0.0
      %v7001 = vmax.f32 %v6745, 0.0
      %v7002 = vmax.f32 %v6746, 0.0
      %v7003 = vmax.f32 %v6747, 0.0
      %v7004 = vmax.f32 %v6748, 0.0
      %v7005 = vmax.f32 %v6749, 0.0
      %v7006 = vmax.f32 %v6750, 0.0
      %v7007 = vmax.f32 %v6751, 0.0
      %v7008 = vmax.f32 %v6752, 0.0
      %v7009 = vmax.f32 %v6753, 0.0
      %v7010 = vmax.f32 %v6754, 0.0
      %v7011 = vmax.f32 %v6755, 0.0
      %v7012 = vmax.f32 %v6756, 0.0
      %v7013 = vmax.f32 %v6757, 0.0
      %v7014 = vmax.f32 %v6758, 0.0
      %v7015 = vmax.f32 %v6759, 0.0
      %v7016 = vmax.f32 %v6760, 0.0
      %v7017 = vmax.f32 %v6761, 0.0
      %v7018 = vmax.f32 %v6762, 0.0
      %v7019 = vmax.f32 %v6763, 0.0
      %v7020 = vmax.f32 %v6764, 0.0
      %v7021 = vmax.f32 %v6765, 0.0
      %v7022 = vmax.f32 %v6766, 0.0
      %v7023 = vmax.f32 %v6767, 0.0
      %v7024 = vmax.f32 %v6768, 0.0
      %v7025 = vmax.f32 %v6769, 0.0
      %v7026 = vmax.f32 %v6770, 0.0
      %v7027 = vmax.f32 %v6771, 0.0
      %v7028 = vmax.f32 %v6772, 0.0
      %v7029 = vmax.f32 %v6773, 0.0
      %v7030 = vmax.f32 %v6774, 0.0
      %v7031 = vmax.f32 %v6775, 0.0
      %v7032 = vmax.f32 %v6776, 0.0
      %v7033 = vmax.f32 %v6777, 0.0
      %v7034 = vmax.f32 %v6778, 0.0
      %v7035 = vmax.f32 %v6779, 0.0
      %v7036 = vmax.f32 %v6780, 0.0
      %v7037 = vmax.f32 %v6781, 0.0
      %v7038 = vmax.f32 %v6782, 0.0
      %v7039 = vmax.f32 %v6783, 0.0
      %v7040 = vmax.f32 %v6784, 0.0
      %v7041 = vmax.f32 %v6785, 0.0
      %v7042 = vmax.f32 %v6786, 0.0
      %v7043 = vmax.f32 %v6787, 0.0
      %v7044 = vmax.f32 %v6788, 0.0
      %v7045 = vmax.f32 %v6789, 0.0
      %v7046 = vmax.f32 %v6790, 0.0
      %v7047 = vmax.f32 %v6791, 0.0
      %v7048 = vmax.f32 %v6792, 0.0
      %v7049 = vmax.f32 %v6793, 0.0
      %v7050 = vmax.f32 %v6794, 0.0
      %v7051 = vmax.f32 %v6795, 0.0
      %v7052 = vmax.f32 %v6796, 0.0
      %v7053 = vmax.f32 %v6797, 0.0
      %v7054 = vmax.f32 %v6798, 0.0
      %v7055 = vmax.f32 %v6799, 0.0
      %v7056 = vmax.f32 %v6800, 0.0
      %v7057 = vmax.f32 %v6801, 0.0
      %v7058 = vmax.f32 %v6802, 0.0
      %v7059 = vmax.f32 %v6803, 0.0
      %v7060 = vmax.f32 %v6804, 0.0
      %v7061 = vmax.f32 %v6805, 0.0
      %v7062 = vmax.f32 %v6806, 0.0
      %v7063 = vmax.f32 %v6807, 0.0
      %v7064 = vmax.f32 %v6808, 0.0
      %v7065 = vmax.f32 %v6809, 0.0
      %v7066 = vmax.f32 %v6810, 0.0
      %v7067 = vmax.f32 %v6811, 0.0
      %v7068 = vmax.f32 %v6812, 0.0
      %v7069 = vmax.f32 %v6813, 0.0
      %v7070 = vmax.f32 %v6814, 0.0
      %v7071 = vmax.f32 %v6815, 0.0
      %v7072 = vmax.f32 %v6816, 0.0
      %v7073 = vmax.f32 %v6817, 0.0
      %v7074 = vmax.f32 %v6818, 0.0
      %v7075 = vmax.f32 %v6819, 0.0
      %v7076 = vmax.f32 %v6820, 0.0
      %v7077 = vmax.f32 %v6821, 0.0
      %v7078 = vmax.f32 %v6822, 0.0
      %v7079 = vmax.f32 %v6823, 0.0
      %v7080 = vmax.f32 %v6824, 0.0
      %v7081 = vmax.f32 %v6825, 0.0
      %v7082 = vmax.f32 %v6826, 0.0
      %v7083 = vmax.f32 %v6827, 0.0
      %v7084 = vmax.f32 %v6828, 0.0
      %v7085 = vmax.f32 %v6829, 0.0
      %v7086 = vmax.f32 %v6830, 0.0
      %v7087 = vmax.f32 %v6831, 0.0
      %v7088 = vmax.f32 %v6832, 0.0
      %v7089 = vmax.f32 %v6833, 0.0
      %v7090 = vmax.f32 %v6834, 0.0
      %v7091 = vmax.f32 %v6835, 0.0
      %v7092 = vmax.f32 %v6836, 0.0
      %v7093 = vmax.f32 %v6837, 0.0
      %v7094 = vmax.f32 %v6838, 0.0
      %v7095 = vmax.f32 %v6839, 0.0
      %v7096 = vmax.f32 %v6840, 0.0
      %v7097 = vmax.f32 %v6841, 0.0
      %v7098 = vmax.f32 %v6842, 0.0
      %v7099 = vmax.f32 %v6843, 0.0
      %v7100 = vmax.f32 %v6844, 0.0
      %v7101 = vmax.f32 %v6845, 0.0
      %v7102 = vmax.f32 %v6846, 0.0
      %v7103 = vmax.f32 %v6847, 0.0
      %v7104 = vmax.f32 %v6848, 0.0
      %v7105 = vmax.f32 %v6849, 0.0
      %v7106 = vmax.f32 %v6850, 0.0
      %v7107 = vmax.f32 %v6851, 0.0
      %v7108 = vmax.f32 %v6852, 0.0
      %v7109 = vmax.f32 %v6853, 0.0
      %v7110 = vmax.f32 %v6854, 0.0
      %v7111 = vmax.f32 %v6855, 0.0
      %v7112 = vmax.f32 %v6856, 0.0
      %v7113 = vmax.f32 %v6857, 0.0
      %v7114 = vmax.f32 %v6858, 0.0
      %v7115 = vmax.f32 %v6859, 0.0
      %v7116 = vmax.f32 %v6860, 0.0
      %v7117 = vld [vmem:[#allocation2] sm:$0xff]
      %v7118 = vld [vmem:[#allocation2 + $0x8] sm:$0xff]
      %v7119 = vld [vmem:[#allocation2 + $0x10] sm:$0xff]
      %v7120 = vld [vmem:[#allocation2 + $0x18] sm:$0xff]
      %v7121 = vld [vmem:[#allocation2 + $0x20] sm:$0xff]
      %v7122 = vld [vmem:[#allocation2 + $0x28] sm:$0xff]
      %v7123 = vld [vmem:[#allocation2 + $0x30] sm:$0xff]
      %v7124 = vld [vmem:[#allocation2 + $0x38] sm:$0xff]
      %v7125 = vadd.f32 %v6861, %v6862
      %v7126 = vadd.f32 %v7125, %v6863
      %v7127 = vadd.f32 %v7126, %v6864
      %v7128 = vadd.f32 %v7127, %v6865
      %v7129 = vadd.f32 %v7128, %v6866
      %v7130 = vadd.f32 %v7129, %v6867
      %v7131 = vadd.f32 %v7130, %v6868
      %v7132 = vadd.f32 %v7131, %v6869
      %v7133 = vadd.f32 %v7132, %v6870
      %v7134 = vadd.f32 %v7133, %v6871
      %v7135 = vadd.f32 %v7134, %v6872
      %v7136 = vadd.f32 %v7135, %v6873
      %v7137 = vadd.f32 %v7136, %v6874
      %v7138 = vadd.f32 %v7137, %v6875
      %v7139 = vadd.f32 %v7138, %v6876
      %v7140 = vadd.f32 %v7139, %v6877
      %v7141 = vadd.f32 %v7140, %v6878
      %v7142 = vadd.f32 %v7141, %v6879
      %v7143 = vadd.f32 %v7142, %v6880
      %v7144 = vadd.f32 %v7143, %v6881
      %v7145 = vadd.f32 %v7144, %v6882
      %v7146 = vadd.f32 %v7145, %v6883
      %v7147 = vadd.f32 %v7146, %v6884
      %v7148 = vadd.f32 %v7147, %v6885
      %v7149 = vadd.f32 %v7148, %v6886
      %v7150 = vadd.f32 %v7149, %v6887
      %v7151 = vadd.f32 %v7150, %v6888
      %v7152 = vadd.f32 %v7151, %v6889
      %v7153 = vadd.f32 %v7152, %v6890
      %v7154 = vadd.f32 %v7153, %v6891
      %v7155 = vadd.f32 %v7154, %v6892
      %v7156 = vadd.f32 %v6893, %v6894
      %v7157 = vadd.f32 %v7156, %v6895
      %v7158 = vadd.f32 %v7157, %v6896
      %v7159 = vadd.f32 %v7158, %v6897
      %v7160 = vadd.f32 %v7159, %v6898
      %v7161 = vadd.f32 %v7160, %v6899
      %v7162 = vadd.f32 %v7161, %v6900
      %v7163 = vadd.f32 %v7162, %v6901
      %v7164 = vadd.f32 %v7163, %v6902
      %v7165 = vadd.f32 %v7164, %v6903
      %v7166 = vadd.f32 %v7165, %v6904
      %v7167 = vadd.f32 %v7166, %v6905
      %v7168 = vadd.f32 %v7167, %v6906
      %v7169 = vadd.f32 %v7168, %v6907
      %v7170 = vadd.f32 %v7169, %v6908
      %v7171 = vadd.f32 %v7170, %v6909
      %v7172 = vadd.f32 %v7171, %v6910
      %v7173 = vadd.f32 %v7172, %v6911
      %v7174 = vadd.f32 %v7173, %v6912
      %v7175 = vadd.f32 %v7174, %v6913
      %v7176 = vadd.f32 %v7175, %v6914
      %v7177 = vadd.f32 %v7176, %v6915
      %v7178 = vadd.f32 %v7177, %v6916
      %v7179 = vadd.f32 %v7178, %v6917
      %v7180 = vadd.f32 %v7179, %v6918
      %v7181 = vadd.f32 %v7180, %v6919
      %v7182 = vadd.f32 %v7181, %v6920
      %v7183 = vadd.f32 %v7182, %v6921
      %v7184 = vadd.f32 %v7183, %v6922
      %v7185 = vadd.f32 %v7184, %v6923
      %v7186 = vadd.f32 %v7185, %v6924
      %v7187 = vadd.f32 %v6925, %v6926
      %v7188 = vadd.f32 %v7187, %v6927
      %v7189 = vadd.f32 %v7188, %v6928
      %v7190 = vadd.f32 %v7189, %v6929
      %v7191 = vadd.f32 %v7190, %v6930
      %v7192 = vadd.f32 %v7191, %v6931
      %v7193 = vadd.f32 %v7192, %v6932
      %v7194 = vadd.f32 %v7193, %v6933
      %v7195 = vadd.f32 %v7194, %v6934
      %v7196 = vadd.f32 %v7195, %v6935
      %v7197 = vadd.f32 %v7196, %v6936
      %v7198 = vadd.f32 %v7197, %v6937
      %v7199 = vadd.f32 %v7198, %v6938
      %v7200 = vadd.f32 %v7199, %v6939
      %v7201 = vadd.f32 %v7200, %v6940
      %v7202 = vadd.f32 %v7201, %v6941
      %v7203 = vadd.f32 %v7202, %v6942
      %v7204 = vadd.f32 %v7203, %v6943
      %v7205 = vadd.f32 %v7204, %v6944
      %v7206 = vadd.f32 %v7205, %v6945
      %v7207 = vadd.f32 %v7206, %v6946
      %v7208 = vadd.f32 %v7207, %v6947
      %v7209 = vadd.f32 %v7208, %v6948
      %v7210 = vadd.f32 %v7209, %v6949
      %v7211 = vadd.f32 %v7210, %v6950
      %v7212 = vadd.f32 %v7211, %v6951
      %v7213 = vadd.f32 %v7212, %v6952
      %v7214 = vadd.f32 %v7213, %v6953
      %v7215 = vadd.f32 %v7214, %v6954
      %v7216 = vadd.f32 %v7215, %v6955
      %v7217 = vadd.f32 %v7216, %v6956
      %v7218 = vadd.f32 %v6957, %v6958
      %v7219 = vadd.f32 %v7218, %v6959
      %v7220 = vadd.f32 %v7219, %v6960
      %v7221 = vadd.f32 %v7220, %v6961
      %v7222 = vadd.f32 %v7221, %v6962
      %v7223 = vadd.f32 %v7222, %v6963
      %v7224 = vadd.f32 %v7223, %v6964
      %v7225 = vadd.f32 %v7224, %v6965
      %v7226 = vadd.f32 %v7225, %v6966
      %v7227 = vadd.f32 %v7226, %v6967
      %v7228 = vadd.f32 %v7227, %v6968
      %v7229 = vadd.f32 %v7228, %v6969
      %v7230 = vadd.f32 %v7229, %v6970
      %v7231 = vadd.f32 %v7230, %v6971
      %v7232 = vadd.f32 %v7231, %v6972
      %v7233 = vadd.f32 %v7232, %v6973
      %v7234 = vadd.f32 %v7233, %v6974
      %v7235 = vadd.f32 %v7234, %v6975
      %v7236 = vadd.f32 %v7235, %v6976
      %v7237 = vadd.f32 %v7236, %v6977
      %v7238 = vadd.f32 %v7237, %v6978
      %v7239 = vadd.f32 %v7238, %v6979
      %v7240 = vadd.f32 %v7239, %v6980
      %v7241 = vadd.f32 %v7240, %v6981
      %v7242 = vadd.f32 %v7241, %v6982
      %v7243 = vadd.f32 %v7242, %v6983
      %v7244 = vadd.f32 %v7243, %v6984
      %v7245 = vadd.f32 %v7244, %v6985
      %v7246 = vadd.f32 %v7245, %v6986
      %v7247 = vadd.f32 %v7246, %v6987
      %v7248 = vadd.f32 %v7247, %v6988
      %v7249 = vadd.f32 %v6989, %v6990
      %v7250 = vadd.f32 %v7249, %v6991
      %v7251 = vadd.f32 %v7250, %v6992
      %v7252 = vadd.f32 %v7251, %v6993
      %v7253 = vadd.f32 %v7252, %v6994
      %v7254 = vadd.f32 %v7253, %v6995
      %v7255 = vadd.f32 %v7254, %v6996
      %v7256 = vadd.f32 %v7255, %v6997
      %v7257 = vadd.f32 %v7256, %v6998
      %v7258 = vadd.f32 %v7257, %v6999
      %v7259 = vadd.f32 %v7258, %v7000
      %v7260 = vadd.f32 %v7259, %v7001
      %v7261 = vadd.f32 %v7260, %v7002
      %v7262 = vadd.f32 %v7261, %v7003
      %v7263 = vadd.f32 %v7262, %v7004
      %v7264 = vadd.f32 %v7263, %v7005
      %v7265 = vadd.f32 %v7264, %v7006
      %v7266 = vadd.f32 %v7265, %v7007
      %v7267 = vadd.f32 %v7266, %v7008
      %v7268 = vadd.f32 %v7267, %v7009
      %v7269 = vadd.f32 %v7268, %v7010
      %v7270 = vadd.f32 %v7269, %v7011
      %v7271 = vadd.f32 %v7270, %v7012
      %v7272 = vadd.f32 %v7271, %v7013
      %v7273 = vadd.f32 %v7272, %v7014
      %v7274 = vadd.f32 %v7273, %v7015
      %v7275 = vadd.f32 %v7274, %v7016
      %v7276 = vadd.f32 %v7275, %v7017
      %v7277 = vadd.f32 %v7276, %v7018
      %v7278 = vadd.f32 %v7277, %v7019
      %v7279 = vadd.f32 %v7278, %v7020
      %v7280 = vadd.f32 %v7021, %v7022
      %v7281 = vadd.f32 %v7280, %v7023
      %v7282 = vadd.f32 %v7281, %v7024
      %v7283 = vadd.f32 %v7282, %v7025
      %v7284 = vadd.f32 %v7283, %v7026
      %v7285 = vadd.f32 %v7284, %v7027
      %v7286 = vadd.f32 %v7285, %v7028
      %v7287 = vadd.f32 %v7286, %v7029
      %v7288 = vadd.f32 %v7287, %v7030
      %v7289 = vadd.f32 %v7288, %v7031
      %v7290 = vadd.f32 %v7289, %v7032
      %v7291 = vadd.f32 %v7290, %v7033
      %v7292 = vadd.f32 %v7291, %v7034
      %v7293 = vadd.f32 %v7292, %v7035
      %v7294 = vadd.f32 %v7293, %v7036
      %v7295 = vadd.f32 %v7294, %v7037
      %v7296 = vadd.f32 %v7295, %v7038
      %v7297 = vadd.f32 %v7296, %v7039
      %v7298 = vadd.f32 %v7297, %v7040
      %v7299 = vadd.f32 %v7298, %v7041
      %v7300 = vadd.f32 %v7299, %v7042
      %v7301 = vadd.f32 %v7300, %v7043
      %v7302 = vadd.f32 %v7301, %v7044
      %v7303 = vadd.f32 %v7302, %v7045
      %v7304 = vadd.f32 %v7303, %v7046
      %v7305 = vadd.f32 %v7304, %v7047
      %v7306 = vadd.f32 %v7305, %v7048
      %v7307 = vadd.f32 %v7306, %v7049
      %v7308 = vadd.f32 %v7307, %v7050
      %v7309 = vadd.f32 %v7308, %v7051
      %v7310 = vadd.f32 %v7309, %v7052
      %v7311 = vadd.f32 %v7053, %v7054
      %v7312 = vadd.f32 %v7311, %v7055
      %v7313 = vadd.f32 %v7312, %v7056
      %v7314 = vadd.f32 %v7313, %v7057
      %v7315 = vadd.f32 %v7314, %v7058
      %v7316 = vadd.f32 %v7315, %v7059
      %v7317 = vadd.f32 %v7316, %v7060
      %v7318 = vadd.f32 %v7317, %v7061
      %v7319 = vadd.f32 %v7318, %v7062
      %v7320 = vadd.f32 %v7319, %v7063
      %v7321 = vadd.f32 %v7320, %v7064
      %v7322 = vadd.f32 %v7321, %v7065
      %v7323 = vadd.f32 %v7322, %v7066
      %v7324 = vadd.f32 %v7323, %v7067
      %v7325 = vadd.f32 %v7324, %v7068
      %v7326 = vadd.f32 %v7325, %v7069
      %v7327 = vadd.f32 %v7326, %v7070
      %v7328 = vadd.f32 %v7327, %v7071
      %v7329 = vadd.f32 %v7328, %v7072
      %v7330 = vadd.f32 %v7329, %v7073
      %v7331 = vadd.f32 %v7330, %v7074
      %v7332 = vadd.f32 %v7331, %v7075
      %v7333 = vadd.f32 %v7332, %v7076
      %v7334 = vadd.f32 %v7333, %v7077
      %v7335 = vadd.f32 %v7334, %v7078
      %v7336 = vadd.f32 %v7335, %v7079
      %v7337 = vadd.f32 %v7336, %v7080
      %v7338 = vadd.f32 %v7337, %v7081
      %v7339 = vadd.f32 %v7338, %v7082
      %v7340 = vadd.f32 %v7339, %v7083
      %v7341 = vadd.f32 %v7340, %v7084
      %v7342 = vadd.f32 %v7085, %v7086
      %v7343 = vadd.f32 %v7342, %v7087
      %v7344 = vadd.f32 %v7343, %v7088
      %v7345 = vadd.f32 %v7344, %v7089
      %v7346 = vadd.f32 %v7345, %v7090
      %v7347 = vadd.f32 %v7346, %v7091
      %v7348 = vadd.f32 %v7347, %v7092
      %v7349 = vadd.f32 %v7348, %v7093
      %v7350 = vadd.f32 %v7349, %v7094
      %v7351 = vadd.f32 %v7350, %v7095
      %v7352 = vadd.f32 %v7351, %v7096
      %v7353 = vadd.f32 %v7352, %v7097
      %v7354 = vadd.f32 %v7353, %v7098
      %v7355 = vadd.f32 %v7354, %v7099
      %v7356 = vadd.f32 %v7355, %v7100
      %v7357 = vadd.f32 %v7356, %v7101
      %v7358 = vadd.f32 %v7357, %v7102
      %v7359 = vadd.f32 %v7358, %v7103
      %v7360 = vadd.f32 %v7359, %v7104
      %v7361 = vadd.f32 %v7360, %v7105
      %v7362 = vadd.f32 %v7361, %v7106
      %v7363 = vadd.f32 %v7362, %v7107
      %v7364 = vadd.f32 %v7363, %v7108
      %v7365 = vadd.f32 %v7364, %v7109
      %v7366 = vadd.f32 %v7365, %v7110
      %v7367 = vadd.f32 %v7366, %v7111
      %v7368 = vadd.f32 %v7367, %v7112
      %v7369 = vadd.f32 %v7368, %v7113
      %v7370 = vadd.f32 %v7369, %v7114
      %v7371 = vadd.f32 %v7370, %v7115
      %v7372 = vadd.f32 %v7371, %v7116
      %v7373 = vadd.f32 %v7117, %v7155
      %v7374 = vadd.f32 %v7118, %v7186
      %v7375 = vadd.f32 %v7119, %v7217
      %v7376 = vadd.f32 %v7120, %v7248
      %v7377 = vadd.f32 %v7121, %v7279
      %v7378 = vadd.f32 %v7122, %v7310
      %v7379 = vadd.f32 %v7123, %v7341
      %v7380 = vadd.f32 %v7124, %v7372
      %7381 = vst [vmem:[#allocation2] sm:$0xff] %v7373
      %7382 = vst [vmem:[#allocation2 + $0x8] sm:$0xff] %v7374
      %7383 = vst [vmem:[#allocation2 + $0x10] sm:$0xff] %v7375
      %7384 = vst [vmem:[#allocation2 + $0x18] sm:$0xff] %v7376
      %7385 = vst [vmem:[#allocation2 + $0x20] sm:$0xff] %v7377
      %7386 = vst [vmem:[#allocation2 + $0x28] sm:$0xff] %v7378
      %7387 = vst [vmem:[#allocation2 + $0x30] sm:$0xff] %v7379
      %7388 = vst [vmem:[#allocation2 + $0x38] sm:$0xff] %v7380
      // Predicated region
      $region33: #{encoder_cnn_forward.2} parent=27 // pred_check
        %p7389 = pneg %p175
      $region34: #{encoder_cnn_forward.2} parent=27 // pred_check_branch
        %7391 = sbr.rel (%p7389) target = $region36
      $region35: #{encoder_cnn_forward.2} parent=27 // pred_region
        %v7392 = vld [vmem:[#allocation2] sm:$0xff]
        %v7393 = vld [vmem:[#allocation2 + $0x8] sm:$0xff]
        %v7394 = vld [vmem:[#allocation2 + $0x10] sm:$0xff]
        %v7395 = vld [vmem:[#allocation2 + $0x18] sm:$0xff]
        %v7396 = vld [vmem:[#allocation2 + $0x20] sm:$0xff]
        %v7397 = vld [vmem:[#allocation2 + $0x28] sm:$0xff]
        %v7398 = vld [vmem:[#allocation2 + $0x30] sm:$0xff]
        %v7399 = vld [vmem:[#allocation2 + $0x38] sm:$0xff]
        %v7400 = vrot.slane %v7392, 4
        %v7401 = vadd.f32 %v7392, %v7400
        %v7402 = vrot.slane %v7401, 2
        %v7403 = vadd.f32 %v7401, %v7402
        %v7404 = vrot.slane %v7403, 1
        %v7405 = vadd.f32 %v7403, %v7404
        %v7406 = vrot.slane %v7393, 4
        %v7407 = vadd.f32 %v7393, %v7406
        %v7408 = vrot.slane %v7407, 2
        %v7409 = vadd.f32 %v7407, %v7408
        %v7410 = vrot.slane %v7409, 1
        %v7411 = vadd.f32 %v7409, %v7410
        %v7412 = vrot.slane %v7394, 4
        %v7413 = vadd.f32 %v7394, %v7412
        %v7414 = vrot.slane %v7413, 2
        %v7415 = vadd.f32 %v7413, %v7414
        %v7416 = vrot.slane %v7415, 1
        %v7417 = vadd.f32 %v7415, %v7416
        %v7418 = vrot.slane %v7395, 4
        %v7419 = vadd.f32 %v7395, %v7418
        %v7420 = vrot.slane %v7419, 2
        %v7421 = vadd.f32 %v7419, %v7420
        %v7422 = vrot.slane %v7421, 1
        %v7423 = vadd.f32 %v7421, %v7422
        %v7424 = vrot.slane %v7396, 4
        %v7425 = vadd.f32 %v7396, %v7424
        %v7426 = vrot.slane %v7425, 2
        %v7427 = vadd.f32 %v7425, %v7426
        %v7428 = vrot.slane %v7427, 1
        %v7429 = vadd.f32 %v7427, %v7428
        %v7430 = vrot.slane %v7397, 4
        %v7431 = vadd.f32 %v7397, %v7430
        %v7432 = vrot.slane %v7431, 2
        %v7433 = vadd.f32 %v7431, %v7432
        %v7434 = vrot.slane %v7433, 1
        %v7435 = vadd.f32 %v7433, %v7434
        %v7436 = vrot.slane %v7398, 4
        %v7437 = vadd.f32 %v7398, %v7436
        %v7438 = vrot.slane %v7437, 2
        %v7439 = vadd.f32 %v7437, %v7438
        %v7440 = vrot.slane %v7439, 1
        %v7441 = vadd.f32 %v7439, %v7440
        %v7442 = vrot.slane %v7399, 4
        %v7443 = vadd.f32 %v7399, %v7442
        %v7444 = vrot.slane %v7443, 2
        %v7445 = vadd.f32 %v7443, %v7444
        %v7446 = vrot.slane %v7445, 1
        %v7447 = vadd.f32 %v7445, %v7446
        %v7448 = vmul.f32 %v7405, 0.00390625
        %v7449 = vmul.f32 %v7411, 0.00390625
        %v7450 = vmul.f32 %v7417, 0.00390625
        %v7451 = vmul.f32 %v7423, 0.00390625
        %v7452 = vmul.f32 %v7429, 0.00390625
        %v7453 = vmul.f32 %v7435, 0.00390625
        %v7454 = vmul.f32 %v7441, 0.00390625
        %v7455 = vmul.f32 %v7447, 0.00390625
        %vm7464 = vcmask 1041409
        %v7465 = vsel %vm7464, %v7449, %v7448
        %vm7466 = vcmask 1042434
        %v7467 = vsel %vm7466, %v7450, %v7465
        %vm7468 = vcmask 1043459
        %v7469 = vsel %vm7468, %v7451, %v7467
        %vm7470 = vcmask 1044484
        %v7471 = vsel %vm7470, %v7452, %v7469
        %vm7472 = vcmask 1045509
        %v7473 = vsel %vm7472, %v7453, %v7471
        %vm7474 = vcmask 1046534
        %v7475 = vsel %vm7474, %v7454, %v7473
        %vm7476 = vcmask 1047559
        %v7477 = vsel %vm7476, %v7455, %v7475
        %7479 = vst [vmem:[%s174] sm:$0xff] %v7477
      $region36: #{encoder_cnn_forward.2} parent=27 // pred_fallthru
        _
      %p7480 = scmp.lt.s32.totalorder %s17, 1
      %s7481 = scalar_select %p7480, %s17, 1
      %s7482 = smul.addr %s7481, 8
      %s7483 = scalar_lea.vmem %s2, %s7482
      // Predicated region
      $region37: #{encoder_cnn_forward.2} parent=27 // pred_check
        %p7484 = pneg %p92
      $region38: #{encoder_cnn_forward.2} parent=27 // pred_check_branch
        %7486 = sbr.rel (%p7484) target = $region40
      $region39: #{encoder_cnn_forward.2} parent=27 // pred_region
        _
      $region40: #{encoder_cnn_forward.2} parent=27 // pred_fallthru
        _
    $region28: #{encoder_cnn_forward.2} parent=5 // pred_fallthru
      _
    %p7487 = scmp.le.s32.totalorder 2, %s8
    // Predicated region
    $region41: #{encoder_cnn_forward.2} parent=5 // pred_check
      %p7488 = pneg %p7487
    $region42: #{encoder_cnn_forward.2} parent=5 // pred_check_branch
      %7490 = sbr.rel (%p7488) target = $region44
    $region43: #{encoder_cnn_forward.2} parent=5 // pred_region
      %s7491 = ssub.s32 %s8, 2
      // Predicated region
      $region45: #{encoder_cnn_forward.2} parent=43 // pred_check
        %p7492 = pneg %p98
      $region46: #{encoder_cnn_forward.2} parent=43 // pred_check_branch
        %7494 = sbr.rel (%p7492) target = $region48
      $region47: #{encoder_cnn_forward.2} parent=43 // pred_region
        %p7495 = scmp.lt.s32.totalorder %s19, 1
        %s7496 = scalar_select %p7495, %s19, 1
        %s7497 = smul.addr %s7496, 8
        %s7498 = scalar_lea.vmem %s2, %s7497
      $region48: #{encoder_cnn_forward.2} parent=43 // pred_fallthru
        _
    $region44: #{encoder_cnn_forward.2} parent=5 // pred_fallthru
      _
  $region6: #{encoder_cnn_forward.2} parent=0 // loop_footer
    %s12 = sadd.s32 1, %s8
  $region7: #{encoder_cnn_forward.2} parent=0 // loop_footer_branch
    %7 = sbr.rel target = $region3
  $region8: #{encoder_cnn_forward.2} parent=0 // loop_exit
    _

</llo_original>
